<compile_context>
chip_gen: v6e
topology: v6e:2x2x1
jax: 0.10.0
libtpu: 0.0.40
codegen_flags: <defaults>
</compile_context>

<pallas_src>
import math

import jax
import jax.numpy as jnp
from jax.experimental import pallas as pl
from jax.experimental.pallas import tpu as pltpu

# ----------------------- static config (consistent with the module) -----------------------
B = 2            # batch
S = 8            # seq_len
DIM_OBS = 4      # dim_observation
DIM_ACT = 4      # dim_action
DIM_EMBED = 32   # dim_embed (== dim_hidden)
DIM_HIDDEN = 32
NUM_HEADS = 2
DIM_HEAD = 16    # num_heads * dim_head == dim_hidden
DIM_FFN = 64
NUM_LAYERS = 2
MAX_LEN = 16
DIM_CONDITION = 16
LATENT = 8
ENC_HIDDEN = 32  # encoder_layer_sizes = [dim_embed, 32] (first gets +dim_condition)
DEC_HIDDEN = 32  # decoder_layer_sizes = [32, dim_action], action_tanh=True
LANES = 128
OUT_W = DIM_ACT + 3 * LATENT   # packed output lanes: recon(4) | mean(8) | log_var(8) | z(8)


# ----------------------------------- in-kernel helpers -----------------------------------
def _gelu(x):
    # exact (erf-based) GELU to match torch.nn.functional.gelu default
    return 0.5 * x * (1.0 + jax.lax.erf(x * (1.0 / math.sqrt(2.0))))


def _layernorm(x, g, b, eps=1e-5):
    m = jnp.mean(x, axis=-1, keepdims=True)
    v = jnp.mean(jnp.square(x - m), axis=-1, keepdims=True)
    return (x - m) * jax.lax.rsqrt(v + eps) * g + b


# ----------------------------------- weight slab packing -----------------------------------
class SlabBuilder:
    """Packs every weight/constant into one (R, 128) f32 slab; 8-aligned row segments."""

    def __init__(self, lanes=LANES):
        self.lanes = lanes
        self.blocks = []
        self.segs = {}       # name -> (row0, nrows, ncols)  (plain Python ints)
        self.nrows = 0

    def add(self, name, arr):
        arr = jnp.asarray(arr, jnp.float32)
        if arr.ndim == 1:
            arr = arr[None, :]
        r, c = int(arr.shape[0]), int(arr.shape[1])
        assert c <= self.lanes, name
        rpad = (-r) % 8
        blk = jnp.pad(arr, ((0, rpad), (0, self.lanes - c)))
        self.segs[name] = (self.nrows, r, c)
        self.blocks.append(blk)
        self.nrows += r + rpad

    def build(self):
        return jnp.concatenate(self.blocks, axis=0), self.segs


def _init_linear(key, in_dim, out_dim, bias=True):
    kw, kb = jax.random.split(key)
    w = jax.random.normal(kw, (in_dim, out_dim), jnp.float32) * 0.05
    b = jax.random.normal(kb, (out_dim,), jnp.float32) * 0.05 if bias else None
    return w, b


def _positional_encoding(max_len, dim_embed):
    position = jnp.arange(max_len, dtype=jnp.float32)[:, None]
    div_term = jnp.exp(jnp.arange(0, dim_embed, 2, dtype=jnp.float32)
                       * (-math.log(10000.0) / dim_embed))
    pe = jnp.zeros((max_len, dim_embed), jnp.float32)
    pe = pe.at[:, 0::2].set(jnp.sin(position * div_term))
    pe = pe.at[:, 1::2].set(jnp.cos(position * div_term))
    return pe


def init_slab(key):
    sb = SlabBuilder()
    keys = iter(jax.random.split(key, 64))

    # GPT2.embed : Linear(dim_obs+dim_act, dim_embed), PE (pre-tiled over batch), pre-LN
    ew, eb = _init_linear(next(keys), DIM_OBS + DIM_ACT, DIM_EMBED)
    sb.add("embed_w", ew)
    sb.add("embed_b", eb)
    pe = _positional_encoding(MAX_LEN, DIM_EMBED)[:S]
    sb.add("pe", jnp.tile(pe, (B, 1)))                          # (B*S, 32)
    sb.add("ln_g", jnp.ones((DIM_HIDDEN,), jnp.float32))
    sb.add("ln_b", jnp.zeros((DIM_HIDDEN,), jnp.float32))

    # additive cross-batch block mask for the batch-fused attention score matmul
    row_b = jnp.arange(B * S) // S
    bmask = jnp.where(row_b[:, None] == row_b[None, :], 0.0, -1e9).astype(jnp.float32)
    sb.add("attn_bmask", bmask)                                 # (B*S, B*S)

    for l in range(NUM_LAYERS):
        wq, _ = _init_linear(next(keys), DIM_HIDDEN, NUM_HEADS * DIM_HEAD, bias=False)
        wk, _ = _init_linear(next(keys), DIM_HIDDEN, NUM_HEADS * DIM_HEAD, bias=False)
        wv, _ = _init_linear(next(keys), DIM_HIDDEN, NUM_HEADS * DIM_HEAD, bias=False)
        wo, bo = _init_linear(next(keys), NUM_HEADS * DIM_HEAD, DIM_HIDDEN)
        for h in range(NUM_HEADS):                              # pre-split per head
            cs = slice(h * DIM_HEAD, (h + 1) * DIM_HEAD)
            sb.add(f"wq{l}h{h}", wq[:, cs])                     # (32, 16)
            sb.add(f"wk{l}h{h}", wk[:, cs])
            sb.add(f"wv{l}h{h}", wv[:, cs])
            sb.add(f"wo{l}h{h}", wo[cs, :])                     # (16, 32) head-merge fold
        sb.add(f"bo{l}", bo)
        sb.add(f"ln1g{l}", jnp.ones((DIM_HIDDEN,), jnp.float32))
        sb.add(f"ln1b{l}", jnp.zeros((DIM_HIDDEN,), jnp.float32))
        w1, b1 = _init_linear(next(keys), DIM_HIDDEN, DIM_FFN)  # Conv1d(k=1) == Linear
        w2, b2 = _init_linear(next(keys), DIM_FFN, DIM_HIDDEN)
        sb.add(f"ffn_w1{l}", w1)
        sb.add(f"ffn_b1{l}", b1)
        sb.add(f"ffn_w2{l}", w2)
        sb.add(f"ffn_b2{l}", b2)
        sb.add(f"ln2g{l}", jnp.ones((DIM_HIDDEN,), jnp.float32))
        sb.add(f"ln2b{l}", jnp.zeros((DIM_HIDDEN,), jnp.float32))

    # fc_condi: Linear(S*dim_hidden, dim_condition); fold flatten(start_dim=1) into constants:
    #   c[b,k] = sum_{s,d} x[b,s,d] * W[s*32+d, k]  computed as ((x @ Wstack) * Msel) -> Agg -> R
    fcw, fcb = _init_linear(next(keys), S * DIM_HIDDEN, DIM_CONDITION)
    w3 = fcw.reshape(S, DIM_HIDDEN, DIM_CONDITION)
    sb.add("fc_wstack", jnp.transpose(w3, (1, 0, 2)).reshape(DIM_HIDDEN, S * DIM_CONDITION))
    rows_mod = jnp.arange(B * S) % S
    col_s = jnp.arange(S * DIM_CONDITION) // DIM_CONDITION
    sb.add("fc_msel", (rows_mod[:, None] == col_s[None, :]).astype(jnp.float32))  # (16, 128)
    sb.add("fc_agg", (jnp.arange(B)[:, None] == row_b[None, :]).astype(jnp.float32))  # (2, 16)
    sb.add("fc_r", jnp.tile(jnp.eye(DIM_CONDITION, dtype=jnp.float32), (S, 1)))   # (128, 16)
    sb.add("fc_b", fcb)

    # CVAE.embed : Linear(dim_action, dim_embed)
    cew, ceb = _init_linear(next(keys), DIM_ACT, DIM_EMBED)
    sb.add("cvae_embed_w", cew)
    sb.add("cvae_embed_b", ceb)

    # CVAEEncoder: Linear(dim_embed+dim_condition, 32)+ReLU, then means/log_var heads
    encw, encb = _init_linear(next(keys), DIM_EMBED + DIM_CONDITION, ENC_HIDDEN)
    sb.add("enc_w0_x", encw[:DIM_EMBED])
    sb.add("enc_w0_c", encw[DIM_EMBED:])
    sb.add("enc_b0", encb)
    mw, mb = _init_linear(next(keys), ENC_HIDDEN, LATENT)
    sb.add("enc_mean_w", mw)
    sb.add("enc_mean_b", mb)
    lw, lb = _init_linear(next(keys), ENC_HIDDEN, LATENT)
    sb.add("enc_lv_w", lw)
    sb.add("enc_lv_b", lb)

    # CVAEDecoder: Linear(latent+dim_condition, 32)+ReLU -> Linear(32, dim_action)+Tanh
    dw0, db0 = _init_linear(next(keys), LATENT + DIM_CONDITION, DEC_HIDDEN)
    sb.add("dec_w0_z", dw0[:LATENT])
    sb.add("dec_w0_c", dw0[LATENT:])
    sb.add("dec_b0", db0)
    dw1, db1 = _init_linear(next(keys), DEC_HIDDEN, DIM_ACT)
    sb.add("dec_w1", dw1)
    sb.add("dec_b1", db1)

    return sb.build()


# ----------------------------------- the fused kernel -----------------------------------
def _make_kernel(segs):
    scale = 1.0 / math.sqrt(DIM_HEAD)
    f32 = jnp.float32

    def kernel(w_ref, in_ref, na_ref, eps_ref, out_ref):
        def rd(name):
            r0, nr, nc = segs[name]
            return w_ref[r0:r0 + nr, 0:nc]

        # ---- GPT2 prelude: embed + gelu, + positional encoding, LayerNorm (dropout=0) ----
        e = _gelu(jnp.dot(in_ref[...], rd("embed_w"), preferred_element_type=f32)
                  + rd("embed_b"))
        x = _layernorm(e + rd("pe"), rd("ln_g"), rd("ln_b"))          # (B*S, 32), stays resident

        bmask = rd("attn_bmask")                                      # 0 within batch, -1e9 across

        # ---- NUM_LAYERS GPT2 decoder layers, fully unrolled ----
        for l in range(NUM_LAYERS):
            attn = rd(f"bo{l}")                                       # (1, 32) broadcasts
            for h in range(NUM_HEADS):
                q = jnp.dot(x, rd(f"wq{l}h{h}"), preferred_element_type=f32)   # (16, 16)
                k = jnp.dot(x, rd(f"wk{l}h{h}"), preferred_element_type=f32)
                v = jnp.dot(x, rd(f"wv{l}h{h}"), preferred_element_type=f32)
                s = jax.lax.dot_general(q, k, (((1,), (1,)), ((), ())),
                                        preferred_element_type=f32) * scale + bmask
                # TODO(synk): data['mask'] is assumed all-True (attn_mask=~mask applies no
                #             masked_fill); bmask only blocks cross-batch attention here.
                s = s - jnp.max(s, axis=-1, keepdims=True)
                p = jnp.exp(s)
                p = p / jnp.sum(p, axis=-1, keepdims=True)            # exact softmax
                o = jnp.dot(p, v, preferred_element_type=f32)         # (16, 16)
                attn = attn + jnp.dot(o, rd(f"wo{l}h{h}"), preferred_element_type=f32)
            x1 = _layernorm(x + attn, rd(f"ln1g{l}"), rd(f"ln1b{l}"))
            hmid = _gelu(jnp.dot(x1, rd(f"ffn_w1{l}"), preferred_element_type=f32)
                         + rd(f"ffn_b1{l}"))
            ffn = jnp.dot(hmid, rd(f"ffn_w2{l}"), preferred_element_type=f32) + rd(f"ffn_b2{l}")
            x = _layernorm(x1 + ffn, rd(f"ln2g{l}"), rd(f"ln2b{l}"))

        # ---- c = gelu(fc_condi(flatten(x))) without any in-kernel reshape ----
        zc = jnp.dot(x, rd("fc_wstack"), preferred_element_type=f32) * rd("fc_msel")  # (16, 128)
        t = jnp.dot(rd("fc_agg"), zc, preferred_element_type=f32)                     # (2, 128)
        c = _gelu(jnp.dot(t, rd("fc_r"), preferred_element_type=f32) + rd("fc_b"))    # (2, 16)

        # ---- CVAE heads: embed(next_action), encoder, reparameterize, decoder ----
        xa = _gelu(jnp.dot(na_ref[...], rd("cvae_embed_w"), preferred_element_type=f32)
                   + rd("cvae_embed_b"))                                               # (2, 32)
        h_enc = jnp.maximum(
            jnp.dot(xa, rd("enc_w0_x"), preferred_element_type=f32)
            + jnp.dot(c, rd("enc_w0_c"), preferred_element_type=f32) + rd("enc_b0"), 0.0)
        mean = jnp.dot(h_enc, rd("enc_mean_w"), preferred_element_type=f32) + rd("enc_mean_b")
        log_var = jnp.dot(h_enc, rd("enc_lv_w"), preferred_element_type=f32) + rd("enc_lv_b")
        z = mean + eps_ref[...] * jnp.exp(0.5 * log_var)
        h_dec = jnp.maximum(
            jnp.dot(z, rd("dec_w0_z"), preferred_element_type=f32)
            + jnp.dot(c, rd("dec_w0_c"), preferred_element_type=f32) + rd("dec_b0"), 0.0)
        recon = jnp.tanh(jnp.dot(h_dec, rd("dec_w1"), preferred_element_type=f32) + rd("dec_b1"))

        # ---- single packed output slab: recon | mean | log_var | z ----
        out_ref[:, 0:DIM_ACT] = recon
        out_ref[:, DIM_ACT:DIM_ACT + LATENT] = mean
        out_ref[:, DIM_ACT + LATENT:DIM_ACT + 2 * LATENT] = log_var
        out_ref[:, DIM_ACT + 2 * LATENT:DIM_ACT + 3 * LATENT] = z

    return kernel


def make_forward(segs, slab_rows):
    kernel = _make_kernel(segs)

    def forward(wslab, data, eps):
        # th.cat((observation, action), dim=-1), flattened over (batch, seq)
        inputs = jnp.concatenate(
            [data["observation"].reshape(B * S, DIM_OBS),
             data["action"].reshape(B * S, DIM_ACT)], axis=-1)
        next_action = data["next_action"].reshape(B, DIM_ACT)   # .squeeze()

        packed = pl.pallas_call(
            kernel,
            out_shape=jax.ShapeDtypeStruct((B, OUT_W), jnp.float32),
            grid=(1,),
            in_specs=[
                pl.BlockSpec((slab_rows, LANES), lambda i: (0, 0)),          # weight slab
                pl.BlockSpec((B * S, DIM_OBS + DIM_ACT), lambda i: (0, 0)),  # obs|act
                pl.BlockSpec((B, DIM_ACT), lambda i: (0, 0)),                # next_action
                pl.BlockSpec((B, LATENT), lambda i: (0, 0)),                 # eps
            ],
            out_specs=pl.BlockSpec((B, OUT_W), lambda i: (0, 0)),
            compiler_params=pltpu.CompilerParams(dimension_semantics=("arbitrary",)),
        )(wslab, inputs, next_action, eps)

        recon_x = packed[:, 0:DIM_ACT]
        mean = packed[:, DIM_ACT:DIM_ACT + LATENT]
        log_var = packed[:, DIM_ACT + LATENT:DIM_ACT + 2 * LATENT]
        z = packed[:, DIM_ACT + 2 * LATENT:DIM_ACT + 3 * LATENT]
        return recon_x, mean, log_var, z

    return forward


# ----------------------------------- main -----------------------------------
if __name__ == "__main__":
    key = jax.random.PRNGKey(0)
    k_obs, k_act, k_na, k_eps = jax.random.split(key, 4)
    data = {
        "observation": jax.random.normal(k_obs, (B, S, DIM_OBS), jnp.float32),
        "action": jax.random.normal(k_act, (B, S, DIM_ACT), jnp.float32),
        "next_action": jax.random.normal(k_na, (B, 1, DIM_ACT), jnp.float32),
        "mask": jnp.ones((B, S, S), dtype=bool),   # all-True -> attention unmasked (matches PyTorch)
    }
    eps = jax.random.normal(k_eps, (B, LATENT), jnp.float32)   # torch.randn_like(std)

    wslab, segs = init_slab(jax.random.PRNGKey(1))
    fwd = jax.jit(make_forward(segs, int(wslab.shape[0])))

    recon_x, mean, log_var, z = fwd(wslab, data, eps)
    jax.block_until_ready((recon_x, mean, log_var, z))

    assert recon_x.shape == (B, DIM_ACT)
    assert mean.shape == (B, LATENT) and log_var.shape == (B, LATENT) and z.shape == (B, LATENT)
    assert bool(jnp.all(jnp.isfinite(recon_x))) and bool(jnp.all(jnp.isfinite(z)))
    assert bool(jnp.all(jnp.isfinite(mean))) and bool(jnp.all(jnp.isfinite(log_var)))
    print("KERNEL_OK")
</pallas_src>

<mosaic_0001>
module attributes {stable_mosaic.version = 11 : i64} {
  func.func @kernel(%arg0: i32, %arg1: memref<1232x128xf32, #tpu.memory_space<vmem>>, %arg2: memref<16x8xf32, #tpu.memory_space<vmem>>, %arg3: memref<2x4xf32, #tpu.memory_space<vmem>>, %arg4: memref<2x8xf32, #tpu.memory_space<vmem>>, %arg5: memref<2x28xf32, #tpu.memory_space<vmem>>) attributes {dimension_semantics = [#tpu.dimension_semantics<arbitrary>], iteration_bounds = array<i64: 1>, scalar_prefetch = 0 : i64, scratch_operands = 0 : i64, tpu.core_type = #tpu.core_type<tc>, window_params = [{pipeline_mode = #tpu.pipeline_mode<synchronous>, transform_indices = @transform_0, window_bounds = array<i64: 1232, 128>}, {pipeline_mode = #tpu.pipeline_mode<synchronous>, transform_indices = @transform_1, window_bounds = array<i64: 16, 8>}, {pipeline_mode = #tpu.pipeline_mode<synchronous>, transform_indices = @transform_2, window_bounds = array<i64: 2, 4>}, {pipeline_mode = #tpu.pipeline_mode<synchronous>, transform_indices = @transform_3, window_bounds = array<i64: 2, 8>}, {pipeline_mode = #tpu.pipeline_mode<synchronous>, transform_indices = @transform_4, window_bounds = array<i64: 2, 28>}]} {
    %c0 = arith.constant 0 : index
    %c0_0 = arith.constant 0 : index
    %0 = vector.load %arg2[%c0, %c0_0] : memref<16x8xf32, #tpu.memory_space<vmem>>, vector<16x8xf32>
    %c0_1 = arith.constant 0 : index
    %c0_2 = arith.constant 0 : index
    %1 = vector.load %arg1[%c0_1, %c0_2] : memref<1232x128xf32, #tpu.memory_space<vmem>>, vector<8x32xf32>
    %cst = arith.constant dense<0.000000e+00> : vector<16x32xf32>
    %2 = tpu.matmul %0, %1, %cst {dimension_numbers = #tpu.dot_dimension_numbers<[1], [0], [0], [1], [0, 0, 1, 1], [], []>} : vector<16x8xf32>, vector<8x32xf32>, vector<16x32xf32> -> vector<16x32xf32>
    %c8 = arith.constant 8 : index
    %c0_3 = arith.constant 0 : index
    %3 = vector.load %arg1[%c8, %c0_3] : memref<1232x128xf32, #tpu.memory_space<vmem>>, vector<1x32xf32>
    %4 = vector.broadcast %3 : vector<1x32xf32> to vector<16x32xf32>
    %5 = arith.addf %2, %4 : vector<16x32xf32>
    %cst_4 = arith.constant 5.000000e-01 : f32
    %6 = vector.broadcast %cst_4 : f32 to vector<16x32xf32>
    %7 = arith.mulf %6, %5 : vector<16x32xf32>
    %cst_5 = arith.constant 0.707106769 : f32
    %8 = vector.broadcast %cst_5 : f32 to vector<16x32xf32>
    %9 = arith.mulf %5, %8 : vector<16x32xf32>
    %10 = math.erf %9 : vector<16x32xf32>
    %cst_6 = arith.constant 1.000000e+00 : f32
    %11 = vector.broadcast %cst_6 : f32 to vector<16x32xf32>
    %12 = arith.addf %11, %10 : vector<16x32xf32>
    %13 = arith.mulf %7, %12 : vector<16x32xf32>
    %c16 = arith.constant 16 : index
    %c0_7 = arith.constant 0 : index
    %14 = vector.load %arg1[%c16, %c0_7] : memref<1232x128xf32, #tpu.memory_space<vmem>>, vector<16x32xf32>
    %15 = arith.addf %13, %14 : vector<16x32xf32>
    %c32 = arith.constant 32 : index
    %c0_8 = arith.constant 0 : index
    %16 = vector.load %arg1[%c32, %c0_8] : memref<1232x128xf32, #tpu.memory_space<vmem>>, vector<1x32xf32>
    %c40 = arith.constant 40 : index
    %c0_9 = arith.constant 0 : index
    %17 = vector.load %arg1[%c40, %c0_9] : memref<1232x128xf32, #tpu.memory_space<vmem>>, vector<1x32xf32>
    %cst_10 = arith.constant dense<0.000000e+00> : vector<16xf32>
    %18 = vector.multi_reduction <add>, %15, %cst_10 [1] : vector<16x32xf32> to vector<16xf32>
    %19 = vector.shape_cast %18 : vector<16xf32> to vector<16x1xf32>
    %cst_11 = arith.constant 3.200000e+01 : f32
    %20 = vector.broadcast %cst_11 : f32 to vector<16x1xf32>
    %21 = arith.divf %19, %20 : vector<16x1xf32>
    %22 = vector.broadcast %21 : vector<16x1xf32> to vector<16x32xf32>
    %23 = arith.subf %15, %22 : vector<16x32xf32>
    %24 = arith.mulf %23, %23 : vector<16x32xf32>
    %cst_12 = arith.constant dense<0.000000e+00> : vector<16xf32>
    %25 = vector.multi_reduction <add>, %24, %cst_12 [1] : vector<16x32xf32> to vector<16xf32>
    %26 = vector.shape_cast %25 : vector<16xf32> to vector<16x1xf32>
    %cst_13 = arith.constant 3.200000e+01 : f32
    %27 = vector.broadcast %cst_13 : f32 to vector<16x1xf32>
    %28 = arith.divf %26, %27 : vector<16x1xf32>
    %29 = vector.broadcast %21 : vector<16x1xf32> to vector<16x32xf32>
    %30 = arith.subf %15, %29 : vector<16x32xf32>
    %cst_14 = arith.constant 9.99999974E-6 : f32
    %31 = vector.broadcast %cst_14 : f32 to vector<16x1xf32>
    %32 = arith.addf %28, %31 : vector<16x1xf32>
    %33 = math.rsqrt %32 : vector<16x1xf32>
    %34 = vector.broadcast %33 : vector<16x1xf32> to vector<16x32xf32>
    %35 = arith.mulf %30, %34 : vector<16x32xf32>
    %36 = vector.broadcast %16 : vector<1x32xf32> to vector<16x32xf32>
    %37 = arith.mulf %35, %36 : vector<16x32xf32>
    %38 = vector.broadcast %17 : vector<1x32xf32> to vector<16x32xf32>
    %39 = arith.addf %37, %38 : vector<16x32xf32>
    %c48 = arith.constant 48 : index
    %c0_15 = arith.constant 0 : index
    %40 = vector.load %arg1[%c48, %c0_15] : memref<1232x128xf32, #tpu.memory_space<vmem>>, vector<16x16xf32>
    %c288 = arith.constant 288 : index
    %c0_16 = arith.constant 0 : index
    %41 = vector.load %arg1[%c288, %c0_16] : memref<1232x128xf32, #tpu.memory_space<vmem>>, vector<1x32xf32>
    %c64 = arith.constant 64 : index
    %c0_17 = arith.constant 0 : index
    %42 = vector.load %arg1[%c64, %c0_17] : memref<1232x128xf32, #tpu.memory_space<vmem>>, vector<32x16xf32>
    %cst_18 = arith.constant dense<0.000000e+00> : vector<16x16xf32>
    %43 = tpu.matmul %39, %42, %cst_18 {dimension_numbers = #tpu.dot_dimension_numbers<[1], [0], [0], [1], [0, 0, 1, 1], [], []>} : vector<16x32xf32>, vector<32x16xf32>, vector<16x16xf32> -> vector<16x16xf32>
    %c96 = arith.constant 96 : index
    %c0_19 = arith.constant 0 : index
    %44 = vector.load %arg1[%c96, %c0_19] : memref<1232x128xf32, #tpu.memory_space<vmem>>, vector<32x16xf32>
    %cst_20 = arith.constant dense<0.000000e+00> : vector<16x16xf32>
    %45 = tpu.matmul %39, %44, %cst_20 {dimension_numbers = #tpu.dot_dimension_numbers<[1], [0], [0], [1], [0, 0, 1, 1], [], []>} : vector<16x32xf32>, vector<32x16xf32>, vector<16x16xf32> -> vector<16x16xf32>
    %c128 = arith.constant 128 : index
    %c0_21 = arith.constant 0 : index
    %46 = vector.load %arg1[%c128, %c0_21] : memref<1232x128xf32, #tpu.memory_space<vmem>>, vector<32x16xf32>
    %cst_22 = arith.constant dense<0.000000e+00> : vector<16x16xf32>
    %47 = tpu.matmul %39, %46, %cst_22 {dimension_numbers = #tpu.dot_dimension_numbers<[1], [0], [0], [1], [0, 0, 1, 1], [], []>} : vector<16x32xf32>, vector<32x16xf32>, vector<16x16xf32> -> vector<16x16xf32>
    %cst_23 = arith.constant dense<0.000000e+00> : vector<16x16xf32>
    %48 = tpu.matmul %43, %45, %cst_23 {dimension_numbers = #tpu.dot_dimension_numbers<[1], [1], [0], [0], [0, 0, 1, 0], [], []>} : vector<16x16xf32>, vector<16x16xf32>, vector<16x16xf32> -> vector<16x16xf32>
    %cst_24 = arith.constant 2.500000e-01 : f32
    %49 = vector.broadcast %cst_24 : f32 to vector<16x16xf32>
    %50 = arith.mulf %48, %49 : vector<16x16xf32>
    %51 = arith.addf %50, %40 : vector<16x16xf32>
    %cst_25 = arith.constant dense<0xFF800000> : vector<16xf32>
    %52 = vector.multi_reduction <maximumf>, %51, %cst_25 [1] : vector<16x16xf32> to vector<16xf32>
    %53 = vector.shape_cast %52 : vector<16xf32> to vector<16x1xf32>
    %54 = vector.broadcast %53 : vector<16x1xf32> to vector<16x16xf32>
    %55 = arith.subf %51, %54 : vector<16x16xf32>
    %56 = math.exp %55 : vector<16x16xf32>
    %cst_26 = arith.constant dense<0.000000e+00> : vector<16xf32>
    %57 = vector.multi_reduction <add>, %56, %cst_26 [1] : vector<16x16xf32> to vector<16xf32>
    %58 = vector.shape_cast %57 : vector<16xf32> to vector<16x1xf32>
    %59 = vector.broadcast %58 : vector<16x1xf32> to vector<16x16xf32>
    %60 = arith.divf %56, %59 : vector<16x16xf32>
    %cst_27 = arith.constant dense<0.000000e+00> : vector<16x16xf32>
    %61 = tpu.matmul %60, %47, %cst_27 {dimension_numbers = #tpu.dot_dimension_numbers<[1], [0], [0], [1], [0, 0, 1, 1], [], []>} : vector<16x16xf32>, vector<16x16xf32>, vector<16x16xf32> -> vector<16x16xf32>
    %c160 = arith.constant 160 : index
    %c0_28 = arith.constant 0 : index
    %62 = vector.load %arg1[%c160, %c0_28] : memref<1232x128xf32, #tpu.memory_space<vmem>>, vector<16x32xf32>
    %cst_29 = arith.constant dense<0.000000e+00> : vector<16x32xf32>
    %63 = tpu.matmul %61, %62, %cst_29 {dimension_numbers = #tpu.dot_dimension_numbers<[1], [0], [0], [1], [0, 0, 1, 1], [], []>} : vector<16x16xf32>, vector<16x32xf32>, vector<16x32xf32> -> vector<16x32xf32>
    %64 = vector.broadcast %41 : vector<1x32xf32> to vector<16x32xf32>
    %65 = arith.addf %64, %63 : vector<16x32xf32>
    %c176 = arith.constant 176 : index
    %c0_30 = arith.constant 0 : index
    %66 = vector.load %arg1[%c176, %c0_30] : memref<1232x128xf32, #tpu.memory_space<vmem>>, vector<32x16xf32>
    %cst_31 = arith.constant dense<0.000000e+00> : vector<16x16xf32>
    %67 = tpu.matmul %39, %66, %cst_31 {dimension_numbers = #tpu.dot_dimension_numbers<[1], [0], [0], [1], [0, 0, 1, 1], [], []>} : vector<16x32xf32>, vector<32x16xf32>, vector<16x16xf32> -> vector<16x16xf32>
    %c208 = arith.constant 208 : index
    %c0_32 = arith.constant 0 : index
    %68 = vector.load %arg1[%c208, %c0_32] : memref<1232x128xf32, #tpu.memory_space<vmem>>, vector<32x16xf32>
    %cst_33 = arith.constant dense<0.000000e+00> : vector<16x16xf32>
    %69 = tpu.matmul %39, %68, %cst_33 {dimension_numbers = #tpu.dot_dimension_numbers<[1], [0], [0], [1], [0, 0, 1, 1], [], []>} : vector<16x32xf32>, vector<32x16xf32>, vector<16x16xf32> -> vector<16x16xf32>
    %c240 = arith.constant 240 : index
    %c0_34 = arith.constant 0 : index
    %70 = vector.load %arg1[%c240, %c0_34] : memref<1232x128xf32, #tpu.memory_space<vmem>>, vector<32x16xf32>
    %cst_35 = arith.constant dense<0.000000e+00> : vector<16x16xf32>
    %71 = tpu.matmul %39, %70, %cst_35 {dimension_numbers = #tpu.dot_dimension_numbers<[1], [0], [0], [1], [0, 0, 1, 1], [], []>} : vector<16x32xf32>, vector<32x16xf32>, vector<16x16xf32> -> vector<16x16xf32>
    %cst_36 = arith.constant dense<0.000000e+00> : vector<16x16xf32>
    %72 = tpu.matmul %67, %69, %cst_36 {dimension_numbers = #tpu.dot_dimension_numbers<[1], [1], [0], [0], [0, 0, 1, 0], [], []>} : vector<16x16xf32>, vector<16x16xf32>, vector<16x16xf32> -> vector<16x16xf32>
    %cst_37 = arith.constant 2.500000e-01 : f32
    %73 = vector.broadcast %cst_37 : f32 to vector<16x16xf32>
    %74 = arith.mulf %72, %73 : vector<16x16xf32>
    %75 = arith.addf %74, %40 : vector<16x16xf32>
    %cst_38 = arith.constant dense<0xFF800000> : vector<16xf32>
    %76 = vector.multi_reduction <maximumf>, %75, %cst_38 [1] : vector<16x16xf32> to vector<16xf32>
    %77 = vector.shape_cast %76 : vector<16xf32> to vector<16x1xf32>
    %78 = vector.broadcast %77 : vector<16x1xf32> to vector<16x16xf32>
    %79 = arith.subf %75, %78 : vector<16x16xf32>
    %80 = math.exp %79 : vector<16x16xf32>
    %cst_39 = arith.constant dense<0.000000e+00> : vector<16xf32>
    %81 = vector.multi_reduction <add>, %80, %cst_39 [1] : vector<16x16xf32> to vector<16xf32>
    %82 = vector.shape_cast %81 : vector<16xf32> to vector<16x1xf32>
    %83 = vector.broadcast %82 : vector<16x1xf32> to vector<16x16xf32>
    %84 = arith.divf %80, %83 : vector<16x16xf32>
    %cst_40 = arith.constant dense<0.000000e+00> : vector<16x16xf32>
    %85 = tpu.matmul %84, %71, %cst_40 {dimension_numbers = #tpu.dot_dimension_numbers<[1], [0], [0], [1], [0, 0, 1, 1], [], []>} : vector<16x16xf32>, vector<16x16xf32>, vector<16x16xf32> -> vector<16x16xf32>
    %c272 = arith.constant 272 : index
    %c0_41 = arith.constant 0 : index
    %86 = vector.load %arg1[%c272, %c0_41] : memref<1232x128xf32, #tpu.memory_space<vmem>>, vector<16x32xf32>
    %cst_42 = arith.constant dense<0.000000e+00> : vector<16x32xf32>
    %87 = tpu.matmul %85, %86, %cst_42 {dimension_numbers = #tpu.dot_dimension_numbers<[1], [0], [0], [1], [0, 0, 1, 1], [], []>} : vector<16x16xf32>, vector<16x32xf32>, vector<16x32xf32> -> vector<16x32xf32>
    %88 = arith.addf %65, %87 : vector<16x32xf32>
    %89 = arith.addf %39, %88 : vector<16x32xf32>
    %c296 = arith.constant 296 : index
    %c0_43 = arith.constant 0 : index
    %90 = vector.load %arg1[%c296, %c0_43] : memref<1232x128xf32, #tpu.memory_space<vmem>>, vector<1x32xf32>
    %c304 = arith.constant 304 : index
    %c0_44 = arith.constant 0 : index
    %91 = vector.load %arg1[%c304, %c0_44] : memref<1232x128xf32, #tpu.memory_space<vmem>>, vector<1x32xf32>
    %cst_45 = arith.constant dense<0.000000e+00> : vector<16xf32>
    %92 = vector.multi_reduction <add>, %89, %cst_45 [1] : vector<16x32xf32> to vector<16xf32>
    %93 = vector.shape_cast %92 : vector<16xf32> to vector<16x1xf32>
    %cst_46 = arith.constant 3.200000e+01 : f32
    %94 = vector.broadcast %cst_46 : f32 to vector<16x1xf32>
    %95 = arith.divf %93, %94 : vector<16x1xf32>
    %96 = vector.broadcast %95 : vector<16x1xf32> to vector<16x32xf32>
    %97 = arith.subf %89, %96 : vector<16x32xf32>
    %98 = arith.mulf %97, %97 : vector<16x32xf32>
    %cst_47 = arith.constant dense<0.000000e+00> : vector<16xf32>
    %99 = vector.multi_reduction <add>, %98, %cst_47 [1] : vector<16x32xf32> to vector<16xf32>
    %100 = vector.shape_cast %99 : vector<16xf32> to vector<16x1xf32>
    %cst_48 = arith.constant 3.200000e+01 : f32
    %101 = vector.broadcast %cst_48 : f32 to vector<16x1xf32>
    %102 = arith.divf %100, %101 : vector<16x1xf32>
    %103 = vector.broadcast %95 : vector<16x1xf32> to vector<16x32xf32>
    %104 = arith.subf %89, %103 : vector<16x32xf32>
    %cst_49 = arith.constant 9.99999974E-6 : f32
    %105 = vector.broadcast %cst_49 : f32 to vector<16x1xf32>
    %106 = arith.addf %102, %105 : vector<16x1xf32>
    %107 = math.rsqrt %106 : vector<16x1xf32>
    %108 = vector.broadcast %107 : vector<16x1xf32> to vector<16x32xf32>
    %109 = arith.mulf %104, %108 : vector<16x32xf32>
    %110 = vector.broadcast %90 : vector<1x32xf32> to vector<16x32xf32>
    %111 = arith.mulf %109, %110 : vector<16x32xf32>
    %112 = vector.broadcast %91 : vector<1x32xf32> to vector<16x32xf32>
    %113 = arith.addf %111, %112 : vector<16x32xf32>
    %c312 = arith.constant 312 : index
    %c0_50 = arith.constant 0 : index
    %114 = vector.load %arg1[%c312, %c0_50] : memref<1232x128xf32, #tpu.memory_space<vmem>>, vector<32x64xf32>
    %cst_51 = arith.constant dense<0.000000e+00> : vector<16x64xf32>
    %115 = tpu.matmul %113, %114, %cst_51 {dimension_numbers = #tpu.dot_dimension_numbers<[1], [0], [0], [1], [0, 0, 1, 1], [], []>} : vector<16x32xf32>, vector<32x64xf32>, vector<16x64xf32> -> vector<16x64xf32>
    %c344 = arith.constant 344 : index
    %c0_52 = arith.constant 0 : index
    %116 = vector.load %arg1[%c344, %c0_52] : memref<1232x128xf32, #tpu.memory_space<vmem>>, vector<1x64xf32>
    %117 = vector.broadcast %116 : vector<1x64xf32> to vector<16x64xf32>
    %118 = arith.addf %115, %117 : vector<16x64xf32>
    %cst_53 = arith.constant 5.000000e-01 : f32
    %119 = vector.broadcast %cst_53 : f32 to vector<16x64xf32>
    %120 = arith.mulf %119, %118 : vector<16x64xf32>
    %cst_54 = arith.constant 0.707106769 : f32
    %121 = vector.broadcast %cst_54 : f32 to vector<16x64xf32>
    %122 = arith.mulf %118, %121 : vector<16x64xf32>
    %123 = math.erf %122 : vector<16x64xf32>
    %cst_55 = arith.constant 1.000000e+00 : f32
    %124 = vector.broadcast %cst_55 : f32 to vector<16x64xf32>
    %125 = arith.addf %124, %123 : vector<16x64xf32>
    %126 = arith.mulf %120, %125 : vector<16x64xf32>
    %c352 = arith.constant 352 : index
    %c0_56 = arith.constant 0 : index
    %127 = vector.load %arg1[%c352, %c0_56] : memref<1232x128xf32, #tpu.memory_space<vmem>>, vector<64x32xf32>
    %cst_57 = arith.constant dense<0.000000e+00> : vector<16x32xf32>
    %128 = tpu.matmul %126, %127, %cst_57 {dimension_numbers = #tpu.dot_dimension_numbers<[1], [0], [0], [1], [0, 0, 1, 1], [], []>} : vector<16x64xf32>, vector<64x32xf32>, vector<16x32xf32> -> vector<16x32xf32>
    %c416 = arith.constant 416 : index
    %c0_58 = arith.constant 0 : index
    %129 = vector.load %arg1[%c416, %c0_58] : memref<1232x128xf32, #tpu.memory_space<vmem>>, vector<1x32xf32>
    %130 = vector.broadcast %129 : vector<1x32xf32> to vector<16x32xf32>
    %131 = arith.addf %128, %130 : vector<16x32xf32>
    %132 = arith.addf %113, %131 : vector<16x32xf32>
    %c424 = arith.constant 424 : index
    %c0_59 = arith.constant 0 : index
    %133 = vector.load %arg1[%c424, %c0_59] : memref<1232x128xf32, #tpu.memory_space<vmem>>, vector<1x32xf32>
    %c432 = arith.constant 432 : index
    %c0_60 = arith.constant 0 : index
    %134 = vector.load %arg1[%c432, %c0_60] : memref<1232x128xf32, #tpu.memory_space<vmem>>, vector<1x32xf32>
    %cst_61 = arith.constant dense<0.000000e+00> : vector<16xf32>
    %135 = vector.multi_reduction <add>, %132, %cst_61 [1] : vector<16x32xf32> to vector<16xf32>
    %136 = vector.shape_cast %135 : vector<16xf32> to vector<16x1xf32>
    %cst_62 = arith.constant 3.200000e+01 : f32
    %137 = vector.broadcast %cst_62 : f32 to vector<16x1xf32>
    %138 = arith.divf %136, %137 : vector<16x1xf32>
    %139 = vector.broadcast %138 : vector<16x1xf32> to vector<16x32xf32>
    %140 = arith.subf %132, %139 : vector<16x32xf32>
    %141 = arith.mulf %140, %140 : vector<16x32xf32>
    %cst_63 = arith.constant dense<0.000000e+00> : vector<16xf32>
    %142 = vector.multi_reduction <add>, %141, %cst_63 [1] : vector<16x32xf32> to vector<16xf32>
    %143 = vector.shape_cast %142 : vector<16xf32> to vector<16x1xf32>
    %cst_64 = arith.constant 3.200000e+01 : f32
    %144 = vector.broadcast %cst_64 : f32 to vector<16x1xf32>
    %145 = arith.divf %143, %144 : vector<16x1xf32>
    %146 = vector.broadcast %138 : vector<16x1xf32> to vector<16x32xf32>
    %147 = arith.subf %132, %146 : vector<16x32xf32>
    %cst_65 = arith.constant 9.99999974E-6 : f32
    %148 = vector.broadcast %cst_65 : f32 to vector<16x1xf32>
    %149 = arith.addf %145, %148 : vector<16x1xf32>
    %150 = math.rsqrt %149 : vector<16x1xf32>
    %151 = vector.broadcast %150 : vector<16x1xf32> to vector<16x32xf32>
    %152 = arith.mulf %147, %151 : vector<16x32xf32>
    %153 = vector.broadcast %133 : vector<1x32xf32> to vector<16x32xf32>
    %154 = arith.mulf %152, %153 : vector<16x32xf32>
    %155 = vector.broadcast %134 : vector<1x32xf32> to vector<16x32xf32>
    %156 = arith.addf %154, %155 : vector<16x32xf32>
    %c664 = arith.constant 664 : index
    %c0_66 = arith.constant 0 : index
    %157 = vector.load %arg1[%c664, %c0_66] : memref<1232x128xf32, #tpu.memory_space<vmem>>, vector<1x32xf32>
    %c440 = arith.constant 440 : index
    %c0_67 = arith.constant 0 : index
    %158 = vector.load %arg1[%c440, %c0_67] : memref<1232x128xf32, #tpu.memory_space<vmem>>, vector<32x16xf32>
    %cst_68 = arith.constant dense<0.000000e+00> : vector<16x16xf32>
    %159 = tpu.matmul %156, %158, %cst_68 {dimension_numbers = #tpu.dot_dimension_numbers<[1], [0], [0], [1], [0, 0, 1, 1], [], []>} : vector<16x32xf32>, vector<32x16xf32>, vector<16x16xf32> -> vector<16x16xf32>
    %c472 = arith.constant 472 : index
    %c0_69 = arith.constant 0 : index
    %160 = vector.load %arg1[%c472, %c0_69] : memref<1232x128xf32, #tpu.memory_space<vmem>>, vector<32x16xf32>
    %cst_70 = arith.constant dense<0.000000e+00> : vector<16x16xf32>
    %161 = tpu.matmul %156, %160, %cst_70 {dimension_numbers = #tpu.dot_dimension_numbers<[1], [0], [0], [1], [0, 0, 1, 1], [], []>} : vector<16x32xf32>, vector<32x16xf32>, vector<16x16xf32> -> vector<16x16xf32>
    %c504 = arith.constant 504 : index
    %c0_71 = arith.constant 0 : index
    %162 = vector.load %arg1[%c504, %c0_71] : memref<1232x128xf32, #tpu.memory_space<vmem>>, vector<32x16xf32>
    %cst_72 = arith.constant dense<0.000000e+00> : vector<16x16xf32>
    %163 = tpu.matmul %156, %162, %cst_72 {dimension_numbers = #tpu.dot_dimension_numbers<[1], [0], [0], [1], [0, 0, 1, 1], [], []>} : vector<16x32xf32>, vector<32x16xf32>, vector<16x16xf32> -> vector<16x16xf32>
    %cst_73 = arith.constant dense<0.000000e+00> : vector<16x16xf32>
    %164 = tpu.matmul %159, %161, %cst_73 {dimension_numbers = #tpu.dot_dimension_numbers<[1], [1], [0], [0], [0, 0, 1, 0], [], []>} : vector<16x16xf32>, vector<16x16xf32>, vector<16x16xf32> -> vector<16x16xf32>
    %cst_74 = arith.constant 2.500000e-01 : f32
    %165 = vector.broadcast %cst_74 : f32 to vector<16x16xf32>
    %166 = arith.mulf %164, %165 : vector<16x16xf32>
    %167 = arith.addf %166, %40 : vector<16x16xf32>
    %cst_75 = arith.constant dense<0xFF800000> : vector<16xf32>
    %168 = vector.multi_reduction <maximumf>, %167, %cst_75 [1] : vector<16x16xf32> to vector<16xf32>
    %169 = vector.shape_cast %168 : vector<16xf32> to vector<16x1xf32>
    %170 = vector.broadcast %169 : vector<16x1xf32> to vector<16x16xf32>
    %171 = arith.subf %167, %170 : vector<16x16xf32>
    %172 = math.exp %171 : vector<16x16xf32>
    %cst_76 = arith.constant dense<0.000000e+00> : vector<16xf32>
    %173 = vector.multi_reduction <add>, %172, %cst_76 [1] : vector<16x16xf32> to vector<16xf32>
    %174 = vector.shape_cast %173 : vector<16xf32> to vector<16x1xf32>
    %175 = vector.broadcast %174 : vector<16x1xf32> to vector<16x16xf32>
    %176 = arith.divf %172, %175 : vector<16x16xf32>
    %cst_77 = arith.constant dense<0.000000e+00> : vector<16x16xf32>
    %177 = tpu.matmul %176, %163, %cst_77 {dimension_numbers = #tpu.dot_dimension_numbers<[1], [0], [0], [1], [0, 0, 1, 1], [], []>} : vector<16x16xf32>, vector<16x16xf32>, vector<16x16xf32> -> vector<16x16xf32>
    %c536 = arith.constant 536 : index
    %c0_78 = arith.constant 0 : index
    %178 = vector.load %arg1[%c536, %c0_78] : memref<1232x128xf32, #tpu.memory_space<vmem>>, vector<16x32xf32>
    %cst_79 = arith.constant dense<0.000000e+00> : vector<16x32xf32>
    %179 = tpu.matmul %177, %178, %cst_79 {dimension_numbers = #tpu.dot_dimension_numbers<[1], [0], [0], [1], [0, 0, 1, 1], [], []>} : vector<16x16xf32>, vector<16x32xf32>, vector<16x32xf32> -> vector<16x32xf32>
    %180 = vector.broadcast %157 : vector<1x32xf32> to vector<16x32xf32>
    %181 = arith.addf %180, %179 : vector<16x32xf32>
    %c552 = arith.constant 552 : index
    %c0_80 = arith.constant 0 : index
    %182 = vector.load %arg1[%c552, %c0_80] : memref<1232x128xf32, #tpu.memory_space<vmem>>, vector<32x16xf32>
    %cst_81 = arith.constant dense<0.000000e+00> : vector<16x16xf32>
    %183 = tpu.matmul %156, %182, %cst_81 {dimension_numbers = #tpu.dot_dimension_numbers<[1], [0], [0], [1], [0, 0, 1, 1], [], []>} : vector<16x32xf32>, vector<32x16xf32>, vector<16x16xf32> -> vector<16x16xf32>
    %c584 = arith.constant 584 : index
    %c0_82 = arith.constant 0 : index
    %184 = vector.load %arg1[%c584, %c0_82] : memref<1232x128xf32, #tpu.memory_space<vmem>>, vector<32x16xf32>
    %cst_83 = arith.constant dense<0.000000e+00> : vector<16x16xf32>
    %185 = tpu.matmul %156, %184, %cst_83 {dimension_numbers = #tpu.dot_dimension_numbers<[1], [0], [0], [1], [0, 0, 1, 1], [], []>} : vector<16x32xf32>, vector<32x16xf32>, vector<16x16xf32> -> vector<16x16xf32>
    %c616 = arith.constant 616 : index
    %c0_84 = arith.constant 0 : index
    %186 = vector.load %arg1[%c616, %c0_84] : memref<1232x128xf32, #tpu.memory_space<vmem>>, vector<32x16xf32>
    %cst_85 = arith.constant dense<0.000000e+00> : vector<16x16xf32>
    %187 = tpu.matmul %156, %186, %cst_85 {dimension_numbers = #tpu.dot_dimension_numbers<[1], [0], [0], [1], [0, 0, 1, 1], [], []>} : vector<16x32xf32>, vector<32x16xf32>, vector<16x16xf32> -> vector<16x16xf32>
    %cst_86 = arith.constant dense<0.000000e+00> : vector<16x16xf32>
    %188 = tpu.matmul %183, %185, %cst_86 {dimension_numbers = #tpu.dot_dimension_numbers<[1], [1], [0], [0], [0, 0, 1, 0], [], []>} : vector<16x16xf32>, vector<16x16xf32>, vector<16x16xf32> -> vector<16x16xf32>
    %cst_87 = arith.constant 2.500000e-01 : f32
    %189 = vector.broadcast %cst_87 : f32 to vector<16x16xf32>
    %190 = arith.mulf %188, %189 : vector<16x16xf32>
    %191 = arith.addf %190, %40 : vector<16x16xf32>
    %cst_88 = arith.constant dense<0xFF800000> : vector<16xf32>
    %192 = vector.multi_reduction <maximumf>, %191, %cst_88 [1] : vector<16x16xf32> to vector<16xf32>
    %193 = vector.shape_cast %192 : vector<16xf32> to vector<16x1xf32>
    %194 = vector.broadcast %193 : vector<16x1xf32> to vector<16x16xf32>
    %195 = arith.subf %191, %194 : vector<16x16xf32>
    %196 = math.exp %195 : vector<16x16xf32>
    %cst_89 = arith.constant dense<0.000000e+00> : vector<16xf32>
    %197 = vector.multi_reduction <add>, %196, %cst_89 [1] : vector<16x16xf32> to vector<16xf32>
    %198 = vector.shape_cast %197 : vector<16xf32> to vector<16x1xf32>
    %199 = vector.broadcast %198 : vector<16x1xf32> to vector<16x16xf32>
    %200 = arith.divf %196, %199 : vector<16x16xf32>
    %cst_90 = arith.constant dense<0.000000e+00> : vector<16x16xf32>
    %201 = tpu.matmul %200, %187, %cst_90 {dimension_numbers = #tpu.dot_dimension_numbers<[1], [0], [0], [1], [0, 0, 1, 1], [], []>} : vector<16x16xf32>, vector<16x16xf32>, vector<16x16xf32> -> vector<16x16xf32>
    %c648 = arith.constant 648 : index
    %c0_91 = arith.constant 0 : index
    %202 = vector.load %arg1[%c648, %c0_91] : memref<1232x128xf32, #tpu.memory_space<vmem>>, vector<16x32xf32>
    %cst_92 = arith.constant dense<0.000000e+00> : vector<16x32xf32>
    %203 = tpu.matmul %201, %202, %cst_92 {dimension_numbers = #tpu.dot_dimension_numbers<[1], [0], [0], [1], [0, 0, 1, 1], [], []>} : vector<16x16xf32>, vector<16x32xf32>, vector<16x32xf32> -> vector<16x32xf32>
    %204 = arith.addf %181, %203 : vector<16x32xf32>
    %205 = arith.addf %156, %204 : vector<16x32xf32>
    %c672 = arith.constant 672 : index
    %c0_93 = arith.constant 0 : index
    %206 = vector.load %arg1[%c672, %c0_93] : memref<1232x128xf32, #tpu.memory_space<vmem>>, vector<1x32xf32>
    %c680 = arith.constant 680 : index
    %c0_94 = arith.constant 0 : index
    %207 = vector.load %arg1[%c680, %c0_94] : memref<1232x128xf32, #tpu.memory_space<vmem>>, vector<1x32xf32>
    %cst_95 = arith.constant dense<0.000000e+00> : vector<16xf32>
    %208 = vector.multi_reduction <add>, %205, %cst_95 [1] : vector<16x32xf32> to vector<16xf32>
    %209 = vector.shape_cast %208 : vector<16xf32> to vector<16x1xf32>
    %cst_96 = arith.constant 3.200000e+01 : f32
    %210 = vector.broadcast %cst_96 : f32 to vector<16x1xf32>
    %211 = arith.divf %209, %210 : vector<16x1xf32>
    %212 = vector.broadcast %211 : vector<16x1xf32> to vector<16x32xf32>
    %213 = arith.subf %205, %212 : vector<16x32xf32>
    %214 = arith.mulf %213, %213 : vector<16x32xf32>
    %cst_97 = arith.constant dense<0.000000e+00> : vector<16xf32>
    %215 = vector.multi_reduction <add>, %214, %cst_97 [1] : vector<16x32xf32> to vector<16xf32>
    %216 = vector.shape_cast %215 : vector<16xf32> to vector<16x1xf32>
    %cst_98 = arith.constant 3.200000e+01 : f32
    %217 = vector.broadcast %cst_98 : f32 to vector<16x1xf32>
    %218 = arith.divf %216, %217 : vector<16x1xf32>
    %219 = vector.broadcast %211 : vector<16x1xf32> to vector<16x32xf32>
    %220 = arith.subf %205, %219 : vector<16x32xf32>
    %cst_99 = arith.constant 9.99999974E-6 : f32
    %221 = vector.broadcast %cst_99 : f32 to vector<16x1xf32>
    %222 = arith.addf %218, %221 : vector<16x1xf32>
    %223 = math.rsqrt %222 : vector<16x1xf32>
    %224 = vector.broadcast %223 : vector<16x1xf32> to vector<16x32xf32>
    %225 = arith.mulf %220, %224 : vector<16x32xf32>
    %226 = vector.broadcast %206 : vector<1x32xf32> to vector<16x32xf32>
    %227 = arith.mulf %225, %226 : vector<16x32xf32>
    %228 = vector.broadcast %207 : vector<1x32xf32> to vector<16x32xf32>
    %229 = arith.addf %227, %228 : vector<16x32xf32>
    %c688 = arith.constant 688 : index
    %c0_100 = arith.constant 0 : index
    %230 = vector.load %arg1[%c688, %c0_100] : memref<1232x128xf32, #tpu.memory_space<vmem>>, vector<32x64xf32>
    %cst_101 = arith.constant dense<0.000000e+00> : vector<16x64xf32>
    %231 = tpu.matmul %229, %230, %cst_101 {dimension_numbers = #tpu.dot_dimension_numbers<[1], [0], [0], [1], [0, 0, 1, 1], [], []>} : vector<16x32xf32>, vector<32x64xf32>, vector<16x64xf32> -> vector<16x64xf32>
    %c720 = arith.constant 720 : index
    %c0_102 = arith.constant 0 : index
    %232 = vector.load %arg1[%c720, %c0_102] : memref<1232x128xf32, #tpu.memory_space<vmem>>, vector<1x64xf32>
    %233 = vector.broadcast %232 : vector<1x64xf32> to vector<16x64xf32>
    %234 = arith.addf %231, %233 : vector<16x64xf32>
    %cst_103 = arith.constant 5.000000e-01 : f32
    %235 = vector.broadcast %cst_103 : f32 to vector<16x64xf32>
    %236 = arith.mulf %235, %234 : vector<16x64xf32>
    %cst_104 = arith.constant 0.707106769 : f32
    %237 = vector.broadcast %cst_104 : f32 to vector<16x64xf32>
    %238 = arith.mulf %234, %237 : vector<16x64xf32>
    %239 = math.erf %238 : vector<16x64xf32>
    %cst_105 = arith.constant 1.000000e+00 : f32
    %240 = vector.broadcast %cst_105 : f32 to vector<16x64xf32>
    %241 = arith.addf %240, %239 : vector<16x64xf32>
    %242 = arith.mulf %236, %241 : vector<16x64xf32>
    %c728 = arith.constant 728 : index
    %c0_106 = arith.constant 0 : index
    %243 = vector.load %arg1[%c728, %c0_106] : memref<1232x128xf32, #tpu.memory_space<vmem>>, vector<64x32xf32>
    %cst_107 = arith.constant dense<0.000000e+00> : vector<16x32xf32>
    %244 = tpu.matmul %242, %243, %cst_107 {dimension_numbers = #tpu.dot_dimension_numbers<[1], [0], [0], [1], [0, 0, 1, 1], [], []>} : vector<16x64xf32>, vector<64x32xf32>, vector<16x32xf32> -> vector<16x32xf32>
    %c792 = arith.constant 792 : index
    %c0_108 = arith.constant 0 : index
    %245 = vector.load %arg1[%c792, %c0_108] : memref<1232x128xf32, #tpu.memory_space<vmem>>, vector<1x32xf32>
    %246 = vector.broadcast %245 : vector<1x32xf32> to vector<16x32xf32>
    %247 = arith.addf %244, %246 : vector<16x32xf32>
    %248 = arith.addf %229, %247 : vector<16x32xf32>
    %c800 = arith.constant 800 : index
    %c0_109 = arith.constant 0 : index
    %249 = vector.load %arg1[%c800, %c0_109] : memref<1232x128xf32, #tpu.memory_space<vmem>>, vector<1x32xf32>
    %c808 = arith.constant 808 : index
    %c0_110 = arith.constant 0 : index
    %250 = vector.load %arg1[%c808, %c0_110] : memref<1232x128xf32, #tpu.memory_space<vmem>>, vector<1x32xf32>
    %cst_111 = arith.constant dense<0.000000e+00> : vector<16xf32>
    %251 = vector.multi_reduction <add>, %248, %cst_111 [1] : vector<16x32xf32> to vector<16xf32>
    %252 = vector.shape_cast %251 : vector<16xf32> to vector<16x1xf32>
    %cst_112 = arith.constant 3.200000e+01 : f32
    %253 = vector.broadcast %cst_112 : f32 to vector<16x1xf32>
    %254 = arith.divf %252, %253 : vector<16x1xf32>
    %255 = vector.broadcast %254 : vector<16x1xf32> to vector<16x32xf32>
    %256 = arith.subf %248, %255 : vector<16x32xf32>
    %257 = arith.mulf %256, %256 : vector<16x32xf32>
    %cst_113 = arith.constant dense<0.000000e+00> : vector<16xf32>
    %258 = vector.multi_reduction <add>, %257, %cst_113 [1] : vector<16x32xf32> to vector<16xf32>
    %259 = vector.shape_cast %258 : vector<16xf32> to vector<16x1xf32>
    %cst_114 = arith.constant 3.200000e+01 : f32
    %260 = vector.broadcast %cst_114 : f32 to vector<16x1xf32>
    %261 = arith.divf %259, %260 : vector<16x1xf32>
    %262 = vector.broadcast %254 : vector<16x1xf32> to vector<16x32xf32>
    %263 = arith.subf %248, %262 : vector<16x32xf32>
    %cst_115 = arith.constant 9.99999974E-6 : f32
    %264 = vector.broadcast %cst_115 : f32 to vector<16x1xf32>
    %265 = arith.addf %261, %264 : vector<16x1xf32>
    %266 = math.rsqrt %265 : vector<16x1xf32>
    %267 = vector.broadcast %266 : vector<16x1xf32> to vector<16x32xf32>
    %268 = arith.mulf %263, %267 : vector<16x32xf32>
    %269 = vector.broadcast %249 : vector<1x32xf32> to vector<16x32xf32>
    %270 = arith.mulf %268, %269 : vector<16x32xf32>
    %271 = vector.broadcast %250 : vector<1x32xf32> to vector<16x32xf32>
    %272 = arith.addf %270, %271 : vector<16x32xf32>
    %c816 = arith.constant 816 : index
    %c0_116 = arith.constant 0 : index
    %273 = vector.load %arg1[%c816, %c0_116] : memref<1232x128xf32, #tpu.memory_space<vmem>>, vector<32x128xf32>
    %cst_117 = arith.constant dense<0.000000e+00> : vector<16x128xf32>
    %274 = tpu.matmul %272, %273, %cst_117 {dimension_numbers = #tpu.dot_dimension_numbers<[1], [0], [0], [1], [0, 0, 1, 1], [], []>} : vector<16x32xf32>, vector<32x128xf32>, vector<16x128xf32> -> vector<16x128xf32>
    %c848 = arith.constant 848 : index
    %c0_118 = arith.constant 0 : index
    %275 = vector.load %arg1[%c848, %c0_118] : memref<1232x128xf32, #tpu.memory_space<vmem>>, vector<16x128xf32>
    %276 = arith.mulf %274, %275 : vector<16x128xf32>
    %c864 = arith.constant 864 : index
    %c0_119 = arith.constant 0 : index
    %277 = vector.load %arg1[%c864, %c0_119] : memref<1232x128xf32, #tpu.memory_space<vmem>>, vector<2x16xf32>
    %cst_120 = arith.constant dense<0.000000e+00> : vector<2x128xf32>
    %278 = tpu.matmul %277, %276, %cst_120 {dimension_numbers = #tpu.dot_dimension_numbers<[1], [0], [0], [1], [0, 0, 1, 1], [], []>} : vector<2x16xf32>, vector<16x128xf32>, vector<2x128xf32> -> vector<2x128xf32>
    %c872 = arith.constant 872 : index
    %c0_121 = arith.constant 0 : index
    %279 = vector.load %arg1[%c872, %c0_121] : memref<1232x128xf32, #tpu.memory_space<vmem>>, vector<128x16xf32>
    %cst_122 = arith.constant dense<0.000000e+00> : vector<2x16xf32>
    %280 = tpu.matmul %278, %279, %cst_122 {dimension_numbers = #tpu.dot_dimension_numbers<[1], [0], [0], [1], [0, 0, 1, 1], [], []>} : vector<2x128xf32>, vector<128x16xf32>, vector<2x16xf32> -> vector<2x16xf32>
    %c1000 = arith.constant 1000 : index
    %c0_123 = arith.constant 0 : index
    %281 = vector.load %arg1[%c1000, %c0_123] : memref<1232x128xf32, #tpu.memory_space<vmem>>, vector<1x16xf32>
    %282 = vector.broadcast %281 : vector<1x16xf32> to vector<2x16xf32>
    %283 = arith.addf %280, %282 : vector<2x16xf32>
    %cst_124 = arith.constant 5.000000e-01 : f32
    %284 = vector.broadcast %cst_124 : f32 to vector<2x16xf32>
    %285 = arith.mulf %284, %283 : vector<2x16xf32>
    %cst_125 = arith.constant 0.707106769 : f32
    %286 = vector.broadcast %cst_125 : f32 to vector<2x16xf32>
    %287 = arith.mulf %283, %286 : vector<2x16xf32>
    %288 = math.erf %287 : vector<2x16xf32>
    %cst_126 = arith.constant 1.000000e+00 : f32
    %289 = vector.broadcast %cst_126 : f32 to vector<2x16xf32>
    %290 = arith.addf %289, %288 : vector<2x16xf32>
    %291 = arith.mulf %285, %290 : vector<2x16xf32>
    %c0_127 = arith.constant 0 : index
    %c0_128 = arith.constant 0 : index
    %292 = vector.load %arg3[%c0_127, %c0_128] : memref<2x4xf32, #tpu.memory_space<vmem>>, vector<2x4xf32>
    %c1008 = arith.constant 1008 : index
    %c0_129 = arith.constant 0 : index
    %293 = vector.load %arg1[%c1008, %c0_129] : memref<1232x128xf32, #tpu.memory_space<vmem>>, vector<4x32xf32>
    %cst_130 = arith.constant dense<0.000000e+00> : vector<2x32xf32>
    %294 = tpu.matmul %292, %293, %cst_130 {dimension_numbers = #tpu.dot_dimension_numbers<[1], [0], [0], [1], [0, 0, 1, 1], [], []>} : vector<2x4xf32>, vector<4x32xf32>, vector<2x32xf32> -> vector<2x32xf32>
    %c1016 = arith.constant 1016 : index
    %c0_131 = arith.constant 0 : index
    %295 = vector.load %arg1[%c1016, %c0_131] : memref<1232x128xf32, #tpu.memory_space<vmem>>, vector<1x32xf32>
    %296 = vector.broadcast %295 : vector<1x32xf32> to vector<2x32xf32>
    %297 = arith.addf %294, %296 : vector<2x32xf32>
    %cst_132 = arith.constant 5.000000e-01 : f32
    %298 = vector.broadcast %cst_132 : f32 to vector<2x32xf32>
    %299 = arith.mulf %298, %297 : vector<2x32xf32>
    %cst_133 = arith.constant 0.707106769 : f32
    %300 = vector.broadcast %cst_133 : f32 to vector<2x32xf32>
    %301 = arith.mulf %297, %300 : vector<2x32xf32>
    %302 = math.erf %301 : vector<2x32xf32>
    %cst_134 = arith.constant 1.000000e+00 : f32
    %303 = vector.broadcast %cst_134 : f32 to vector<2x32xf32>
    %304 = arith.addf %303, %302 : vector<2x32xf32>
    %305 = arith.mulf %299, %304 : vector<2x32xf32>
    %c1024 = arith.constant 1024 : index
    %c0_135 = arith.constant 0 : index
    %306 = vector.load %arg1[%c1024, %c0_135] : memref<1232x128xf32, #tpu.memory_space<vmem>>, vector<32x32xf32>
    %cst_136 = arith.constant dense<0.000000e+00> : vector<2x32xf32>
    %307 = tpu.matmul %305, %306, %cst_136 {dimension_numbers = #tpu.dot_dimension_numbers<[1], [0], [0], [1], [0, 0, 1, 1], [], []>} : vector<2x32xf32>, vector<32x32xf32>, vector<2x32xf32> -> vector<2x32xf32>
    %c1056 = arith.constant 1056 : index
    %c0_137 = arith.constant 0 : index
    %308 = vector.load %arg1[%c1056, %c0_137] : memref<1232x128xf32, #tpu.memory_space<vmem>>, vector<16x32xf32>
    %cst_138 = arith.constant dense<0.000000e+00> : vector<2x32xf32>
    %309 = tpu.matmul %291, %308, %cst_138 {dimension_numbers = #tpu.dot_dimension_numbers<[1], [0], [0], [1], [0, 0, 1, 1], [], []>} : vector<2x16xf32>, vector<16x32xf32>, vector<2x32xf32> -> vector<2x32xf32>
    %310 = arith.addf %307, %309 : vector<2x32xf32>
    %c1072 = arith.constant 1072 : index
    %c0_139 = arith.constant 0 : index
    %311 = vector.load %arg1[%c1072, %c0_139] : memref<1232x128xf32, #tpu.memory_space<vmem>>, vector<1x32xf32>
    %312 = vector.broadcast %311 : vector<1x32xf32> to vector<2x32xf32>
    %313 = arith.addf %310, %312 : vector<2x32xf32>
    %cst_140 = arith.constant 0.000000e+00 : f32
    %314 = vector.broadcast %cst_140 : f32 to vector<2x32xf32>
    %315 = arith.maximumf %313, %314 : vector<2x32xf32>
    %c1080 = arith.constant 1080 : index
    %c0_141 = arith.constant 0 : index
    %316 = vector.load %arg1[%c1080, %c0_141] : memref<1232x128xf32, #tpu.memory_space<vmem>>, vector<32x8xf32>
    %cst_142 = arith.constant dense<0.000000e+00> : vector<2x8xf32>
    %317 = tpu.matmul %315, %316, %cst_142 {dimension_numbers = #tpu.dot_dimension_numbers<[1], [0], [0], [1], [0, 0, 1, 1], [], []>} : vector<2x32xf32>, vector<32x8xf32>, vector<2x8xf32> -> vector<2x8xf32>
    %c1112 = arith.constant 1112 : index
    %c0_143 = arith.constant 0 : index
    %318 = vector.load %arg1[%c1112, %c0_143] : memref<1232x128xf32, #tpu.memory_space<vmem>>, vector<1x8xf32>
    %319 = vector.broadcast %318 : vector<1x8xf32> to vector<2x8xf32>
    %320 = arith.addf %317, %319 : vector<2x8xf32>
    %c1120 = arith.constant 1120 : index
    %c0_144 = arith.constant 0 : index
    %321 = vector.load %arg1[%c1120, %c0_144] : memref<1232x128xf32, #tpu.memory_space<vmem>>, vector<32x8xf32>
    %cst_145 = arith.constant dense<0.000000e+00> : vector<2x8xf32>
    %322 = tpu.matmul %315, %321, %cst_145 {dimension_numbers = #tpu.dot_dimension_numbers<[1], [0], [0], [1], [0, 0, 1, 1], [], []>} : vector<2x32xf32>, vector<32x8xf32>, vector<2x8xf32> -> vector<2x8xf32>
    %c1152 = arith.constant 1152 : index
    %c0_146 = arith.constant 0 : index
    %323 = vector.load %arg1[%c1152, %c0_146] : memref<1232x128xf32, #tpu.memory_space<vmem>>, vector<1x8xf32>
    %324 = vector.broadcast %323 : vector<1x8xf32> to vector<2x8xf32>
    %325 = arith.addf %322, %324 : vector<2x8xf32>
    %c0_147 = arith.constant 0 : index
    %c0_148 = arith.constant 0 : index
    %326 = vector.load %arg4[%c0_147, %c0_148] : memref<2x8xf32, #tpu.memory_space<vmem>>, vector<2x8xf32>
    %cst_149 = arith.constant 5.000000e-01 : f32
    %327 = vector.broadcast %cst_149 : f32 to vector<2x8xf32>
    %328 = arith.mulf %327, %325 : vector<2x8xf32>
    %329 = math.exp %328 : vector<2x8xf32>
    %330 = arith.mulf %326, %329 : vector<2x8xf32>
    %331 = arith.addf %320, %330 : vector<2x8xf32>
    %c1160 = arith.constant 1160 : index
    %c0_150 = arith.constant 0 : index
    %332 = vector.load %arg1[%c1160, %c0_150] : memref<1232x128xf32, #tpu.memory_space<vmem>>, vector<8x32xf32>
    %cst_151 = arith.constant dense<0.000000e+00> : vector<2x32xf32>
    %333 = tpu.matmul %331, %332, %cst_151 {dimension_numbers = #tpu.dot_dimension_numbers<[1], [0], [0], [1], [0, 0, 1, 1], [], []>} : vector<2x8xf32>, vector<8x32xf32>, vector<2x32xf32> -> vector<2x32xf32>
    %c1168 = arith.constant 1168 : index
    %c0_152 = arith.constant 0 : index
    %334 = vector.load %arg1[%c1168, %c0_152] : memref<1232x128xf32, #tpu.memory_space<vmem>>, vector<16x32xf32>
    %cst_153 = arith.constant dense<0.000000e+00> : vector<2x32xf32>
    %335 = tpu.matmul %291, %334, %cst_153 {dimension_numbers = #tpu.dot_dimension_numbers<[1], [0], [0], [1], [0, 0, 1, 1], [], []>} : vector<2x16xf32>, vector<16x32xf32>, vector<2x32xf32> -> vector<2x32xf32>
    %336 = arith.addf %333, %335 : vector<2x32xf32>
    %c1184 = arith.constant 1184 : index
    %c0_154 = arith.constant 0 : index
    %337 = vector.load %arg1[%c1184, %c0_154] : memref<1232x128xf32, #tpu.memory_space<vmem>>, vector<1x32xf32>
    %338 = vector.broadcast %337 : vector<1x32xf32> to vector<2x32xf32>
    %339 = arith.addf %336, %338 : vector<2x32xf32>
    %cst_155 = arith.constant 0.000000e+00 : f32
    %340 = vector.broadcast %cst_155 : f32 to vector<2x32xf32>
    %341 = arith.maximumf %339, %340 : vector<2x32xf32>
    %c1192 = arith.constant 1192 : index
    %c0_156 = arith.constant 0 : index
    %342 = vector.load %arg1[%c1192, %c0_156] : memref<1232x128xf32, #tpu.memory_space<vmem>>, vector<32x4xf32>
    %cst_157 = arith.constant dense<0.000000e+00> : vector<2x4xf32>
    %343 = tpu.matmul %341, %342, %cst_157 {dimension_numbers = #tpu.dot_dimension_numbers<[1], [0], [0], [1], [0, 0, 1, 1], [], []>} : vector<2x32xf32>, vector<32x4xf32>, vector<2x4xf32> -> vector<2x4xf32>
    %c1224 = arith.constant 1224 : index
    %c0_158 = arith.constant 0 : index
    %344 = vector.load %arg1[%c1224, %c0_158] : memref<1232x128xf32, #tpu.memory_space<vmem>>, vector<1x4xf32>
    %345 = vector.broadcast %344 : vector<1x4xf32> to vector<2x4xf32>
    %346 = arith.addf %343, %345 : vector<2x4xf32>
    %347 = math.tanh %346 : vector<2x4xf32>
    %c0_159 = arith.constant 0 : index
    %c0_160 = arith.constant 0 : index
    %348 = vector.load %arg5[%c0_159, %c0_160] : memref<2x28xf32, #tpu.memory_space<vmem>>, vector<2x4xf32>
    tpu.vector_store %arg5[%c0_159, %c0_160], %347 {strides = array<i32>} : memref<2x28xf32, #tpu.memory_space<vmem>>, vector<2x4xf32>,
    %c0_161 = arith.constant 0 : index
    %c4 = arith.constant 4 : index
    %349 = vector.load %arg5[%c0_161, %c4] : memref<2x28xf32, #tpu.memory_space<vmem>>, vector<2x8xf32>
    tpu.vector_store %arg5[%c0_161, %c4], %320 {strides = array<i32>} : memref<2x28xf32, #tpu.memory_space<vmem>>, vector<2x8xf32>,
    %c0_162 = arith.constant 0 : index
    %c12 = arith.constant 12 : index
    %350 = vector.load %arg5[%c0_162, %c12] : memref<2x28xf32, #tpu.memory_space<vmem>>, vector<2x8xf32>
    tpu.vector_store %arg5[%c0_162, %c12], %325 {strides = array<i32>} : memref<2x28xf32, #tpu.memory_space<vmem>>, vector<2x8xf32>,
    %c0_163 = arith.constant 0 : index
    %c20 = arith.constant 20 : index
    %351 = vector.load %arg5[%c0_163, %c20] : memref<2x28xf32, #tpu.memory_space<vmem>>, vector<2x8xf32>
    tpu.vector_store %arg5[%c0_163, %c20], %331 {strides = array<i32>} : memref<2x28xf32, #tpu.memory_space<vmem>>, vector<2x8xf32>,
    return
  }
  func.func @transform_0(%arg0: i32) -> (i32, i32) {
    %c0_i32 = arith.constant 0 : i32
    %c0_i32_0 = arith.constant 0 : i32
    %c0_i32_1 = arith.constant 0 : i32
    return %c0_i32, %c0_i32_0 : i32, i32
  }
  func.func @transform_1(%arg0: i32) -> (i32, i32) {
    %c0_i32 = arith.constant 0 : i32
    %c0_i32_0 = arith.constant 0 : i32
    %c0_i32_1 = arith.constant 0 : i32
    return %c0_i32, %c0_i32_0 : i32, i32
  }
  func.func @transform_2(%arg0: i32) -> (i32, i32) {
    %c0_i32 = arith.constant 0 : i32
    %c0_i32_0 = arith.constant 0 : i32
    %c0_i32_1 = arith.constant 0 : i32
    return %c0_i32, %c0_i32_0 : i32, i32
  }
  func.func @transform_3(%arg0: i32) -> (i32, i32) {
    %c0_i32 = arith.constant 0 : i32
    %c0_i32_0 = arith.constant 0 : i32
    %c0_i32_1 = arith.constant 0 : i32
    return %c0_i32, %c0_i32_0 : i32, i32
  }
  func.func @transform_4(%arg0: i32) -> (i32, i32) {
    %c0_i32 = arith.constant 0 : i32
    %c0_i32_0 = arith.constant 0 : i32
    %c0_i32_1 = arith.constant 0 : i32
    return %c0_i32, %c0_i32_0 : i32, i32
  }
}

</mosaic_0001>

<llo_original>
// kernel: forward.1
$region0: #{forward.1}
  #allocation0 [shape = 'u32[]', space=smem, size = 0x4, offset = 0x4, fixed_abs, tag = 'smem constant byte address 0x4 - core index']
  #allocation1 [shape = 'u32[144,128]{1,0:T(1,128)}', space=vmem, size = 0x12000, scoped, tag = 'internal scratch']
  %s0 = inlined_call_operand.hbm [shape: f32[1232,128], index: 0, kind: input, shape index: {}]
  %s1 = inlined_call_operand.vmem [shape: f32[16,8], index: 1, kind: input, shape index: {}]
  %s2 = inlined_call_operand.vmem [shape: f32[2,4], index: 2, kind: input, shape index: {}]
  %s3 = inlined_call_operand.vmem [shape: f32[2,8], index: 3, kind: input, shape index: {}]
  %s4 = inlined_call_operand.vmem [shape: f32[2,28], index: 4, kind: output, shape index: {}]
  %s5 = sld [smem:[#allocation0]]
  $region30: #{forward.1} parent=0
    _
  %s7 = ssub.s32 1, %s5
  %s8 = scalar_select 0, %s7, %s5
  $region1: #{forward.1} parent=0
    #allocation2 [shape = 'u8[630784]{0}', space=vmem, size = 0x9a000, scoped, tag = 'input window, operand 0, single buffered']
    #allocation3 [shape = 's32[1]{0}', space=sflag, size = 0x4, scoped, tag = 'scoped memory for forward.1']
    %9 = vsyncpa [#allocation3], 0
    // Predicated region
    $region2: #{forward.1} parent=1 // pred_check
      _
    $region3: #{forward.1} parent=1 // pred_check_branch
      %11 = sbr.rel (0) target = $region5
    $region4: #{forward.1} parent=1 // pred_region
      %s13 = ssub.s32 19712, 19712
      %14 = vsyncadd [#allocation3], %s13
      %s15 = sshll.u32 [#allocation2], 4
      %s16 = int_to_ptr.vmem [resolvable:$true] %s15
      %21 = dma.hbm_to_vmem [thread:$0]  %s0, 19712, %s16, [#allocation3], 128, 128, 8
    $region5: #{forward.1} parent=1 // pred_fallthru
      _
    // Predicated region
    $region6: #{forward.1} parent=1 // pred_check
      _
    $region7: #{forward.1} parent=1 // pred_check_branch
      %23 = sbr.rel (0) target = $region9
    $region8: #{forward.1} parent=1 // pred_region
      _
    $region9: #{forward.1} parent=1 // pred_fallthru
      _
    // Predicated region
    $region10: #{forward.1} parent=1 // pred_check
      _
    $region11: #{forward.1} parent=1 // pred_check_branch
      %25 = sbr.rel (0) target = $region13
    $region12: #{forward.1} parent=1 // pred_region
      _
    $region13: #{forward.1} parent=1 // pred_fallthru
      _
    // Predicated region
    $region14: #{forward.1} parent=1 // pred_check
      _
    $region15: #{forward.1} parent=1 // pred_check_branch
      %27 = sbr.rel (0) target = $region17
    $region16: #{forward.1} parent=1 // pred_region
      _
    $region17: #{forward.1} parent=1 // pred_fallthru
      _
    // Predicated region
    $region18: #{forward.1} parent=1 // pred_check
      _
    $region19: #{forward.1} parent=1 // pred_check_branch
      %29 = sbr.rel (0) target = $region21
    $region20: #{forward.1} parent=1 // pred_region
      %30 = dma.done [#allocation3], 19712
    $region21: #{forward.1} parent=1 // pred_fallthru
      _
    %v31 = vld [vmem:[%s1] sm:$0xff]
    %v32 = vld [vmem:[%s1 + $0x8] sm:$0xff]
    %v33 = vld [vmem:[#allocation2] sm:$0xff]
    %v34 = vld [vmem:[#allocation2 + $0x8] sm:$0x1]
    %v35 = vlaneseq
    %v36 = vshrl.u32 %v35, 7
    %v37 = vsub.s32 0, %v36
    %v38 = vrot.slane %v34, %v37
    %vm39 = vcmask 64512
    %v41 = vsel %vm39, %v31, 0
    %v44 = vsel %vm39, %v32, 0
    %46 = vmatprep.subr.mxu0 0.0
    %47 = vmatpush1.msra.mxu0 0.0
    %48 = vmatprep.subr.mxu0 0.0
    %49 = vmatpush1.msra.mxu0 0.0
    %50 = vmatprep.subr.mxu0 0.0
    %51 = vmatpush1.msra.mxu0 0.0
    %52 = vmatprep.subr.mxu0 0.0
    %53 = vmatpush1.msra.mxu0 0.0
    %54 = vmatprep.subr.mxu0 0.0
    %55 = vmatpush1.msra.mxu0 0.0
    %56 = vmatprep.subr.mxu0 0.0
    %57 = vmatpush1.msra.mxu0 0.0
    %58 = vmatprep.subr.mxu0 0.0
    %59 = vmatpush1.msra.mxu0 0.0
    %60 = vmatprep.subr.mxu0 0.0
    %61 = vmatpush1.msra.mxu0 0.0
    %62 = vmatprep.subr.mxu0 0.0
    %63 = vmatpush1.msra.mxu0 0.0
    %64 = vmatprep.subr.mxu0 0.0
    %65 = vmatpush1.msra.mxu0 0.0
    %66 = vmatprep.subr.mxu0 0.0
    %67 = vmatpush1.msra.mxu0 0.0
    %68 = vmatprep.subr.mxu0 0.0
    %69 = vmatpush1.msra.mxu0 0.0
    %70 = vmatprep.subr.mxu0 0.0
    %71 = vmatpush1.msra.mxu0 0.0
    %72 = vmatprep.subr.mxu0 0.0
    %73 = vmatpush1.msra.mxu0 0.0
    %74 = vmatprep.subr.mxu0 0.0
    %75 = vmatpush1.msra.mxu0 0.0
    %76 = vmatprep.subr.mxu0 0.0
    %77 = vmatpush1.msra.mxu0 %v33
    %78 = vmatprep.subr.mxu0 0.0
    %79 = vmatpush2.msra.mxu0 0.0
    %80 = vmatprep.subr.mxu0 0.0
    %81 = vmatpush2.msra.mxu0 0.0
    %82 = vmatprep.subr.mxu0 0.0
    %83 = vmatpush2.msra.mxu0 0.0
    %84 = vmatprep.subr.mxu0 0.0
    %85 = vmatpush2.msra.mxu0 0.0
    %86 = vmatprep.subr.mxu0 0.0
    %87 = vmatpush2.msra.mxu0 0.0
    %88 = vmatprep.subr.mxu0 0.0
    %89 = vmatpush2.msra.mxu0 0.0
    %90 = vmatprep.subr.mxu0 0.0
    %91 = vmatpush2.msra.mxu0 0.0
    %92 = vmatprep.subr.mxu0 0.0
    %93 = vmatpush2.msra.mxu0 0.0
    %94 = vmatprep.subr.mxu0 0.0
    %95 = vmatpush2.msra.mxu0 0.0
    %96 = vmatprep.subr.mxu0 0.0
    %97 = vmatpush2.msra.mxu0 0.0
    %98 = vmatprep.subr.mxu0 0.0
    %99 = vmatpush2.msra.mxu0 0.0
    %100 = vmatprep.subr.mxu0 0.0
    %101 = vmatpush2.msra.mxu0 0.0
    %102 = vmatprep.subr.mxu0 0.0
    %103 = vmatpush2.msra.mxu0 0.0
    %104 = vmatprep.subr.mxu0 0.0
    %105 = vmatpush2.msra.mxu0 0.0
    %106 = vmatprep.subr.mxu0 0.0
    %107 = vmatpush2.msra.mxu0 0.0
    %108 = vmatprep.subr.mxu0 0.0
    %109 = vmatpush2.msra.mxu0 0.0
    %110 = vmatprep.mubr.f32.mxu0 0.0
    %111 = vmatmul.mubr.f32.gmra.mxu0 %v41
    %v112 = vpop.f32.mrf.mxu0
    %v113 = vadd.f32 %v38, %v112
    %v114 = vpop.f32.mrf.mxu0
    %115 = vmatprep.mubr.f32.mxu0 0.0
    %116 = vmatmul.mubr.f32.gmra.mxu0 %v44
    %v117 = vpop.f32.mrf.mxu0
    %v118 = vadd.f32 %v38, %v117
    %v119 = vpop.f32.mrf.mxu0
    %120 = vdwg.mxu0
    %v121 = vmul.f32 %v113, 0.5
    %v122 = vmul.f32 %v118, 0.5
    %v123 = vmul.f32 %v113, 0.70710677
    %v124 = vmul.f32 %v118, 0.70710677
    %v125 = verf.f32.pop %v123
    %v126 = verf.f32.pop %v124
    %v127 = vadd.f32 %v125, 1.0
    %v128 = vadd.f32 %v126, 1.0
    %v129 = vmul.f32 %v121, %v127
    %v130 = vmul.f32 %v122, %v128
    %v131 = vld [vmem:[#allocation2 + $0x10] sm:$0xff]
    %v132 = vld [vmem:[#allocation2 + $0x18] sm:$0xff]
    %v133 = vadd.f32 %v129, %v131
    %v134 = vadd.f32 %v130, %v132
    %v135 = vld [vmem:[#allocation2 + $0x20] sm:$0x1]
    %v136 = vld [vmem:[#allocation2 + $0x28] sm:$0x1]
    %vm137 = vcmask 261120
    %v138 = vsel %vm137, %v133, 0.0
    %139 = vadd.xlane.f32.xlu0 %v138
    %v140 = vpop.xlane.xlu0 %139
    %v141 = vsel %vm137, %v134, 0.0
    %142 = vadd.xlane.f32.xlu0 %v141
    %v143 = vpop.xlane.xlu0 %142
    %v144 = vrcp.pop 32.0
    %v145 = vmul.f32 %v140, %v144
    %v146 = vmul.f32 %v143, %v144
    %v147 = vsub.f32 %v133, %v145
    %v148 = vsub.f32 %v134, %v146
    %v149 = vmul.f32 %v147, %v147
    %v150 = vmul.f32 %v148, %v148
    %v151 = vsel %vm137, %v149, 0.0
    %152 = vadd.xlane.f32.xlu0 %v151
    %v153 = vpop.xlane.xlu0 %152
    %v154 = vsel %vm137, %v150, 0.0
    %155 = vadd.xlane.f32.xlu0 %v154
    %v156 = vpop.xlane.xlu0 %155
    %v157 = vmul.f32 %v153, %v144
    %v158 = vmul.f32 %v156, %v144
    %v159 = vadd.f32 %v157, 1e-05
    %v160 = vadd.f32 %v158, 1e-05
    %v161 = vrsqrt.pop %v159
    %v162 = vrsqrt.pop %v160
    %v163 = vmul.f32 %v147, %v161
    %v164 = vmul.f32 %v148, %v162
    %v165 = vlaneseq
    %v166 = vshrl.u32 %v165, 7
    %v167 = vsub.s32 0, %v166
    %v168 = vrot.slane %v135, %v167
    %v169 = vmul.f32 %v163, %v168
    %v170 = vmul.f32 %v164, %v168
    %v171 = vlaneseq
    %v172 = vshrl.u32 %v171, 7
    %v173 = vsub.s32 0, %v172
    %v174 = vrot.slane %v136, %v173
    %v175 = vadd.f32 %v169, %v174
    %v176 = vadd.f32 %v170, %v174
    %v177 = vld [vmem:[#allocation2 + $0x30] sm:$0xff]
    %v178 = vld [vmem:[#allocation2 + $0x38] sm:$0xff]
    %v179 = vld [vmem:[#allocation2 + $0x120] sm:$0x1]
    %v180 = vld [vmem:[#allocation2 + $0x40] sm:$0xff]
    %v181 = vld [vmem:[#allocation2 + $0x48] sm:$0xff]
    %v182 = vld [vmem:[#allocation2 + $0x50] sm:$0xff]
    %v183 = vld [vmem:[#allocation2 + $0x58] sm:$0xff]
    %v185 = vsel %vm137, %v175, 0
    %v188 = vsel %vm137, %v176, 0
    %190 = vmatprep.subr.mxu0 0.0
    %191 = vmatpush1.msra.mxu0 0.0
    %192 = vmatprep.subr.mxu0 0.0
    %193 = vmatpush1.msra.mxu0 0.0
    %194 = vmatprep.subr.mxu0 0.0
    %195 = vmatpush1.msra.mxu0 0.0
    %196 = vmatprep.subr.mxu0 0.0
    %197 = vmatpush1.msra.mxu0 0.0
    %198 = vmatprep.subr.mxu0 0.0
    %199 = vmatpush1.msra.mxu0 0.0
    %200 = vmatprep.subr.mxu0 0.0
    %201 = vmatpush1.msra.mxu0 0.0
    %202 = vmatprep.subr.mxu0 0.0
    %203 = vmatpush1.msra.mxu0 0.0
    %204 = vmatprep.subr.mxu0 0.0
    %205 = vmatpush1.msra.mxu0 0.0
    %206 = vmatprep.subr.mxu0 0.0
    %207 = vmatpush1.msra.mxu0 0.0
    %208 = vmatprep.subr.mxu0 0.0
    %209 = vmatpush1.msra.mxu0 0.0
    %210 = vmatprep.subr.mxu0 0.0
    %211 = vmatpush1.msra.mxu0 0.0
    %212 = vmatprep.subr.mxu0 0.0
    %213 = vmatpush1.msra.mxu0 0.0
    %214 = vmatprep.subr.mxu0 0.0
    %215 = vmatpush1.msra.mxu0 %v183
    %216 = vmatprep.subr.mxu0 0.0
    %217 = vmatpush1.msra.mxu0 %v182
    %218 = vmatprep.subr.mxu0 0.0
    %219 = vmatpush1.msra.mxu0 %v181
    %220 = vmatprep.subr.mxu0 0.0
    %221 = vmatpush1.msra.mxu0 %v180
    %222 = vmatprep.subr.mxu0 0.0
    %223 = vmatpush2.msra.mxu0 0.0
    %224 = vmatprep.subr.mxu0 0.0
    %225 = vmatpush2.msra.mxu0 0.0
    %226 = vmatprep.subr.mxu0 0.0
    %227 = vmatpush2.msra.mxu0 0.0
    %228 = vmatprep.subr.mxu0 0.0
    %229 = vmatpush2.msra.mxu0 0.0
    %230 = vmatprep.subr.mxu0 0.0
    %231 = vmatpush2.msra.mxu0 0.0
    %232 = vmatprep.subr.mxu0 0.0
    %233 = vmatpush2.msra.mxu0 0.0
    %234 = vmatprep.subr.mxu0 0.0
    %235 = vmatpush2.msra.mxu0 0.0
    %236 = vmatprep.subr.mxu0 0.0
    %237 = vmatpush2.msra.mxu0 0.0
    %238 = vmatprep.subr.mxu0 0.0
    %239 = vmatpush2.msra.mxu0 0.0
    %240 = vmatprep.subr.mxu0 0.0
    %241 = vmatpush2.msra.mxu0 0.0
    %242 = vmatprep.subr.mxu0 0.0
    %243 = vmatpush2.msra.mxu0 0.0
    %244 = vmatprep.subr.mxu0 0.0
    %245 = vmatpush2.msra.mxu0 0.0
    %246 = vmatprep.subr.mxu0 0.0
    %247 = vmatpush2.msra.mxu0 0.0
    %248 = vmatprep.subr.mxu0 0.0
    %249 = vmatpush2.msra.mxu0 0.0
    %250 = vmatprep.subr.mxu0 0.0
    %251 = vmatpush2.msra.mxu0 0.0
    %252 = vmatprep.subr.mxu0 0.0
    %253 = vmatpush2.msra.mxu0 0.0
    %254 = vmatprep.mubr.f32.mxu0 0.0
    %255 = vmatmul.mubr.f32.gmra.mxu0 %v185
    %v256 = vpop.f32.mrf.mxu0
    %v257 = vadd.f32 0.0, %v256
    %v258 = vpop.f32.mrf.mxu0
    %259 = vmatprep.mubr.f32.mxu0 0.0
    %260 = vmatmul.mubr.f32.gmra.mxu0 %v188
    %v261 = vpop.f32.mrf.mxu0
    %v262 = vadd.f32 0.0, %v261
    %v263 = vpop.f32.mrf.mxu0
    %264 = vdwg.mxu0
    %v265 = vld [vmem:[#allocation2 + $0x60] sm:$0xff]
    %v266 = vld [vmem:[#allocation2 + $0x68] sm:$0xff]
    %v267 = vld [vmem:[#allocation2 + $0x70] sm:$0xff]
    %v268 = vld [vmem:[#allocation2 + $0x78] sm:$0xff]
    %269 = vmatprep.subr.mxu0 0.0
    %270 = vmatpush1.msra.mxu0 0.0
    %271 = vmatprep.subr.mxu0 0.0
    %272 = vmatpush1.msra.mxu0 0.0
    %273 = vmatprep.subr.mxu0 0.0
    %274 = vmatpush1.msra.mxu0 0.0
    %275 = vmatprep.subr.mxu0 0.0
    %276 = vmatpush1.msra.mxu0 0.0
    %277 = vmatprep.subr.mxu0 0.0
    %278 = vmatpush1.msra.mxu0 0.0
    %279 = vmatprep.subr.mxu0 0.0
    %280 = vmatpush1.msra.mxu0 0.0
    %281 = vmatprep.subr.mxu0 0.0
    %282 = vmatpush1.msra.mxu0 0.0
    %283 = vmatprep.subr.mxu0 0.0
    %284 = vmatpush1.msra.mxu0 0.0
    %285 = vmatprep.subr.mxu0 0.0
    %286 = vmatpush1.msra.mxu0 0.0
    %287 = vmatprep.subr.mxu0 0.0
    %288 = vmatpush1.msra.mxu0 0.0
    %289 = vmatprep.subr.mxu0 0.0
    %290 = vmatpush1.msra.mxu0 0.0
    %291 = vmatprep.subr.mxu0 0.0
    %292 = vmatpush1.msra.mxu0 0.0
    %293 = vmatprep.subr.mxu0 0.0
    %294 = vmatpush1.msra.mxu0 %v268
    %295 = vmatprep.subr.mxu0 0.0
    %296 = vmatpush1.msra.mxu0 %v267
    %297 = vmatprep.subr.mxu0 0.0
    %298 = vmatpush1.msra.mxu0 %v266
    %299 = vmatprep.subr.mxu0 0.0
    %300 = vmatpush1.msra.mxu0 %v265
    %301 = vmatprep.subr.mxu0 0.0
    %302 = vmatpush2.msra.mxu0 0.0
    %303 = vmatprep.subr.mxu0 0.0
    %304 = vmatpush2.msra.mxu0 0.0
    %305 = vmatprep.subr.mxu0 0.0
    %306 = vmatpush2.msra.mxu0 0.0
    %307 = vmatprep.subr.mxu0 0.0
    %308 = vmatpush2.msra.mxu0 0.0
    %309 = vmatprep.subr.mxu0 0.0
    %310 = vmatpush2.msra.mxu0 0.0
    %311 = vmatprep.subr.mxu0 0.0
    %312 = vmatpush2.msra.mxu0 0.0
    %313 = vmatprep.subr.mxu0 0.0
    %314 = vmatpush2.msra.mxu0 0.0
    %315 = vmatprep.subr.mxu0 0.0
    %316 = vmatpush2.msra.mxu0 0.0
    %317 = vmatprep.subr.mxu0 0.0
    %318 = vmatpush2.msra.mxu0 0.0
    %319 = vmatprep.subr.mxu0 0.0
    %320 = vmatpush2.msra.mxu0 0.0
    %321 = vmatprep.subr.mxu0 0.0
    %322 = vmatpush2.msra.mxu0 0.0
    %323 = vmatprep.subr.mxu0 0.0
    %324 = vmatpush2.msra.mxu0 0.0
    %325 = vmatprep.subr.mxu0 0.0
    %326 = vmatpush2.msra.mxu0 0.0
    %327 = vmatprep.subr.mxu0 0.0
    %328 = vmatpush2.msra.mxu0 0.0
    %329 = vmatprep.subr.mxu0 0.0
    %330 = vmatpush2.msra.mxu0 0.0
    %331 = vmatprep.subr.mxu0 0.0
    %332 = vmatpush2.msra.mxu0 0.0
    %333 = vmatprep.mubr.f32.mxu0 0.0
    %334 = vmatmul.mubr.f32.gmra.mxu0 %v185
    %v335 = vpop.f32.mrf.mxu0
    %v336 = vadd.f32 0.0, %v335
    %v337 = vpop.f32.mrf.mxu0
    %338 = vmatprep.mubr.f32.mxu0 0.0
    %339 = vmatmul.mubr.f32.gmra.mxu0 %v188
    %v340 = vpop.f32.mrf.mxu0
    %v341 = vadd.f32 0.0, %v340
    %v342 = vpop.f32.mrf.mxu0
    %343 = vdwg.mxu0
    %v344 = vld [vmem:[#allocation2 + $0x80] sm:$0xff]
    %v345 = vld [vmem:[#allocation2 + $0x88] sm:$0xff]
    %v346 = vld [vmem:[#allocation2 + $0x90] sm:$0xff]
    %v347 = vld [vmem:[#allocation2 + $0x98] sm:$0xff]
    %348 = vmatprep.subr.mxu0 0.0
    %349 = vmatpush1.msra.mxu0 0.0
    %350 = vmatprep.subr.mxu0 0.0
    %351 = vmatpush1.msra.mxu0 0.0
    %352 = vmatprep.subr.mxu0 0.0
    %353 = vmatpush1.msra.mxu0 0.0
    %354 = vmatprep.subr.mxu0 0.0
    %355 = vmatpush1.msra.mxu0 0.0
    %356 = vmatprep.subr.mxu0 0.0
    %357 = vmatpush1.msra.mxu0 0.0
    %358 = vmatprep.subr.mxu0 0.0
    %359 = vmatpush1.msra.mxu0 0.0
    %360 = vmatprep.subr.mxu0 0.0
    %361 = vmatpush1.msra.mxu0 0.0
    %362 = vmatprep.subr.mxu0 0.0
    %363 = vmatpush1.msra.mxu0 0.0
    %364 = vmatprep.subr.mxu0 0.0
    %365 = vmatpush1.msra.mxu0 0.0
    %366 = vmatprep.subr.mxu0 0.0
    %367 = vmatpush1.msra.mxu0 0.0
    %368 = vmatprep.subr.mxu0 0.0
    %369 = vmatpush1.msra.mxu0 0.0
    %370 = vmatprep.subr.mxu0 0.0
    %371 = vmatpush1.msra.mxu0 0.0
    %372 = vmatprep.subr.mxu0 0.0
    %373 = vmatpush1.msra.mxu0 %v347
    %374 = vmatprep.subr.mxu0 0.0
    %375 = vmatpush1.msra.mxu0 %v346
    %376 = vmatprep.subr.mxu0 0.0
    %377 = vmatpush1.msra.mxu0 %v345
    %378 = vmatprep.subr.mxu0 0.0
    %379 = vmatpush1.msra.mxu0 %v344
    %380 = vmatprep.subr.mxu0 0.0
    %381 = vmatpush2.msra.mxu0 0.0
    %382 = vmatprep.subr.mxu0 0.0
    %383 = vmatpush2.msra.mxu0 0.0
    %384 = vmatprep.subr.mxu0 0.0
    %385 = vmatpush2.msra.mxu0 0.0
    %386 = vmatprep.subr.mxu0 0.0
    %387 = vmatpush2.msra.mxu0 0.0
    %388 = vmatprep.subr.mxu0 0.0
    %389 = vmatpush2.msra.mxu0 0.0
    %390 = vmatprep.subr.mxu0 0.0
    %391 = vmatpush2.msra.mxu0 0.0
    %392 = vmatprep.subr.mxu0 0.0
    %393 = vmatpush2.msra.mxu0 0.0
    %394 = vmatprep.subr.mxu0 0.0
    %395 = vmatpush2.msra.mxu0 0.0
    %396 = vmatprep.subr.mxu0 0.0
    %397 = vmatpush2.msra.mxu0 0.0
    %398 = vmatprep.subr.mxu0 0.0
    %399 = vmatpush2.msra.mxu0 0.0
    %400 = vmatprep.subr.mxu0 0.0
    %401 = vmatpush2.msra.mxu0 0.0
    %402 = vmatprep.subr.mxu0 0.0
    %403 = vmatpush2.msra.mxu0 0.0
    %404 = vmatprep.subr.mxu0 0.0
    %405 = vmatpush2.msra.mxu0 0.0
    %406 = vmatprep.subr.mxu0 0.0
    %407 = vmatpush2.msra.mxu0 0.0
    %408 = vmatprep.subr.mxu0 0.0
    %409 = vmatpush2.msra.mxu0 0.0
    %410 = vmatprep.subr.mxu0 0.0
    %411 = vmatpush2.msra.mxu0 0.0
    %412 = vmatprep.mubr.f32.mxu0 0.0
    %413 = vmatmul.mubr.f32.gmra.mxu0 %v185
    %v414 = vpop.f32.mrf.mxu0
    %v415 = vadd.f32 0.0, %v414
    %v416 = vpop.f32.mrf.mxu0
    %417 = vmatprep.mubr.f32.mxu0 0.0
    %418 = vmatmul.mubr.f32.gmra.mxu0 %v188
    %v419 = vpop.f32.mrf.mxu0
    %v420 = vadd.f32 0.0, %v419
    %v421 = vpop.f32.mrf.mxu0
    %422 = vdwg.mxu0
    %vm423 = vcmask 130048
    %v425 = vsel %vm423, %v257, 0
    %v428 = vsel %vm423, %v262, 0
    %v431 = vsel %vm423, %v336, 0
    %v434 = vsel %vm423, %v341, 0
    %436 = vmatprep.subr.mxu0 0.0
    %437 = vmatpush1.xpose.msra.mxu0 0.0
    %438 = vmatprep.subr.mxu0 0.0
    %439 = vmatpush1.xpose.msra.mxu0 0.0
    %440 = vmatprep.subr.mxu0 0.0
    %441 = vmatpush1.xpose.msra.mxu0 0.0
    %442 = vmatprep.subr.mxu0 0.0
    %443 = vmatpush1.xpose.msra.mxu0 0.0
    %444 = vmatprep.subr.mxu0 0.0
    %445 = vmatpush1.xpose.msra.mxu0 0.0
    %446 = vmatprep.subr.mxu0 0.0
    %447 = vmatpush1.xpose.msra.mxu0 0.0
    %448 = vmatprep.subr.mxu0 0.0
    %449 = vmatpush1.xpose.msra.mxu0 0.0
    %450 = vmatprep.subr.mxu0 0.0
    %451 = vmatpush1.xpose.msra.mxu0 0.0
    %452 = vmatprep.subr.mxu0 0.0
    %453 = vmatpush1.xpose.msra.mxu0 0.0
    %454 = vmatprep.subr.mxu0 0.0
    %455 = vmatpush1.xpose.msra.mxu0 0.0
    %456 = vmatprep.subr.mxu0 0.0
    %457 = vmatpush1.xpose.msra.mxu0 0.0
    %458 = vmatprep.subr.mxu0 0.0
    %459 = vmatpush1.xpose.msra.mxu0 0.0
    %460 = vmatprep.subr.mxu0 0.0
    %461 = vmatpush1.xpose.msra.mxu0 0.0
    %462 = vmatprep.subr.mxu0 0.0
    %463 = vmatpush1.xpose.msra.mxu0 0.0
    %464 = vmatprep.subr.mxu0 0.0
    %465 = vmatpush1.xpose.msra.mxu0 %v434
    %466 = vmatprep.subr.mxu0 0.0
    %467 = vmatpush1.xpose.msra.mxu0 %v431
    %468 = vmatprep.subr.mxu0 0.0
    %469 = vmatpush2.xpose.msra.mxu0 0.0
    %470 = vmatprep.subr.mxu0 0.0
    %471 = vmatpush2.xpose.msra.mxu0 0.0
    %472 = vmatprep.subr.mxu0 0.0
    %473 = vmatpush2.xpose.msra.mxu0 0.0
    %474 = vmatprep.subr.mxu0 0.0
    %475 = vmatpush2.xpose.msra.mxu0 0.0
    %476 = vmatprep.subr.mxu0 0.0
    %477 = vmatpush2.xpose.msra.mxu0 0.0
    %478 = vmatprep.subr.mxu0 0.0
    %479 = vmatpush2.xpose.msra.mxu0 0.0
    %480 = vmatprep.subr.mxu0 0.0
    %481 = vmatpush2.xpose.msra.mxu0 0.0
    %482 = vmatprep.subr.mxu0 0.0
    %483 = vmatpush2.xpose.msra.mxu0 0.0
    %484 = vmatprep.subr.mxu0 0.0
    %485 = vmatpush2.xpose.msra.mxu0 0.0
    %486 = vmatprep.subr.mxu0 0.0
    %487 = vmatpush2.xpose.msra.mxu0 0.0
    %488 = vmatprep.subr.mxu0 0.0
    %489 = vmatpush2.xpose.msra.mxu0 0.0
    %490 = vmatprep.subr.mxu0 0.0
    %491 = vmatpush2.xpose.msra.mxu0 0.0
    %492 = vmatprep.subr.mxu0 0.0
    %493 = vmatpush2.xpose.msra.mxu0 0.0
    %494 = vmatprep.subr.mxu0 0.0
    %495 = vmatpush2.xpose.msra.mxu0 0.0
    %496 = vmatprep.subr.mxu0 0.0
    %497 = vmatpush2.xpose.msra.mxu0 0.0
    %498 = vmatprep.subr.mxu0 0.0
    %499 = vmatpush2.xpose.msra.mxu0 0.0
    %500 = vmatprep.mubr.f32.mxu0 0.0
    %501 = vmatmul.mubr.f32.gmra.mxu0 %v425
    %v502 = vpop.f32.mrf.mxu0
    %v503 = vadd.f32 0.0, %v502
    %v504 = vpop.f32.mrf.mxu0
    %505 = vmatprep.mubr.f32.mxu0 0.0
    %506 = vmatmul.mubr.f32.gmra.mxu0 %v428
    %v507 = vpop.f32.mrf.mxu0
    %v508 = vadd.f32 0.0, %v507
    %v509 = vpop.f32.mrf.mxu0
    %510 = vdwg.mxu0
    %v511 = vmul.f32 %v503, 0.25
    %v512 = vmul.f32 %v508, 0.25
    %v513 = vadd.f32 %v511, %v177
    %v514 = vadd.f32 %v512, %v178
    %v515 = vsel %vm423, %v513, -inf
    %516 = vmax.xlane.f32.xlu0 %v515
    %v517 = vpop.xlane.xlu0 %516
    %v518 = vsel %vm423, %v514, -inf
    %519 = vmax.xlane.f32.xlu0 %v518
    %v520 = vpop.xlane.xlu0 %519
    %v521 = vsub.f32 %v513, %v517
    %v522 = vsub.f32 %v514, %v520
    %v523 = vmul.f32 %v521, 1.442695
    %v524 = vpow.pop %v523
    %v525 = vmul.f32 %v522, 1.442695
    %v526 = vpow.pop %v525
    %v527 = vsel %vm423, %v524, 0.0
    %528 = vadd.xlane.f32.xlu0 %v527
    %v529 = vpop.xlane.xlu0 %528
    %v530 = vsel %vm423, %v526, 0.0
    %531 = vadd.xlane.f32.xlu0 %v530
    %v532 = vpop.xlane.xlu0 %531
    %v533 = vrcp.pop %v529
    %v534 = vmul.f32 %v524, %v533
    %v535 = vrcp.pop %v532
    %v536 = vmul.f32 %v526, %v535
    %v538 = vsel %vm423, %v534, 0
    %v541 = vsel %vm423, %v536, 0
    %543 = vmatprep.subr.mxu0 0.0
    %544 = vmatpush1.msra.mxu0 0.0
    %545 = vmatprep.subr.mxu0 0.0
    %546 = vmatpush1.msra.mxu0 0.0
    %547 = vmatprep.subr.mxu0 0.0
    %548 = vmatpush1.msra.mxu0 0.0
    %549 = vmatprep.subr.mxu0 0.0
    %550 = vmatpush1.msra.mxu0 0.0
    %551 = vmatprep.subr.mxu0 0.0
    %552 = vmatpush1.msra.mxu0 0.0
    %553 = vmatprep.subr.mxu0 0.0
    %554 = vmatpush1.msra.mxu0 0.0
    %555 = vmatprep.subr.mxu0 0.0
    %556 = vmatpush1.msra.mxu0 0.0
    %557 = vmatprep.subr.mxu0 0.0
    %558 = vmatpush1.msra.mxu0 0.0
    %559 = vmatprep.subr.mxu0 0.0
    %560 = vmatpush1.msra.mxu0 0.0
    %561 = vmatprep.subr.mxu0 0.0
    %562 = vmatpush1.msra.mxu0 0.0
    %563 = vmatprep.subr.mxu0 0.0
    %564 = vmatpush1.msra.mxu0 0.0
    %565 = vmatprep.subr.mxu0 0.0
    %566 = vmatpush1.msra.mxu0 0.0
    %567 = vmatprep.subr.mxu0 0.0
    %568 = vmatpush1.msra.mxu0 0.0
    %569 = vmatprep.subr.mxu0 0.0
    %570 = vmatpush1.msra.mxu0 0.0
    %571 = vmatprep.subr.mxu0 0.0
    %572 = vmatpush1.msra.mxu0 %v420
    %573 = vmatprep.subr.mxu0 0.0
    %574 = vmatpush1.msra.mxu0 %v415
    %575 = vmatprep.subr.mxu0 0.0
    %576 = vmatpush2.msra.mxu0 0.0
    %577 = vmatprep.subr.mxu0 0.0
    %578 = vmatpush2.msra.mxu0 0.0
    %579 = vmatprep.subr.mxu0 0.0
    %580 = vmatpush2.msra.mxu0 0.0
    %581 = vmatprep.subr.mxu0 0.0
    %582 = vmatpush2.msra.mxu0 0.0
    %583 = vmatprep.subr.mxu0 0.0
    %584 = vmatpush2.msra.mxu0 0.0
    %585 = vmatprep.subr.mxu0 0.0
    %586 = vmatpush2.msra.mxu0 0.0
    %587 = vmatprep.subr.mxu0 0.0
    %588 = vmatpush2.msra.mxu0 0.0
    %589 = vmatprep.subr.mxu0 0.0
    %590 = vmatpush2.msra.mxu0 0.0
    %591 = vmatprep.subr.mxu0 0.0
    %592 = vmatpush2.msra.mxu0 0.0
    %593 = vmatprep.subr.mxu0 0.0
    %594 = vmatpush2.msra.mxu0 0.0
    %595 = vmatprep.subr.mxu0 0.0
    %596 = vmatpush2.msra.mxu0 0.0
    %597 = vmatprep.subr.mxu0 0.0
    %598 = vmatpush2.msra.mxu0 0.0
    %599 = vmatprep.subr.mxu0 0.0
    %600 = vmatpush2.msra.mxu0 0.0
    %601 = vmatprep.subr.mxu0 0.0
    %602 = vmatpush2.msra.mxu0 0.0
    %603 = vmatprep.subr.mxu0 0.0
    %604 = vmatpush2.msra.mxu0 0.0
    %605 = vmatprep.subr.mxu0 0.0
    %606 = vmatpush2.msra.mxu0 0.0
    %607 = vmatprep.mubr.f32.mxu0 0.0
    %608 = vmatmul.mubr.f32.gmra.mxu0 %v538
    %v609 = vpop.f32.mrf.mxu0
    %v610 = vadd.f32 0.0, %v609
    %v611 = vpop.f32.mrf.mxu0
    %612 = vmatprep.mubr.f32.mxu0 0.0
    %613 = vmatmul.mubr.f32.gmra.mxu0 %v541
    %v614 = vpop.f32.mrf.mxu0
    %v615 = vadd.f32 0.0, %v614
    %v616 = vpop.f32.mrf.mxu0
    %617 = vdwg.mxu0
    %v618 = vld [vmem:[#allocation2 + $0xa0] sm:$0xff]
    %v619 = vld [vmem:[#allocation2 + $0xa8] sm:$0xff]
    %v621 = vsel %vm423, %v610, 0
    %v624 = vsel %vm423, %v615, 0
    %626 = vmatprep.subr.mxu0 0.0
    %627 = vmatpush1.msra.mxu0 0.0
    %628 = vmatprep.subr.mxu0 0.0
    %629 = vmatpush1.msra.mxu0 0.0
    %630 = vmatprep.subr.mxu0 0.0
    %631 = vmatpush1.msra.mxu0 0.0
    %632 = vmatprep.subr.mxu0 0.0
    %633 = vmatpush1.msra.mxu0 0.0
    %634 = vmatprep.subr.mxu0 0.0
    %635 = vmatpush1.msra.mxu0 0.0
    %636 = vmatprep.subr.mxu0 0.0
    %637 = vmatpush1.msra.mxu0 0.0
    %638 = vmatprep.subr.mxu0 0.0
    %639 = vmatpush1.msra.mxu0 0.0
    %640 = vmatprep.subr.mxu0 0.0
    %641 = vmatpush1.msra.mxu0 0.0
    %642 = vmatprep.subr.mxu0 0.0
    %643 = vmatpush1.msra.mxu0 0.0
    %644 = vmatprep.subr.mxu0 0.0
    %645 = vmatpush1.msra.mxu0 0.0
    %646 = vmatprep.subr.mxu0 0.0
    %647 = vmatpush1.msra.mxu0 0.0
    %648 = vmatprep.subr.mxu0 0.0
    %649 = vmatpush1.msra.mxu0 0.0
    %650 = vmatprep.subr.mxu0 0.0
    %651 = vmatpush1.msra.mxu0 0.0
    %652 = vmatprep.subr.mxu0 0.0
    %653 = vmatpush1.msra.mxu0 0.0
    %654 = vmatprep.subr.mxu0 0.0
    %655 = vmatpush1.msra.mxu0 %v619
    %656 = vmatprep.subr.mxu0 0.0
    %657 = vmatpush1.msra.mxu0 %v618
    %658 = vmatprep.subr.mxu0 0.0
    %659 = vmatpush2.msra.mxu0 0.0
    %660 = vmatprep.subr.mxu0 0.0
    %661 = vmatpush2.msra.mxu0 0.0
    %662 = vmatprep.subr.mxu0 0.0
    %663 = vmatpush2.msra.mxu0 0.0
    %664 = vmatprep.subr.mxu0 0.0
    %665 = vmatpush2.msra.mxu0 0.0
    %666 = vmatprep.subr.mxu0 0.0
    %667 = vmatpush2.msra.mxu0 0.0
    %668 = vmatprep.subr.mxu0 0.0
    %669 = vmatpush2.msra.mxu0 0.0
    %670 = vmatprep.subr.mxu0 0.0
    %671 = vmatpush2.msra.mxu0 0.0
    %672 = vmatprep.subr.mxu0 0.0
    %673 = vmatpush2.msra.mxu0 0.0
    %674 = vmatprep.subr.mxu0 0.0
    %675 = vmatpush2.msra.mxu0 0.0
    %676 = vmatprep.subr.mxu0 0.0
    %677 = vmatpush2.msra.mxu0 0.0
    %678 = vmatprep.subr.mxu0 0.0
    %679 = vmatpush2.msra.mxu0 0.0
    %680 = vmatprep.subr.mxu0 0.0
    %681 = vmatpush2.msra.mxu0 0.0
    %682 = vmatprep.subr.mxu0 0.0
    %683 = vmatpush2.msra.mxu0 0.0
    %684 = vmatprep.subr.mxu0 0.0
    %685 = vmatpush2.msra.mxu0 0.0
    %686 = vmatprep.subr.mxu0 0.0
    %687 = vmatpush2.msra.mxu0 0.0
    %688 = vmatprep.subr.mxu0 0.0
    %689 = vmatpush2.msra.mxu0 0.0
    %690 = vmatprep.mubr.f32.mxu0 0.0
    %691 = vmatmul.mubr.f32.gmra.mxu0 %v621
    %v692 = vpop.f32.mrf.mxu0
    %v693 = vadd.f32 0.0, %v692
    %v694 = vpop.f32.mrf.mxu0
    %695 = vmatprep.mubr.f32.mxu0 0.0
    %696 = vmatmul.mubr.f32.gmra.mxu0 %v624
    %v697 = vpop.f32.mrf.mxu0
    %v698 = vadd.f32 0.0, %v697
    %v699 = vpop.f32.mrf.mxu0
    %700 = vdwg.mxu0
    %v701 = vlaneseq
    %v702 = vshrl.u32 %v701, 7
    %v703 = vsub.s32 0, %v702
    %v704 = vrot.slane %v179, %v703
    %v705 = vadd.f32 %v704, %v693
    %v706 = vadd.f32 %v704, %v698
    %v707 = vld [vmem:[#allocation2 + $0xb0] sm:$0xff]
    %v708 = vld [vmem:[#allocation2 + $0xb8] sm:$0xff]
    %v709 = vld [vmem:[#allocation2 + $0xc0] sm:$0xff]
    %v710 = vld [vmem:[#allocation2 + $0xc8] sm:$0xff]
    %711 = vmatprep.subr.mxu0 0.0
    %712 = vmatpush1.msra.mxu0 0.0
    %713 = vmatprep.subr.mxu0 0.0
    %714 = vmatpush1.msra.mxu0 0.0
    %715 = vmatprep.subr.mxu0 0.0
    %716 = vmatpush1.msra.mxu0 0.0
    %717 = vmatprep.subr.mxu0 0.0
    %718 = vmatpush1.msra.mxu0 0.0
    %719 = vmatprep.subr.mxu0 0.0
    %720 = vmatpush1.msra.mxu0 0.0
    %721 = vmatprep.subr.mxu0 0.0
    %722 = vmatpush1.msra.mxu0 0.0
    %723 = vmatprep.subr.mxu0 0.0
    %724 = vmatpush1.msra.mxu0 0.0
    %725 = vmatprep.subr.mxu0 0.0
    %726 = vmatpush1.msra.mxu0 0.0
    %727 = vmatprep.subr.mxu0 0.0
    %728 = vmatpush1.msra.mxu0 0.0
    %729 = vmatprep.subr.mxu0 0.0
    %730 = vmatpush1.msra.mxu0 0.0
    %731 = vmatprep.subr.mxu0 0.0
    %732 = vmatpush1.msra.mxu0 0.0
    %733 = vmatprep.subr.mxu0 0.0
    %734 = vmatpush1.msra.mxu0 0.0
    %735 = vmatprep.subr.mxu0 0.0
    %736 = vmatpush1.msra.mxu0 %v710
    %737 = vmatprep.subr.mxu0 0.0
    %738 = vmatpush1.msra.mxu0 %v709
    %739 = vmatprep.subr.mxu0 0.0
    %740 = vmatpush1.msra.mxu0 %v708
    %741 = vmatprep.subr.mxu0 0.0
    %742 = vmatpush1.msra.mxu0 %v707
    %743 = vmatprep.subr.mxu0 0.0
    %744 = vmatpush2.msra.mxu0 0.0
    %745 = vmatprep.subr.mxu0 0.0
    %746 = vmatpush2.msra.mxu0 0.0
    %747 = vmatprep.subr.mxu0 0.0
    %748 = vmatpush2.msra.mxu0 0.0
    %749 = vmatprep.subr.mxu0 0.0
    %750 = vmatpush2.msra.mxu0 0.0
    %751 = vmatprep.subr.mxu0 0.0
    %752 = vmatpush2.msra.mxu0 0.0
    %753 = vmatprep.subr.mxu0 0.0
    %754 = vmatpush2.msra.mxu0 0.0
    %755 = vmatprep.subr.mxu0 0.0
    %756 = vmatpush2.msra.mxu0 0.0
    %757 = vmatprep.subr.mxu0 0.0
    %758 = vmatpush2.msra.mxu0 0.0
    %759 = vmatprep.subr.mxu0 0.0
    %760 = vmatpush2.msra.mxu0 0.0
    %761 = vmatprep.subr.mxu0 0.0
    %762 = vmatpush2.msra.mxu0 0.0
    %763 = vmatprep.subr.mxu0 0.0
    %764 = vmatpush2.msra.mxu0 0.0
    %765 = vmatprep.subr.mxu0 0.0
    %766 = vmatpush2.msra.mxu0 0.0
    %767 = vmatprep.subr.mxu0 0.0
    %768 = vmatpush2.msra.mxu0 0.0
    %769 = vmatprep.subr.mxu0 0.0
    %770 = vmatpush2.msra.mxu0 0.0
    %771 = vmatprep.subr.mxu0 0.0
    %772 = vmatpush2.msra.mxu0 0.0
    %773 = vmatprep.subr.mxu0 0.0
    %774 = vmatpush2.msra.mxu0 0.0
    %775 = vmatprep.mubr.f32.mxu0 0.0
    %776 = vmatmul.mubr.f32.gmra.mxu0 %v185
    %v777 = vpop.f32.mrf.mxu0
    %v778 = vadd.f32 0.0, %v777
    %v779 = vpop.f32.mrf.mxu0
    %780 = vmatprep.mubr.f32.mxu0 0.0
    %781 = vmatmul.mubr.f32.gmra.mxu0 %v188
    %v782 = vpop.f32.mrf.mxu0
    %v783 = vadd.f32 0.0, %v782
    %v784 = vpop.f32.mrf.mxu0
    %785 = vdwg.mxu0
    %v786 = vld [vmem:[#allocation2 + $0xd0] sm:$0xff]
    %v787 = vld [vmem:[#allocation2 + $0xd8] sm:$0xff]
    %v788 = vld [vmem:[#allocation2 + $0xe0] sm:$0xff]
    %v789 = vld [vmem:[#allocation2 + $0xe8] sm:$0xff]
    %790 = vmatprep.subr.mxu0 0.0
    %791 = vmatpush1.msra.mxu0 0.0
    %792 = vmatprep.subr.mxu0 0.0
    %793 = vmatpush1.msra.mxu0 0.0
    %794 = vmatprep.subr.mxu0 0.0
    %795 = vmatpush1.msra.mxu0 0.0
    %796 = vmatprep.subr.mxu0 0.0
    %797 = vmatpush1.msra.mxu0 0.0
    %798 = vmatprep.subr.mxu0 0.0
    %799 = vmatpush1.msra.mxu0 0.0
    %800 = vmatprep.subr.mxu0 0.0
    %801 = vmatpush1.msra.mxu0 0.0
    %802 = vmatprep.subr.mxu0 0.0
    %803 = vmatpush1.msra.mxu0 0.0
    %804 = vmatprep.subr.mxu0 0.0
    %805 = vmatpush1.msra.mxu0 0.0
    %806 = vmatprep.subr.mxu0 0.0
    %807 = vmatpush1.msra.mxu0 0.0
    %808 = vmatprep.subr.mxu0 0.0
    %809 = vmatpush1.msra.mxu0 0.0
    %810 = vmatprep.subr.mxu0 0.0
    %811 = vmatpush1.msra.mxu0 0.0
    %812 = vmatprep.subr.mxu0 0.0
    %813 = vmatpush1.msra.mxu0 0.0
    %814 = vmatprep.subr.mxu0 0.0
    %815 = vmatpush1.msra.mxu0 %v789
    %816 = vmatprep.subr.mxu0 0.0
    %817 = vmatpush1.msra.mxu0 %v788
    %818 = vmatprep.subr.mxu0 0.0
    %819 = vmatpush1.msra.mxu0 %v787
    %820 = vmatprep.subr.mxu0 0.0
    %821 = vmatpush1.msra.mxu0 %v786
    %822 = vmatprep.subr.mxu0 0.0
    %823 = vmatpush2.msra.mxu0 0.0
    %824 = vmatprep.subr.mxu0 0.0
    %825 = vmatpush2.msra.mxu0 0.0
    %826 = vmatprep.subr.mxu0 0.0
    %827 = vmatpush2.msra.mxu0 0.0
    %828 = vmatprep.subr.mxu0 0.0
    %829 = vmatpush2.msra.mxu0 0.0
    %830 = vmatprep.subr.mxu0 0.0
    %831 = vmatpush2.msra.mxu0 0.0
    %832 = vmatprep.subr.mxu0 0.0
    %833 = vmatpush2.msra.mxu0 0.0
    %834 = vmatprep.subr.mxu0 0.0
    %835 = vmatpush2.msra.mxu0 0.0
    %836 = vmatprep.subr.mxu0 0.0
    %837 = vmatpush2.msra.mxu0 0.0
    %838 = vmatprep.subr.mxu0 0.0
    %839 = vmatpush2.msra.mxu0 0.0
    %840 = vmatprep.subr.mxu0 0.0
    %841 = vmatpush2.msra.mxu0 0.0
    %842 = vmatprep.subr.mxu0 0.0
    %843 = vmatpush2.msra.mxu0 0.0
    %844 = vmatprep.subr.mxu0 0.0
    %845 = vmatpush2.msra.mxu0 0.0
    %846 = vmatprep.subr.mxu0 0.0
    %847 = vmatpush2.msra.mxu0 0.0
    %848 = vmatprep.subr.mxu0 0.0
    %849 = vmatpush2.msra.mxu0 0.0
    %850 = vmatprep.subr.mxu0 0.0
    %851 = vmatpush2.msra.mxu0 0.0
    %852 = vmatprep.subr.mxu0 0.0
    %853 = vmatpush2.msra.mxu0 0.0
    %854 = vmatprep.mubr.f32.mxu0 0.0
    %855 = vmatmul.mubr.f32.gmra.mxu0 %v185
    %v856 = vpop.f32.mrf.mxu0
    %v857 = vadd.f32 0.0, %v856
    %v858 = vpop.f32.mrf.mxu0
    %859 = vmatprep.mubr.f32.mxu0 0.0
    %860 = vmatmul.mubr.f32.gmra.mxu0 %v188
    %v861 = vpop.f32.mrf.mxu0
    %v862 = vadd.f32 0.0, %v861
    %v863 = vpop.f32.mrf.mxu0
    %864 = vdwg.mxu0
    %v865 = vld [vmem:[#allocation2 + $0xf0] sm:$0xff]
    %v866 = vld [vmem:[#allocation2 + $0xf8] sm:$0xff]
    %v867 = vld [vmem:[#allocation2 + $0x100] sm:$0xff]
    %v868 = vld [vmem:[#allocation2 + $0x108] sm:$0xff]
    %869 = vmatprep.subr.mxu0 0.0
    %870 = vmatpush1.msra.mxu0 0.0
    %871 = vmatprep.subr.mxu0 0.0
    %872 = vmatpush1.msra.mxu0 0.0
    %873 = vmatprep.subr.mxu0 0.0
    %874 = vmatpush1.msra.mxu0 0.0
    %875 = vmatprep.subr.mxu0 0.0
    %876 = vmatpush1.msra.mxu0 0.0
    %877 = vmatprep.subr.mxu0 0.0
    %878 = vmatpush1.msra.mxu0 0.0
    %879 = vmatprep.subr.mxu0 0.0
    %880 = vmatpush1.msra.mxu0 0.0
    %881 = vmatprep.subr.mxu0 0.0
    %882 = vmatpush1.msra.mxu0 0.0
    %883 = vmatprep.subr.mxu0 0.0
    %884 = vmatpush1.msra.mxu0 0.0
    %885 = vmatprep.subr.mxu0 0.0
    %886 = vmatpush1.msra.mxu0 0.0
    %887 = vmatprep.subr.mxu0 0.0
    %888 = vmatpush1.msra.mxu0 0.0
    %889 = vmatprep.subr.mxu0 0.0
    %890 = vmatpush1.msra.mxu0 0.0
    %891 = vmatprep.subr.mxu0 0.0
    %892 = vmatpush1.msra.mxu0 0.0
    %893 = vmatprep.subr.mxu0 0.0
    %894 = vmatpush1.msra.mxu0 %v868
    %895 = vmatprep.subr.mxu0 0.0
    %896 = vmatpush1.msra.mxu0 %v867
    %897 = vmatprep.subr.mxu0 0.0
    %898 = vmatpush1.msra.mxu0 %v866
    %899 = vmatprep.subr.mxu0 0.0
    %900 = vmatpush1.msra.mxu0 %v865
    %901 = vmatprep.subr.mxu0 0.0
    %902 = vmatpush2.msra.mxu0 0.0
    %903 = vmatprep.subr.mxu0 0.0
    %904 = vmatpush2.msra.mxu0 0.0
    %905 = vmatprep.subr.mxu0 0.0
    %906 = vmatpush2.msra.mxu0 0.0
    %907 = vmatprep.subr.mxu0 0.0
    %908 = vmatpush2.msra.mxu0 0.0
    %909 = vmatprep.subr.mxu0 0.0
    %910 = vmatpush2.msra.mxu0 0.0
    %911 = vmatprep.subr.mxu0 0.0
    %912 = vmatpush2.msra.mxu0 0.0
    %913 = vmatprep.subr.mxu0 0.0
    %914 = vmatpush2.msra.mxu0 0.0
    %915 = vmatprep.subr.mxu0 0.0
    %916 = vmatpush2.msra.mxu0 0.0
    %917 = vmatprep.subr.mxu0 0.0
    %918 = vmatpush2.msra.mxu0 0.0
    %919 = vmatprep.subr.mxu0 0.0
    %920 = vmatpush2.msra.mxu0 0.0
    %921 = vmatprep.subr.mxu0 0.0
    %922 = vmatpush2.msra.mxu0 0.0
    %923 = vmatprep.subr.mxu0 0.0
    %924 = vmatpush2.msra.mxu0 0.0
    %925 = vmatprep.subr.mxu0 0.0
    %926 = vmatpush2.msra.mxu0 0.0
    %927 = vmatprep.subr.mxu0 0.0
    %928 = vmatpush2.msra.mxu0 0.0
    %929 = vmatprep.subr.mxu0 0.0
    %930 = vmatpush2.msra.mxu0 0.0
    %931 = vmatprep.subr.mxu0 0.0
    %932 = vmatpush2.msra.mxu0 0.0
    %933 = vmatprep.mubr.f32.mxu0 0.0
    %934 = vmatmul.mubr.f32.gmra.mxu0 %v185
    %v935 = vpop.f32.mrf.mxu0
    %v936 = vadd.f32 0.0, %v935
    %v937 = vpop.f32.mrf.mxu0
    %938 = vmatprep.mubr.f32.mxu0 0.0
    %939 = vmatmul.mubr.f32.gmra.mxu0 %v188
    %v940 = vpop.f32.mrf.mxu0
    %v941 = vadd.f32 0.0, %v940
    %v942 = vpop.f32.mrf.mxu0
    %943 = vdwg.mxu0
    %v945 = vsel %vm423, %v778, 0
    %v948 = vsel %vm423, %v783, 0
    %v951 = vsel %vm423, %v857, 0
    %v954 = vsel %vm423, %v862, 0
    %956 = vmatprep.subr.mxu0 0.0
    %957 = vmatpush1.xpose.msra.mxu0 0.0
    %958 = vmatprep.subr.mxu0 0.0
    %959 = vmatpush1.xpose.msra.mxu0 0.0
    %960 = vmatprep.subr.mxu0 0.0
    %961 = vmatpush1.xpose.msra.mxu0 0.0
    %962 = vmatprep.subr.mxu0 0.0
    %963 = vmatpush1.xpose.msra.mxu0 0.0
    %964 = vmatprep.subr.mxu0 0.0
    %965 = vmatpush1.xpose.msra.mxu0 0.0
    %966 = vmatprep.subr.mxu0 0.0
    %967 = vmatpush1.xpose.msra.mxu0 0.0
    %968 = vmatprep.subr.mxu0 0.0
    %969 = vmatpush1.xpose.msra.mxu0 0.0
    %970 = vmatprep.subr.mxu0 0.0
    %971 = vmatpush1.xpose.msra.mxu0 0.0
    %972 = vmatprep.subr.mxu0 0.0
    %973 = vmatpush1.xpose.msra.mxu0 0.0
    %974 = vmatprep.subr.mxu0 0.0
    %975 = vmatpush1.xpose.msra.mxu0 0.0
    %976 = vmatprep.subr.mxu0 0.0
    %977 = vmatpush1.xpose.msra.mxu0 0.0
    %978 = vmatprep.subr.mxu0 0.0
    %979 = vmatpush1.xpose.msra.mxu0 0.0
    %980 = vmatprep.subr.mxu0 0.0
    %981 = vmatpush1.xpose.msra.mxu0 0.0
    %982 = vmatprep.subr.mxu0 0.0
    %983 = vmatpush1.xpose.msra.mxu0 0.0
    %984 = vmatprep.subr.mxu0 0.0
    %985 = vmatpush1.xpose.msra.mxu0 %v954
    %986 = vmatprep.subr.mxu0 0.0
    %987 = vmatpush1.xpose.msra.mxu0 %v951
    %988 = vmatprep.subr.mxu0 0.0
    %989 = vmatpush2.xpose.msra.mxu0 0.0
    %990 = vmatprep.subr.mxu0 0.0
    %991 = vmatpush2.xpose.msra.mxu0 0.0
    %992 = vmatprep.subr.mxu0 0.0
    %993 = vmatpush2.xpose.msra.mxu0 0.0
    %994 = vmatprep.subr.mxu0 0.0
    %995 = vmatpush2.xpose.msra.mxu0 0.0
    %996 = vmatprep.subr.mxu0 0.0
    %997 = vmatpush2.xpose.msra.mxu0 0.0
    %998 = vmatprep.subr.mxu0 0.0
    %999 = vmatpush2.xpose.msra.mxu0 0.0
    %1000 = vmatprep.subr.mxu0 0.0
    %1001 = vmatpush2.xpose.msra.mxu0 0.0
    %1002 = vmatprep.subr.mxu0 0.0
    %1003 = vmatpush2.xpose.msra.mxu0 0.0
    %1004 = vmatprep.subr.mxu0 0.0
    %1005 = vmatpush2.xpose.msra.mxu0 0.0
    %1006 = vmatprep.subr.mxu0 0.0
    %1007 = vmatpush2.xpose.msra.mxu0 0.0
    %1008 = vmatprep.subr.mxu0 0.0
    %1009 = vmatpush2.xpose.msra.mxu0 0.0
    %1010 = vmatprep.subr.mxu0 0.0
    %1011 = vmatpush2.xpose.msra.mxu0 0.0
    %1012 = vmatprep.subr.mxu0 0.0
    %1013 = vmatpush2.xpose.msra.mxu0 0.0
    %1014 = vmatprep.subr.mxu0 0.0
    %1015 = vmatpush2.xpose.msra.mxu0 0.0
    %1016 = vmatprep.subr.mxu0 0.0
    %1017 = vmatpush2.xpose.msra.mxu0 0.0
    %1018 = vmatprep.subr.mxu0 0.0
    %1019 = vmatpush2.xpose.msra.mxu0 0.0
    %1020 = vmatprep.mubr.f32.mxu0 0.0
    %1021 = vmatmul.mubr.f32.gmra.mxu0 %v945
    %v1022 = vpop.f32.mrf.mxu0
    %v1023 = vadd.f32 0.0, %v1022
    %v1024 = vpop.f32.mrf.mxu0
    %1025 = vmatprep.mubr.f32.mxu0 0.0
    %1026 = vmatmul.mubr.f32.gmra.mxu0 %v948
    %v1027 = vpop.f32.mrf.mxu0
    %v1028 = vadd.f32 0.0, %v1027
    %v1029 = vpop.f32.mrf.mxu0
    %1030 = vdwg.mxu0
    %v1031 = vmul.f32 %v1023, 0.25
    %v1032 = vmul.f32 %v1028, 0.25
    %v1033 = vadd.f32 %v1031, %v177
    %v1034 = vadd.f32 %v1032, %v178
    %v1035 = vsel %vm423, %v1033, -inf
    %1036 = vmax.xlane.f32.xlu0 %v1035
    %v1037 = vpop.xlane.xlu0 %1036
    %v1038 = vsel %vm423, %v1034, -inf
    %1039 = vmax.xlane.f32.xlu0 %v1038
    %v1040 = vpop.xlane.xlu0 %1039
    %v1041 = vsub.f32 %v1033, %v1037
    %v1042 = vsub.f32 %v1034, %v1040
    %v1043 = vmul.f32 %v1041, 1.442695
    %v1044 = vpow.pop %v1043
    %v1045 = vmul.f32 %v1042, 1.442695
    %v1046 = vpow.pop %v1045
    %v1047 = vsel %vm423, %v1044, 0.0
    %1048 = vadd.xlane.f32.xlu0 %v1047
    %v1049 = vpop.xlane.xlu0 %1048
    %v1050 = vsel %vm423, %v1046, 0.0
    %1051 = vadd.xlane.f32.xlu0 %v1050
    %v1052 = vpop.xlane.xlu0 %1051
    %v1053 = vrcp.pop %v1049
    %v1054 = vmul.f32 %v1044, %v1053
    %v1055 = vrcp.pop %v1052
    %v1056 = vmul.f32 %v1046, %v1055
    %v1058 = vsel %vm423, %v1054, 0
    %v1061 = vsel %vm423, %v1056, 0
    %1063 = vmatprep.subr.mxu0 0.0
    %1064 = vmatpush1.msra.mxu0 0.0
    %1065 = vmatprep.subr.mxu0 0.0
    %1066 = vmatpush1.msra.mxu0 0.0
    %1067 = vmatprep.subr.mxu0 0.0
    %1068 = vmatpush1.msra.mxu0 0.0
    %1069 = vmatprep.subr.mxu0 0.0
    %1070 = vmatpush1.msra.mxu0 0.0
    %1071 = vmatprep.subr.mxu0 0.0
    %1072 = vmatpush1.msra.mxu0 0.0
    %1073 = vmatprep.subr.mxu0 0.0
    %1074 = vmatpush1.msra.mxu0 0.0
    %1075 = vmatprep.subr.mxu0 0.0
    %1076 = vmatpush1.msra.mxu0 0.0
    %1077 = vmatprep.subr.mxu0 0.0
    %1078 = vmatpush1.msra.mxu0 0.0
    %1079 = vmatprep.subr.mxu0 0.0
    %1080 = vmatpush1.msra.mxu0 0.0
    %1081 = vmatprep.subr.mxu0 0.0
    %1082 = vmatpush1.msra.mxu0 0.0
    %1083 = vmatprep.subr.mxu0 0.0
    %1084 = vmatpush1.msra.mxu0 0.0
    %1085 = vmatprep.subr.mxu0 0.0
    %1086 = vmatpush1.msra.mxu0 0.0
    %1087 = vmatprep.subr.mxu0 0.0
    %1088 = vmatpush1.msra.mxu0 0.0
    %1089 = vmatprep.subr.mxu0 0.0
    %1090 = vmatpush1.msra.mxu0 0.0
    %1091 = vmatprep.subr.mxu0 0.0
    %1092 = vmatpush1.msra.mxu0 %v941
    %1093 = vmatprep.subr.mxu0 0.0
    %1094 = vmatpush1.msra.mxu0 %v936
    %1095 = vmatprep.subr.mxu0 0.0
    %1096 = vmatpush2.msra.mxu0 0.0
    %1097 = vmatprep.subr.mxu0 0.0
    %1098 = vmatpush2.msra.mxu0 0.0
    %1099 = vmatprep.subr.mxu0 0.0
    %1100 = vmatpush2.msra.mxu0 0.0
    %1101 = vmatprep.subr.mxu0 0.0
    %1102 = vmatpush2.msra.mxu0 0.0
    %1103 = vmatprep.subr.mxu0 0.0
    %1104 = vmatpush2.msra.mxu0 0.0
    %1105 = vmatprep.subr.mxu0 0.0
    %1106 = vmatpush2.msra.mxu0 0.0
    %1107 = vmatprep.subr.mxu0 0.0
    %1108 = vmatpush2.msra.mxu0 0.0
    %1109 = vmatprep.subr.mxu0 0.0
    %1110 = vmatpush2.msra.mxu0 0.0
    %1111 = vmatprep.subr.mxu0 0.0
    %1112 = vmatpush2.msra.mxu0 0.0
    %1113 = vmatprep.subr.mxu0 0.0
    %1114 = vmatpush2.msra.mxu0 0.0
    %1115 = vmatprep.subr.mxu0 0.0
    %1116 = vmatpush2.msra.mxu0 0.0
    %1117 = vmatprep.subr.mxu0 0.0
    %1118 = vmatpush2.msra.mxu0 0.0
    %1119 = vmatprep.subr.mxu0 0.0
    %1120 = vmatpush2.msra.mxu0 0.0
    %1121 = vmatprep.subr.mxu0 0.0
    %1122 = vmatpush2.msra.mxu0 0.0
    %1123 = vmatprep.subr.mxu0 0.0
    %1124 = vmatpush2.msra.mxu0 0.0
    %1125 = vmatprep.subr.mxu0 0.0
    %1126 = vmatpush2.msra.mxu0 0.0
    %1127 = vmatprep.mubr.f32.mxu0 0.0
    %1128 = vmatmul.mubr.f32.gmra.mxu0 %v1058
    %v1129 = vpop.f32.mrf.mxu0
    %v1130 = vadd.f32 0.0, %v1129
    %v1131 = vpop.f32.mrf.mxu0
    %1132 = vmatprep.mubr.f32.mxu0 0.0
    %1133 = vmatmul.mubr.f32.gmra.mxu0 %v1061
    %v1134 = vpop.f32.mrf.mxu0
    %v1135 = vadd.f32 0.0, %v1134
    %v1136 = vpop.f32.mrf.mxu0
    %1137 = vdwg.mxu0
    %v1138 = vld [vmem:[#allocation2 + $0x110] sm:$0xff]
    %v1139 = vld [vmem:[#allocation2 + $0x118] sm:$0xff]
    %v1141 = vsel %vm423, %v1130, 0
    %v1144 = vsel %vm423, %v1135, 0
    %1146 = vmatprep.subr.mxu0 0.0
    %1147 = vmatpush1.msra.mxu0 0.0
    %1148 = vmatprep.subr.mxu0 0.0
    %1149 = vmatpush1.msra.mxu0 0.0
    %1150 = vmatprep.subr.mxu0 0.0
    %1151 = vmatpush1.msra.mxu0 0.0
    %1152 = vmatprep.subr.mxu0 0.0
    %1153 = vmatpush1.msra.mxu0 0.0
    %1154 = vmatprep.subr.mxu0 0.0
    %1155 = vmatpush1.msra.mxu0 0.0
    %1156 = vmatprep.subr.mxu0 0.0
    %1157 = vmatpush1.msra.mxu0 0.0
    %1158 = vmatprep.subr.mxu0 0.0
    %1159 = vmatpush1.msra.mxu0 0.0
    %1160 = vmatprep.subr.mxu0 0.0
    %1161 = vmatpush1.msra.mxu0 0.0
    %1162 = vmatprep.subr.mxu0 0.0
    %1163 = vmatpush1.msra.mxu0 0.0
    %1164 = vmatprep.subr.mxu0 0.0
    %1165 = vmatpush1.msra.mxu0 0.0
    %1166 = vmatprep.subr.mxu0 0.0
    %1167 = vmatpush1.msra.mxu0 0.0
    %1168 = vmatprep.subr.mxu0 0.0
    %1169 = vmatpush1.msra.mxu0 0.0
    %1170 = vmatprep.subr.mxu0 0.0
    %1171 = vmatpush1.msra.mxu0 0.0
    %1172 = vmatprep.subr.mxu0 0.0
    %1173 = vmatpush1.msra.mxu0 0.0
    %1174 = vmatprep.subr.mxu0 0.0
    %1175 = vmatpush1.msra.mxu0 %v1139
    %1176 = vmatprep.subr.mxu0 0.0
    %1177 = vmatpush1.msra.mxu0 %v1138
    %1178 = vmatprep.subr.mxu0 0.0
    %1179 = vmatpush2.msra.mxu0 0.0
    %1180 = vmatprep.subr.mxu0 0.0
    %1181 = vmatpush2.msra.mxu0 0.0
    %1182 = vmatprep.subr.mxu0 0.0
    %1183 = vmatpush2.msra.mxu0 0.0
    %1184 = vmatprep.subr.mxu0 0.0
    %1185 = vmatpush2.msra.mxu0 0.0
    %1186 = vmatprep.subr.mxu0 0.0
    %1187 = vmatpush2.msra.mxu0 0.0
    %1188 = vmatprep.subr.mxu0 0.0
    %1189 = vmatpush2.msra.mxu0 0.0
    %1190 = vmatprep.subr.mxu0 0.0
    %1191 = vmatpush2.msra.mxu0 0.0
    %1192 = vmatprep.subr.mxu0 0.0
    %1193 = vmatpush2.msra.mxu0 0.0
    %1194 = vmatprep.subr.mxu0 0.0
    %1195 = vmatpush2.msra.mxu0 0.0
    %1196 = vmatprep.subr.mxu0 0.0
    %1197 = vmatpush2.msra.mxu0 0.0
    %1198 = vmatprep.subr.mxu0 0.0
    %1199 = vmatpush2.msra.mxu0 0.0
    %1200 = vmatprep.subr.mxu0 0.0
    %1201 = vmatpush2.msra.mxu0 0.0
    %1202 = vmatprep.subr.mxu0 0.0
    %1203 = vmatpush2.msra.mxu0 0.0
    %1204 = vmatprep.subr.mxu0 0.0
    %1205 = vmatpush2.msra.mxu0 0.0
    %1206 = vmatprep.subr.mxu0 0.0
    %1207 = vmatpush2.msra.mxu0 0.0
    %1208 = vmatprep.subr.mxu0 0.0
    %1209 = vmatpush2.msra.mxu0 0.0
    %1210 = vmatprep.mubr.f32.mxu0 0.0
    %1211 = vmatmul.mubr.f32.gmra.mxu0 %v1141
    %v1212 = vpop.f32.mrf.mxu0
    %v1213 = vadd.f32 0.0, %v1212
    %v1214 = vpop.f32.mrf.mxu0
    %1215 = vmatprep.mubr.f32.mxu0 0.0
    %1216 = vmatmul.mubr.f32.gmra.mxu0 %v1144
    %v1217 = vpop.f32.mrf.mxu0
    %v1218 = vadd.f32 0.0, %v1217
    %v1219 = vpop.f32.mrf.mxu0
    %1220 = vdwg.mxu0
    %v1221 = vadd.f32 %v705, %v1213
    %v1222 = vadd.f32 %v706, %v1218
    %v1223 = vadd.f32 %v175, %v1221
    %v1224 = vadd.f32 %v176, %v1222
    %v1225 = vld [vmem:[#allocation2 + $0x128] sm:$0x1]
    %v1226 = vld [vmem:[#allocation2 + $0x130] sm:$0x1]
    %v1227 = vsel %vm137, %v1223, 0.0
    %1228 = vadd.xlane.f32.xlu0 %v1227
    %v1229 = vpop.xlane.xlu0 %1228
    %v1230 = vsel %vm137, %v1224, 0.0
    %1231 = vadd.xlane.f32.xlu0 %v1230
    %v1232 = vpop.xlane.xlu0 %1231
    %v1233 = vmul.f32 %v1229, %v144
    %v1234 = vmul.f32 %v1232, %v144
    %v1235 = vsub.f32 %v1223, %v1233
    %v1236 = vsub.f32 %v1224, %v1234
    %v1237 = vmul.f32 %v1235, %v1235
    %v1238 = vmul.f32 %v1236, %v1236
    %v1239 = vsel %vm137, %v1237, 0.0
    %1240 = vadd.xlane.f32.xlu0 %v1239
    %v1241 = vpop.xlane.xlu0 %1240
    %v1242 = vsel %vm137, %v1238, 0.0
    %1243 = vadd.xlane.f32.xlu0 %v1242
    %v1244 = vpop.xlane.xlu0 %1243
    %v1245 = vmul.f32 %v1241, %v144
    %v1246 = vmul.f32 %v1244, %v144
    %v1247 = vadd.f32 %v1245, 1e-05
    %v1248 = vadd.f32 %v1246, 1e-05
    %v1249 = vrsqrt.pop %v1247
    %v1250 = vrsqrt.pop %v1248
    %v1251 = vmul.f32 %v1235, %v1249
    %v1252 = vmul.f32 %v1236, %v1250
    %v1253 = vlaneseq
    %v1254 = vshrl.u32 %v1253, 7
    %v1255 = vsub.s32 0, %v1254
    %v1256 = vrot.slane %v1225, %v1255
    %v1257 = vmul.f32 %v1251, %v1256
    %v1258 = vmul.f32 %v1252, %v1256
    %v1259 = vlaneseq
    %v1260 = vshrl.u32 %v1259, 7
    %v1261 = vsub.s32 0, %v1260
    %v1262 = vrot.slane %v1226, %v1261
    %v1263 = vadd.f32 %v1257, %v1262
    %v1264 = vadd.f32 %v1258, %v1262
    %v1265 = vld [vmem:[#allocation2 + $0x138] sm:$0xff]
    %v1266 = vld [vmem:[#allocation2 + $0x140] sm:$0xff]
    %v1267 = vld [vmem:[#allocation2 + $0x148] sm:$0xff]
    %v1268 = vld [vmem:[#allocation2 + $0x150] sm:$0xff]
    %v1269 = vld [vmem:[#allocation2 + $0x158] sm:$0x1]
    %v1270 = vlaneseq
    %v1271 = vshrl.u32 %v1270, 7
    %v1272 = vsub.s32 0, %v1271
    %v1273 = vrot.slane %v1269, %v1272
    %v1275 = vsel %vm137, %v1263, 0
    %v1278 = vsel %vm137, %v1264, 0
    %1280 = vmatprep.subr.mxu0 0.0
    %1281 = vmatpush1.msra.mxu0 0.0
    %1282 = vmatprep.subr.mxu0 0.0
    %1283 = vmatpush1.msra.mxu0 0.0
    %1284 = vmatprep.subr.mxu0 0.0
    %1285 = vmatpush1.msra.mxu0 0.0
    %1286 = vmatprep.subr.mxu0 0.0
    %1287 = vmatpush1.msra.mxu0 0.0
    %1288 = vmatprep.subr.mxu0 0.0
    %1289 = vmatpush1.msra.mxu0 0.0
    %1290 = vmatprep.subr.mxu0 0.0
    %1291 = vmatpush1.msra.mxu0 0.0
    %1292 = vmatprep.subr.mxu0 0.0
    %1293 = vmatpush1.msra.mxu0 0.0
    %1294 = vmatprep.subr.mxu0 0.0
    %1295 = vmatpush1.msra.mxu0 0.0
    %1296 = vmatprep.subr.mxu0 0.0
    %1297 = vmatpush1.msra.mxu0 0.0
    %1298 = vmatprep.subr.mxu0 0.0
    %1299 = vmatpush1.msra.mxu0 0.0
    %1300 = vmatprep.subr.mxu0 0.0
    %1301 = vmatpush1.msra.mxu0 0.0
    %1302 = vmatprep.subr.mxu0 0.0
    %1303 = vmatpush1.msra.mxu0 0.0
    %1304 = vmatprep.subr.mxu0 0.0
    %1305 = vmatpush1.msra.mxu0 %v1268
    %1306 = vmatprep.subr.mxu0 0.0
    %1307 = vmatpush1.msra.mxu0 %v1267
    %1308 = vmatprep.subr.mxu0 0.0
    %1309 = vmatpush1.msra.mxu0 %v1266
    %1310 = vmatprep.subr.mxu0 0.0
    %1311 = vmatpush1.msra.mxu0 %v1265
    %1312 = vmatprep.subr.mxu0 0.0
    %1313 = vmatpush2.msra.mxu0 0.0
    %1314 = vmatprep.subr.mxu0 0.0
    %1315 = vmatpush2.msra.mxu0 0.0
    %1316 = vmatprep.subr.mxu0 0.0
    %1317 = vmatpush2.msra.mxu0 0.0
    %1318 = vmatprep.subr.mxu0 0.0
    %1319 = vmatpush2.msra.mxu0 0.0
    %1320 = vmatprep.subr.mxu0 0.0
    %1321 = vmatpush2.msra.mxu0 0.0
    %1322 = vmatprep.subr.mxu0 0.0
    %1323 = vmatpush2.msra.mxu0 0.0
    %1324 = vmatprep.subr.mxu0 0.0
    %1325 = vmatpush2.msra.mxu0 0.0
    %1326 = vmatprep.subr.mxu0 0.0
    %1327 = vmatpush2.msra.mxu0 0.0
    %1328 = vmatprep.subr.mxu0 0.0
    %1329 = vmatpush2.msra.mxu0 0.0
    %1330 = vmatprep.subr.mxu0 0.0
    %1331 = vmatpush2.msra.mxu0 0.0
    %1332 = vmatprep.subr.mxu0 0.0
    %1333 = vmatpush2.msra.mxu0 0.0
    %1334 = vmatprep.subr.mxu0 0.0
    %1335 = vmatpush2.msra.mxu0 0.0
    %1336 = vmatprep.subr.mxu0 0.0
    %1337 = vmatpush2.msra.mxu0 0.0
    %1338 = vmatprep.subr.mxu0 0.0
    %1339 = vmatpush2.msra.mxu0 0.0
    %1340 = vmatprep.subr.mxu0 0.0
    %1341 = vmatpush2.msra.mxu0 0.0
    %1342 = vmatprep.subr.mxu0 0.0
    %1343 = vmatpush2.msra.mxu0 0.0
    %1344 = vmatprep.mubr.f32.mxu0 0.0
    %1345 = vmatmul.mubr.f32.gmra.mxu0 %v1275
    %v1346 = vpop.f32.mrf.mxu0
    %v1347 = vadd.f32 %v1273, %v1346
    %v1348 = vpop.f32.mrf.mxu0
    %1349 = vmatprep.mubr.f32.mxu0 0.0
    %1350 = vmatmul.mubr.f32.gmra.mxu0 %v1278
    %v1351 = vpop.f32.mrf.mxu0
    %v1352 = vadd.f32 %v1273, %v1351
    %v1353 = vpop.f32.mrf.mxu0
    %1354 = vdwg.mxu0
    %v1355 = vmul.f32 %v1347, 0.5
    %v1356 = vmul.f32 %v1352, 0.5
    %v1357 = vmul.f32 %v1347, 0.70710677
    %v1358 = vmul.f32 %v1352, 0.70710677
    %v1359 = verf.f32.pop %v1357
    %v1360 = verf.f32.pop %v1358
    %v1361 = vadd.f32 %v1359, 1.0
    %v1362 = vadd.f32 %v1360, 1.0
    %v1363 = vmul.f32 %v1355, %v1361
    %v1364 = vmul.f32 %v1356, %v1362
    %v1365 = vld [vmem:[#allocation2 + $0x160] sm:$0xff]
    %v1366 = vld [vmem:[#allocation2 + $0x168] sm:$0xff]
    %v1367 = vld [vmem:[#allocation2 + $0x170] sm:$0xff]
    %v1368 = vld [vmem:[#allocation2 + $0x178] sm:$0xff]
    %v1369 = vld [vmem:[#allocation2 + $0x180] sm:$0xff]
    %v1370 = vld [vmem:[#allocation2 + $0x188] sm:$0xff]
    %v1371 = vld [vmem:[#allocation2 + $0x190] sm:$0xff]
    %v1372 = vld [vmem:[#allocation2 + $0x198] sm:$0xff]
    %v1373 = vld [vmem:[#allocation2 + $0x1a0] sm:$0x1]
    %v1374 = vlaneseq
    %v1375 = vshrl.u32 %v1374, 7
    %v1376 = vsub.s32 0, %v1375
    %v1377 = vrot.slane %v1373, %v1376
    %vm1378 = vcmask 523264
    %v1380 = vsel %vm1378, %v1363, 0
    %v1383 = vsel %vm1378, %v1364, 0
    %1385 = vmatprep.subr.mxu0 0.0
    %1386 = vmatpush1.msra.mxu0 0.0
    %1387 = vmatprep.subr.mxu0 0.0
    %1388 = vmatpush1.msra.mxu0 0.0
    %1389 = vmatprep.subr.mxu0 0.0
    %1390 = vmatpush1.msra.mxu0 0.0
    %1391 = vmatprep.subr.mxu0 0.0
    %1392 = vmatpush1.msra.mxu0 0.0
    %1393 = vmatprep.subr.mxu0 0.0
    %1394 = vmatpush1.msra.mxu0 0.0
    %1395 = vmatprep.subr.mxu0 0.0
    %1396 = vmatpush1.msra.mxu0 0.0
    %1397 = vmatprep.subr.mxu0 0.0
    %1398 = vmatpush1.msra.mxu0 0.0
    %1399 = vmatprep.subr.mxu0 0.0
    %1400 = vmatpush1.msra.mxu0 0.0
    %1401 = vmatprep.subr.mxu0 0.0
    %1402 = vmatpush1.msra.mxu0 %v1372
    %1403 = vmatprep.subr.mxu0 0.0
    %1404 = vmatpush1.msra.mxu0 %v1371
    %1405 = vmatprep.subr.mxu0 0.0
    %1406 = vmatpush1.msra.mxu0 %v1370
    %1407 = vmatprep.subr.mxu0 0.0
    %1408 = vmatpush1.msra.mxu0 %v1369
    %1409 = vmatprep.subr.mxu0 0.0
    %1410 = vmatpush1.msra.mxu0 %v1368
    %1411 = vmatprep.subr.mxu0 0.0
    %1412 = vmatpush1.msra.mxu0 %v1367
    %1413 = vmatprep.subr.mxu0 0.0
    %1414 = vmatpush1.msra.mxu0 %v1366
    %1415 = vmatprep.subr.mxu0 0.0
    %1416 = vmatpush1.msra.mxu0 %v1365
    %1417 = vmatprep.subr.mxu0 0.0
    %1418 = vmatpush2.msra.mxu0 0.0
    %1419 = vmatprep.subr.mxu0 0.0
    %1420 = vmatpush2.msra.mxu0 0.0
    %1421 = vmatprep.subr.mxu0 0.0
    %1422 = vmatpush2.msra.mxu0 0.0
    %1423 = vmatprep.subr.mxu0 0.0
    %1424 = vmatpush2.msra.mxu0 0.0
    %1425 = vmatprep.subr.mxu0 0.0
    %1426 = vmatpush2.msra.mxu0 0.0
    %1427 = vmatprep.subr.mxu0 0.0
    %1428 = vmatpush2.msra.mxu0 0.0
    %1429 = vmatprep.subr.mxu0 0.0
    %1430 = vmatpush2.msra.mxu0 0.0
    %1431 = vmatprep.subr.mxu0 0.0
    %1432 = vmatpush2.msra.mxu0 0.0
    %1433 = vmatprep.subr.mxu0 0.0
    %1434 = vmatpush2.msra.mxu0 0.0
    %1435 = vmatprep.subr.mxu0 0.0
    %1436 = vmatpush2.msra.mxu0 0.0
    %1437 = vmatprep.subr.mxu0 0.0
    %1438 = vmatpush2.msra.mxu0 0.0
    %1439 = vmatprep.subr.mxu0 0.0
    %1440 = vmatpush2.msra.mxu0 0.0
    %1441 = vmatprep.subr.mxu0 0.0
    %1442 = vmatpush2.msra.mxu0 0.0
    %1443 = vmatprep.subr.mxu0 0.0
    %1444 = vmatpush2.msra.mxu0 0.0
    %1445 = vmatprep.subr.mxu0 0.0
    %1446 = vmatpush2.msra.mxu0 0.0
    %1447 = vmatprep.subr.mxu0 0.0
    %1448 = vmatpush2.msra.mxu0 0.0
    %1449 = vmatprep.mubr.f32.mxu0 0.0
    %1450 = vmatmul.mubr.f32.gmra.mxu0 %v1380
    %v1451 = vpop.f32.mrf.mxu0
    %v1452 = vadd.f32 %v1377, %v1451
    %v1453 = vpop.f32.mrf.mxu0
    %1454 = vmatprep.mubr.f32.mxu0 0.0
    %1455 = vmatmul.mubr.f32.gmra.mxu0 %v1383
    %v1456 = vpop.f32.mrf.mxu0
    %v1457 = vadd.f32 %v1377, %v1456
    %v1458 = vpop.f32.mrf.mxu0
    %1459 = vdwg.mxu0
    %v1460 = vadd.f32 %v1263, %v1452
    %v1461 = vadd.f32 %v1264, %v1457
    %v1462 = vld [vmem:[#allocation2 + $0x1a8] sm:$0x1]
    %v1463 = vld [vmem:[#allocation2 + $0x1b0] sm:$0x1]
    %v1464 = vsel %vm137, %v1460, 0.0
    %1465 = vadd.xlane.f32.xlu0 %v1464
    %v1466 = vpop.xlane.xlu0 %1465
    %v1467 = vsel %vm137, %v1461, 0.0
    %1468 = vadd.xlane.f32.xlu0 %v1467
    %v1469 = vpop.xlane.xlu0 %1468
    %v1470 = vmul.f32 %v1466, %v144
    %v1471 = vmul.f32 %v1469, %v144
    %v1472 = vsub.f32 %v1460, %v1470
    %v1473 = vsub.f32 %v1461, %v1471
    %v1474 = vmul.f32 %v1472, %v1472
    %v1475 = vmul.f32 %v1473, %v1473
    %v1476 = vsel %vm137, %v1474, 0.0
    %1477 = vadd.xlane.f32.xlu0 %v1476
    %v1478 = vpop.xlane.xlu0 %1477
    %v1479 = vsel %vm137, %v1475, 0.0
    %1480 = vadd.xlane.f32.xlu0 %v1479
    %v1481 = vpop.xlane.xlu0 %1480
    %v1482 = vmul.f32 %v1478, %v144
    %v1483 = vmul.f32 %v1481, %v144
    %v1484 = vadd.f32 %v1482, 1e-05
    %v1485 = vadd.f32 %v1483, 1e-05
    %v1486 = vrsqrt.pop %v1484
    %v1487 = vrsqrt.pop %v1485
    %v1488 = vmul.f32 %v1472, %v1486
    %v1489 = vmul.f32 %v1473, %v1487
    %v1490 = vlaneseq
    %v1491 = vshrl.u32 %v1490, 7
    %v1492 = vsub.s32 0, %v1491
    %v1493 = vrot.slane %v1462, %v1492
    %v1494 = vmul.f32 %v1488, %v1493
    %v1495 = vmul.f32 %v1489, %v1493
    %v1496 = vlaneseq
    %v1497 = vshrl.u32 %v1496, 7
    %v1498 = vsub.s32 0, %v1497
    %v1499 = vrot.slane %v1463, %v1498
    %v1500 = vadd.f32 %v1494, %v1499
    %v1501 = vadd.f32 %v1495, %v1499
    %v1502 = vld [vmem:[#allocation2 + $0x298] sm:$0x1]
    %v1503 = vld [vmem:[#allocation2 + $0x1b8] sm:$0xff]
    %v1504 = vld [vmem:[#allocation2 + $0x1c0] sm:$0xff]
    %v1505 = vld [vmem:[#allocation2 + $0x1c8] sm:$0xff]
    %v1506 = vld [vmem:[#allocation2 + $0x1d0] sm:$0xff]
    %v1508 = vsel %vm137, %v1500, 0
    %v1511 = vsel %vm137, %v1501, 0
    %1513 = vmatprep.subr.mxu0 0.0
    %1514 = vmatpush1.msra.mxu0 0.0
    %1515 = vmatprep.subr.mxu0 0.0
    %1516 = vmatpush1.msra.mxu0 0.0
    %1517 = vmatprep.subr.mxu0 0.0
    %1518 = vmatpush1.msra.mxu0 0.0
    %1519 = vmatprep.subr.mxu0 0.0
    %1520 = vmatpush1.msra.mxu0 0.0
    %1521 = vmatprep.subr.mxu0 0.0
    %1522 = vmatpush1.msra.mxu0 0.0
    %1523 = vmatprep.subr.mxu0 0.0
    %1524 = vmatpush1.msra.mxu0 0.0
    %1525 = vmatprep.subr.mxu0 0.0
    %1526 = vmatpush1.msra.mxu0 0.0
    %1527 = vmatprep.subr.mxu0 0.0
    %1528 = vmatpush1.msra.mxu0 0.0
    %1529 = vmatprep.subr.mxu0 0.0
    %1530 = vmatpush1.msra.mxu0 0.0
    %1531 = vmatprep.subr.mxu0 0.0
    %1532 = vmatpush1.msra.mxu0 0.0
    %1533 = vmatprep.subr.mxu0 0.0
    %1534 = vmatpush1.msra.mxu0 0.0
    %1535 = vmatprep.subr.mxu0 0.0
    %1536 = vmatpush1.msra.mxu0 0.0
    %1537 = vmatprep.subr.mxu0 0.0
    %1538 = vmatpush1.msra.mxu0 %v1506
    %1539 = vmatprep.subr.mxu0 0.0
    %1540 = vmatpush1.msra.mxu0 %v1505
    %1541 = vmatprep.subr.mxu0 0.0
    %1542 = vmatpush1.msra.mxu0 %v1504
    %1543 = vmatprep.subr.mxu0 0.0
    %1544 = vmatpush1.msra.mxu0 %v1503
    %1545 = vmatprep.subr.mxu0 0.0
    %1546 = vmatpush2.msra.mxu0 0.0
    %1547 = vmatprep.subr.mxu0 0.0
    %1548 = vmatpush2.msra.mxu0 0.0
    %1549 = vmatprep.subr.mxu0 0.0
    %1550 = vmatpush2.msra.mxu0 0.0
    %1551 = vmatprep.subr.mxu0 0.0
    %1552 = vmatpush2.msra.mxu0 0.0
    %1553 = vmatprep.subr.mxu0 0.0
    %1554 = vmatpush2.msra.mxu0 0.0
    %1555 = vmatprep.subr.mxu0 0.0
    %1556 = vmatpush2.msra.mxu0 0.0
    %1557 = vmatprep.subr.mxu0 0.0
    %1558 = vmatpush2.msra.mxu0 0.0
    %1559 = vmatprep.subr.mxu0 0.0
    %1560 = vmatpush2.msra.mxu0 0.0
    %1561 = vmatprep.subr.mxu0 0.0
    %1562 = vmatpush2.msra.mxu0 0.0
    %1563 = vmatprep.subr.mxu0 0.0
    %1564 = vmatpush2.msra.mxu0 0.0
    %1565 = vmatprep.subr.mxu0 0.0
    %1566 = vmatpush2.msra.mxu0 0.0
    %1567 = vmatprep.subr.mxu0 0.0
    %1568 = vmatpush2.msra.mxu0 0.0
    %1569 = vmatprep.subr.mxu0 0.0
    %1570 = vmatpush2.msra.mxu0 0.0
    %1571 = vmatprep.subr.mxu0 0.0
    %1572 = vmatpush2.msra.mxu0 0.0
    %1573 = vmatprep.subr.mxu0 0.0
    %1574 = vmatpush2.msra.mxu0 0.0
    %1575 = vmatprep.subr.mxu0 0.0
    %1576 = vmatpush2.msra.mxu0 0.0
    %1577 = vmatprep.mubr.f32.mxu0 0.0
    %1578 = vmatmul.mubr.f32.gmra.mxu0 %v1508
    %v1579 = vpop.f32.mrf.mxu0
    %v1580 = vadd.f32 0.0, %v1579
    %v1581 = vpop.f32.mrf.mxu0
    %1582 = vmatprep.mubr.f32.mxu0 0.0
    %1583 = vmatmul.mubr.f32.gmra.mxu0 %v1511
    %v1584 = vpop.f32.mrf.mxu0
    %v1585 = vadd.f32 0.0, %v1584
    %v1586 = vpop.f32.mrf.mxu0
    %1587 = vdwg.mxu0
    %v1588 = vld [vmem:[#allocation2 + $0x1d8] sm:$0xff]
    %v1589 = vld [vmem:[#allocation2 + $0x1e0] sm:$0xff]
    %v1590 = vld [vmem:[#allocation2 + $0x1e8] sm:$0xff]
    %v1591 = vld [vmem:[#allocation2 + $0x1f0] sm:$0xff]
    %1592 = vmatprep.subr.mxu0 0.0
    %1593 = vmatpush1.msra.mxu0 0.0
    %1594 = vmatprep.subr.mxu0 0.0
    %1595 = vmatpush1.msra.mxu0 0.0
    %1596 = vmatprep.subr.mxu0 0.0
    %1597 = vmatpush1.msra.mxu0 0.0
    %1598 = vmatprep.subr.mxu0 0.0
    %1599 = vmatpush1.msra.mxu0 0.0
    %1600 = vmatprep.subr.mxu0 0.0
    %1601 = vmatpush1.msra.mxu0 0.0
    %1602 = vmatprep.subr.mxu0 0.0
    %1603 = vmatpush1.msra.mxu0 0.0
    %1604 = vmatprep.subr.mxu0 0.0
    %1605 = vmatpush1.msra.mxu0 0.0
    %1606 = vmatprep.subr.mxu0 0.0
    %1607 = vmatpush1.msra.mxu0 0.0
    %1608 = vmatprep.subr.mxu0 0.0
    %1609 = vmatpush1.msra.mxu0 0.0
    %1610 = vmatprep.subr.mxu0 0.0
    %1611 = vmatpush1.msra.mxu0 0.0
    %1612 = vmatprep.subr.mxu0 0.0
    %1613 = vmatpush1.msra.mxu0 0.0
    %1614 = vmatprep.subr.mxu0 0.0
    %1615 = vmatpush1.msra.mxu0 0.0
    %1616 = vmatprep.subr.mxu0 0.0
    %1617 = vmatpush1.msra.mxu0 %v1591
    %1618 = vmatprep.subr.mxu0 0.0
    %1619 = vmatpush1.msra.mxu0 %v1590
    %1620 = vmatprep.subr.mxu0 0.0
    %1621 = vmatpush1.msra.mxu0 %v1589
    %1622 = vmatprep.subr.mxu0 0.0
    %1623 = vmatpush1.msra.mxu0 %v1588
    %1624 = vmatprep.subr.mxu0 0.0
    %1625 = vmatpush2.msra.mxu0 0.0
    %1626 = vmatprep.subr.mxu0 0.0
    %1627 = vmatpush2.msra.mxu0 0.0
    %1628 = vmatprep.subr.mxu0 0.0
    %1629 = vmatpush2.msra.mxu0 0.0
    %1630 = vmatprep.subr.mxu0 0.0
    %1631 = vmatpush2.msra.mxu0 0.0
    %1632 = vmatprep.subr.mxu0 0.0
    %1633 = vmatpush2.msra.mxu0 0.0
    %1634 = vmatprep.subr.mxu0 0.0
    %1635 = vmatpush2.msra.mxu0 0.0
    %1636 = vmatprep.subr.mxu0 0.0
    %1637 = vmatpush2.msra.mxu0 0.0
    %1638 = vmatprep.subr.mxu0 0.0
    %1639 = vmatpush2.msra.mxu0 0.0
    %1640 = vmatprep.subr.mxu0 0.0
    %1641 = vmatpush2.msra.mxu0 0.0
    %1642 = vmatprep.subr.mxu0 0.0
    %1643 = vmatpush2.msra.mxu0 0.0
    %1644 = vmatprep.subr.mxu0 0.0
    %1645 = vmatpush2.msra.mxu0 0.0
    %1646 = vmatprep.subr.mxu0 0.0
    %1647 = vmatpush2.msra.mxu0 0.0
    %1648 = vmatprep.subr.mxu0 0.0
    %1649 = vmatpush2.msra.mxu0 0.0
    %1650 = vmatprep.subr.mxu0 0.0
    %1651 = vmatpush2.msra.mxu0 0.0
    %1652 = vmatprep.subr.mxu0 0.0
    %1653 = vmatpush2.msra.mxu0 0.0
    %1654 = vmatprep.subr.mxu0 0.0
    %1655 = vmatpush2.msra.mxu0 0.0
    %1656 = vmatprep.mubr.f32.mxu0 0.0
    %1657 = vmatmul.mubr.f32.gmra.mxu0 %v1508
    %v1658 = vpop.f32.mrf.mxu0
    %v1659 = vadd.f32 0.0, %v1658
    %v1660 = vpop.f32.mrf.mxu0
    %1661 = vmatprep.mubr.f32.mxu0 0.0
    %1662 = vmatmul.mubr.f32.gmra.mxu0 %v1511
    %v1663 = vpop.f32.mrf.mxu0
    %v1664 = vadd.f32 0.0, %v1663
    %v1665 = vpop.f32.mrf.mxu0
    %1666 = vdwg.mxu0
    %v1667 = vld [vmem:[#allocation2 + $0x1f8] sm:$0xff]
    %v1668 = vld [vmem:[#allocation2 + $0x200] sm:$0xff]
    %v1669 = vld [vmem:[#allocation2 + $0x208] sm:$0xff]
    %v1670 = vld [vmem:[#allocation2 + $0x210] sm:$0xff]
    %1671 = vmatprep.subr.mxu0 0.0
    %1672 = vmatpush1.msra.mxu0 0.0
    %1673 = vmatprep.subr.mxu0 0.0
    %1674 = vmatpush1.msra.mxu0 0.0
    %1675 = vmatprep.subr.mxu0 0.0
    %1676 = vmatpush1.msra.mxu0 0.0
    %1677 = vmatprep.subr.mxu0 0.0
    %1678 = vmatpush1.msra.mxu0 0.0
    %1679 = vmatprep.subr.mxu0 0.0
    %1680 = vmatpush1.msra.mxu0 0.0
    %1681 = vmatprep.subr.mxu0 0.0
    %1682 = vmatpush1.msra.mxu0 0.0
    %1683 = vmatprep.subr.mxu0 0.0
    %1684 = vmatpush1.msra.mxu0 0.0
    %1685 = vmatprep.subr.mxu0 0.0
    %1686 = vmatpush1.msra.mxu0 0.0
    %1687 = vmatprep.subr.mxu0 0.0
    %1688 = vmatpush1.msra.mxu0 0.0
    %1689 = vmatprep.subr.mxu0 0.0
    %1690 = vmatpush1.msra.mxu0 0.0
    %1691 = vmatprep.subr.mxu0 0.0
    %1692 = vmatpush1.msra.mxu0 0.0
    %1693 = vmatprep.subr.mxu0 0.0
    %1694 = vmatpush1.msra.mxu0 0.0
    %1695 = vmatprep.subr.mxu0 0.0
    %1696 = vmatpush1.msra.mxu0 %v1670
    %1697 = vmatprep.subr.mxu0 0.0
    %1698 = vmatpush1.msra.mxu0 %v1669
    %1699 = vmatprep.subr.mxu0 0.0
    %1700 = vmatpush1.msra.mxu0 %v1668
    %1701 = vmatprep.subr.mxu0 0.0
    %1702 = vmatpush1.msra.mxu0 %v1667
    %1703 = vmatprep.subr.mxu0 0.0
    %1704 = vmatpush2.msra.mxu0 0.0
    %1705 = vmatprep.subr.mxu0 0.0
    %1706 = vmatpush2.msra.mxu0 0.0
    %1707 = vmatprep.subr.mxu0 0.0
    %1708 = vmatpush2.msra.mxu0 0.0
    %1709 = vmatprep.subr.mxu0 0.0
    %1710 = vmatpush2.msra.mxu0 0.0
    %1711 = vmatprep.subr.mxu0 0.0
    %1712 = vmatpush2.msra.mxu0 0.0
    %1713 = vmatprep.subr.mxu0 0.0
    %1714 = vmatpush2.msra.mxu0 0.0
    %1715 = vmatprep.subr.mxu0 0.0
    %1716 = vmatpush2.msra.mxu0 0.0
    %1717 = vmatprep.subr.mxu0 0.0
    %1718 = vmatpush2.msra.mxu0 0.0
    %1719 = vmatprep.subr.mxu0 0.0
    %1720 = vmatpush2.msra.mxu0 0.0
    %1721 = vmatprep.subr.mxu0 0.0
    %1722 = vmatpush2.msra.mxu0 0.0
    %1723 = vmatprep.subr.mxu0 0.0
    %1724 = vmatpush2.msra.mxu0 0.0
    %1725 = vmatprep.subr.mxu0 0.0
    %1726 = vmatpush2.msra.mxu0 0.0
    %1727 = vmatprep.subr.mxu0 0.0
    %1728 = vmatpush2.msra.mxu0 0.0
    %1729 = vmatprep.subr.mxu0 0.0
    %1730 = vmatpush2.msra.mxu0 0.0
    %1731 = vmatprep.subr.mxu0 0.0
    %1732 = vmatpush2.msra.mxu0 0.0
    %1733 = vmatprep.subr.mxu0 0.0
    %1734 = vmatpush2.msra.mxu0 0.0
    %1735 = vmatprep.mubr.f32.mxu0 0.0
    %1736 = vmatmul.mubr.f32.gmra.mxu0 %v1508
    %v1737 = vpop.f32.mrf.mxu0
    %v1738 = vadd.f32 0.0, %v1737
    %v1739 = vpop.f32.mrf.mxu0
    %1740 = vmatprep.mubr.f32.mxu0 0.0
    %1741 = vmatmul.mubr.f32.gmra.mxu0 %v1511
    %v1742 = vpop.f32.mrf.mxu0
    %v1743 = vadd.f32 0.0, %v1742
    %v1744 = vpop.f32.mrf.mxu0
    %1745 = vdwg.mxu0
    %v1747 = vsel %vm423, %v1580, 0
    %v1750 = vsel %vm423, %v1585, 0
    %v1753 = vsel %vm423, %v1659, 0
    %v1756 = vsel %vm423, %v1664, 0
    %1758 = vmatprep.subr.mxu0 0.0
    %1759 = vmatpush1.xpose.msra.mxu0 0.0
    %1760 = vmatprep.subr.mxu0 0.0
    %1761 = vmatpush1.xpose.msra.mxu0 0.0
    %1762 = vmatprep.subr.mxu0 0.0
    %1763 = vmatpush1.xpose.msra.mxu0 0.0
    %1764 = vmatprep.subr.mxu0 0.0
    %1765 = vmatpush1.xpose.msra.mxu0 0.0
    %1766 = vmatprep.subr.mxu0 0.0
    %1767 = vmatpush1.xpose.msra.mxu0 0.0
    %1768 = vmatprep.subr.mxu0 0.0
    %1769 = vmatpush1.xpose.msra.mxu0 0.0
    %1770 = vmatprep.subr.mxu0 0.0
    %1771 = vmatpush1.xpose.msra.mxu0 0.0
    %1772 = vmatprep.subr.mxu0 0.0
    %1773 = vmatpush1.xpose.msra.mxu0 0.0
    %1774 = vmatprep.subr.mxu0 0.0
    %1775 = vmatpush1.xpose.msra.mxu0 0.0
    %1776 = vmatprep.subr.mxu0 0.0
    %1777 = vmatpush1.xpose.msra.mxu0 0.0
    %1778 = vmatprep.subr.mxu0 0.0
    %1779 = vmatpush1.xpose.msra.mxu0 0.0
    %1780 = vmatprep.subr.mxu0 0.0
    %1781 = vmatpush1.xpose.msra.mxu0 0.0
    %1782 = vmatprep.subr.mxu0 0.0
    %1783 = vmatpush1.xpose.msra.mxu0 0.0
    %1784 = vmatprep.subr.mxu0 0.0
    %1785 = vmatpush1.xpose.msra.mxu0 0.0
    %1786 = vmatprep.subr.mxu0 0.0
    %1787 = vmatpush1.xpose.msra.mxu0 %v1756
    %1788 = vmatprep.subr.mxu0 0.0
    %1789 = vmatpush1.xpose.msra.mxu0 %v1753
    %1790 = vmatprep.subr.mxu0 0.0
    %1791 = vmatpush2.xpose.msra.mxu0 0.0
    %1792 = vmatprep.subr.mxu0 0.0
    %1793 = vmatpush2.xpose.msra.mxu0 0.0
    %1794 = vmatprep.subr.mxu0 0.0
    %1795 = vmatpush2.xpose.msra.mxu0 0.0
    %1796 = vmatprep.subr.mxu0 0.0
    %1797 = vmatpush2.xpose.msra.mxu0 0.0
    %1798 = vmatprep.subr.mxu0 0.0
    %1799 = vmatpush2.xpose.msra.mxu0 0.0
    %1800 = vmatprep.subr.mxu0 0.0
    %1801 = vmatpush2.xpose.msra.mxu0 0.0
    %1802 = vmatprep.subr.mxu0 0.0
    %1803 = vmatpush2.xpose.msra.mxu0 0.0
    %1804 = vmatprep.subr.mxu0 0.0
    %1805 = vmatpush2.xpose.msra.mxu0 0.0
    %1806 = vmatprep.subr.mxu0 0.0
    %1807 = vmatpush2.xpose.msra.mxu0 0.0
    %1808 = vmatprep.subr.mxu0 0.0
    %1809 = vmatpush2.xpose.msra.mxu0 0.0
    %1810 = vmatprep.subr.mxu0 0.0
    %1811 = vmatpush2.xpose.msra.mxu0 0.0
    %1812 = vmatprep.subr.mxu0 0.0
    %1813 = vmatpush2.xpose.msra.mxu0 0.0
    %1814 = vmatprep.subr.mxu0 0.0
    %1815 = vmatpush2.xpose.msra.mxu0 0.0
    %1816 = vmatprep.subr.mxu0 0.0
    %1817 = vmatpush2.xpose.msra.mxu0 0.0
    %1818 = vmatprep.subr.mxu0 0.0
    %1819 = vmatpush2.xpose.msra.mxu0 0.0
    %1820 = vmatprep.subr.mxu0 0.0
    %1821 = vmatpush2.xpose.msra.mxu0 0.0
    %1822 = vmatprep.mubr.f32.mxu0 0.0
    %1823 = vmatmul.mubr.f32.gmra.mxu0 %v1747
    %v1824 = vpop.f32.mrf.mxu0
    %v1825 = vadd.f32 0.0, %v1824
    %v1826 = vpop.f32.mrf.mxu0
    %1827 = vmatprep.mubr.f32.mxu0 0.0
    %1828 = vmatmul.mubr.f32.gmra.mxu0 %v1750
    %v1829 = vpop.f32.mrf.mxu0
    %v1830 = vadd.f32 0.0, %v1829
    %v1831 = vpop.f32.mrf.mxu0
    %1832 = vdwg.mxu0
    %v1833 = vmul.f32 %v1825, 0.25
    %v1834 = vmul.f32 %v1830, 0.25
    %v1835 = vadd.f32 %v1833, %v177
    %v1836 = vadd.f32 %v1834, %v178
    %v1837 = vsel %vm423, %v1835, -inf
    %1838 = vmax.xlane.f32.xlu0 %v1837
    %v1839 = vpop.xlane.xlu0 %1838
    %v1840 = vsel %vm423, %v1836, -inf
    %1841 = vmax.xlane.f32.xlu0 %v1840
    %v1842 = vpop.xlane.xlu0 %1841
    %v1843 = vsub.f32 %v1835, %v1839
    %v1844 = vsub.f32 %v1836, %v1842
    %v1845 = vmul.f32 %v1843, 1.442695
    %v1846 = vpow.pop %v1845
    %v1847 = vmul.f32 %v1844, 1.442695
    %v1848 = vpow.pop %v1847
    %v1849 = vsel %vm423, %v1846, 0.0
    %1850 = vadd.xlane.f32.xlu0 %v1849
    %v1851 = vpop.xlane.xlu0 %1850
    %v1852 = vsel %vm423, %v1848, 0.0
    %1853 = vadd.xlane.f32.xlu0 %v1852
    %v1854 = vpop.xlane.xlu0 %1853
    %v1855 = vrcp.pop %v1851
    %v1856 = vmul.f32 %v1846, %v1855
    %v1857 = vrcp.pop %v1854
    %v1858 = vmul.f32 %v1848, %v1857
    %v1860 = vsel %vm423, %v1856, 0
    %v1863 = vsel %vm423, %v1858, 0
    %1865 = vmatprep.subr.mxu0 0.0
    %1866 = vmatpush1.msra.mxu0 0.0
    %1867 = vmatprep.subr.mxu0 0.0
    %1868 = vmatpush1.msra.mxu0 0.0
    %1869 = vmatprep.subr.mxu0 0.0
    %1870 = vmatpush1.msra.mxu0 0.0
    %1871 = vmatprep.subr.mxu0 0.0
    %1872 = vmatpush1.msra.mxu0 0.0
    %1873 = vmatprep.subr.mxu0 0.0
    %1874 = vmatpush1.msra.mxu0 0.0
    %1875 = vmatprep.subr.mxu0 0.0
    %1876 = vmatpush1.msra.mxu0 0.0
    %1877 = vmatprep.subr.mxu0 0.0
    %1878 = vmatpush1.msra.mxu0 0.0
    %1879 = vmatprep.subr.mxu0 0.0
    %1880 = vmatpush1.msra.mxu0 0.0
    %1881 = vmatprep.subr.mxu0 0.0
    %1882 = vmatpush1.msra.mxu0 0.0
    %1883 = vmatprep.subr.mxu0 0.0
    %1884 = vmatpush1.msra.mxu0 0.0
    %1885 = vmatprep.subr.mxu0 0.0
    %1886 = vmatpush1.msra.mxu0 0.0
    %1887 = vmatprep.subr.mxu0 0.0
    %1888 = vmatpush1.msra.mxu0 0.0
    %1889 = vmatprep.subr.mxu0 0.0
    %1890 = vmatpush1.msra.mxu0 0.0
    %1891 = vmatprep.subr.mxu0 0.0
    %1892 = vmatpush1.msra.mxu0 0.0
    %1893 = vmatprep.subr.mxu0 0.0
    %1894 = vmatpush1.msra.mxu0 %v1743
    %1895 = vmatprep.subr.mxu0 0.0
    %1896 = vmatpush1.msra.mxu0 %v1738
    %1897 = vmatprep.subr.mxu0 0.0
    %1898 = vmatpush2.msra.mxu0 0.0
    %1899 = vmatprep.subr.mxu0 0.0
    %1900 = vmatpush2.msra.mxu0 0.0
    %1901 = vmatprep.subr.mxu0 0.0
    %1902 = vmatpush2.msra.mxu0 0.0
    %1903 = vmatprep.subr.mxu0 0.0
    %1904 = vmatpush2.msra.mxu0 0.0
    %1905 = vmatprep.subr.mxu0 0.0
    %1906 = vmatpush2.msra.mxu0 0.0
    %1907 = vmatprep.subr.mxu0 0.0
    %1908 = vmatpush2.msra.mxu0 0.0
    %1909 = vmatprep.subr.mxu0 0.0
    %1910 = vmatpush2.msra.mxu0 0.0
    %1911 = vmatprep.subr.mxu0 0.0
    %1912 = vmatpush2.msra.mxu0 0.0
    %1913 = vmatprep.subr.mxu0 0.0
    %1914 = vmatpush2.msra.mxu0 0.0
    %1915 = vmatprep.subr.mxu0 0.0
    %1916 = vmatpush2.msra.mxu0 0.0
    %1917 = vmatprep.subr.mxu0 0.0
    %1918 = vmatpush2.msra.mxu0 0.0
    %1919 = vmatprep.subr.mxu0 0.0
    %1920 = vmatpush2.msra.mxu0 0.0
    %1921 = vmatprep.subr.mxu0 0.0
    %1922 = vmatpush2.msra.mxu0 0.0
    %1923 = vmatprep.subr.mxu0 0.0
    %1924 = vmatpush2.msra.mxu0 0.0
    %1925 = vmatprep.subr.mxu0 0.0
    %1926 = vmatpush2.msra.mxu0 0.0
    %1927 = vmatprep.subr.mxu0 0.0
    %1928 = vmatpush2.msra.mxu0 0.0
    %1929 = vmatprep.mubr.f32.mxu0 0.0
    %1930 = vmatmul.mubr.f32.gmra.mxu0 %v1860
    %v1931 = vpop.f32.mrf.mxu0
    %v1932 = vadd.f32 0.0, %v1931
    %v1933 = vpop.f32.mrf.mxu0
    %1934 = vmatprep.mubr.f32.mxu0 0.0
    %1935 = vmatmul.mubr.f32.gmra.mxu0 %v1863
    %v1936 = vpop.f32.mrf.mxu0
    %v1937 = vadd.f32 0.0, %v1936
    %v1938 = vpop.f32.mrf.mxu0
    %1939 = vdwg.mxu0
    %v1940 = vld [vmem:[#allocation2 + $0x218] sm:$0xff]
    %v1941 = vld [vmem:[#allocation2 + $0x220] sm:$0xff]
    %v1943 = vsel %vm423, %v1932, 0
    %v1946 = vsel %vm423, %v1937, 0
    %1948 = vmatprep.subr.mxu0 0.0
    %1949 = vmatpush1.msra.mxu0 0.0
    %1950 = vmatprep.subr.mxu0 0.0
    %1951 = vmatpush1.msra.mxu0 0.0
    %1952 = vmatprep.subr.mxu0 0.0
    %1953 = vmatpush1.msra.mxu0 0.0
    %1954 = vmatprep.subr.mxu0 0.0
    %1955 = vmatpush1.msra.mxu0 0.0
    %1956 = vmatprep.subr.mxu0 0.0
    %1957 = vmatpush1.msra.mxu0 0.0
    %1958 = vmatprep.subr.mxu0 0.0
    %1959 = vmatpush1.msra.mxu0 0.0
    %1960 = vmatprep.subr.mxu0 0.0
    %1961 = vmatpush1.msra.mxu0 0.0
    %1962 = vmatprep.subr.mxu0 0.0
    %1963 = vmatpush1.msra.mxu0 0.0
    %1964 = vmatprep.subr.mxu0 0.0
    %1965 = vmatpush1.msra.mxu0 0.0
    %1966 = vmatprep.subr.mxu0 0.0
    %1967 = vmatpush1.msra.mxu0 0.0
    %1968 = vmatprep.subr.mxu0 0.0
    %1969 = vmatpush1.msra.mxu0 0.0
    %1970 = vmatprep.subr.mxu0 0.0
    %1971 = vmatpush1.msra.mxu0 0.0
    %1972 = vmatprep.subr.mxu0 0.0
    %1973 = vmatpush1.msra.mxu0 0.0
    %1974 = vmatprep.subr.mxu0 0.0
    %1975 = vmatpush1.msra.mxu0 0.0
    %1976 = vmatprep.subr.mxu0 0.0
    %1977 = vmatpush1.msra.mxu0 %v1941
    %1978 = vmatprep.subr.mxu0 0.0
    %1979 = vmatpush1.msra.mxu0 %v1940
    %1980 = vmatprep.subr.mxu0 0.0
    %1981 = vmatpush2.msra.mxu0 0.0
    %1982 = vmatprep.subr.mxu0 0.0
    %1983 = vmatpush2.msra.mxu0 0.0
    %1984 = vmatprep.subr.mxu0 0.0
    %1985 = vmatpush2.msra.mxu0 0.0
    %1986 = vmatprep.subr.mxu0 0.0
    %1987 = vmatpush2.msra.mxu0 0.0
    %1988 = vmatprep.subr.mxu0 0.0
    %1989 = vmatpush2.msra.mxu0 0.0
    %1990 = vmatprep.subr.mxu0 0.0
    %1991 = vmatpush2.msra.mxu0 0.0
    %1992 = vmatprep.subr.mxu0 0.0
    %1993 = vmatpush2.msra.mxu0 0.0
    %1994 = vmatprep.subr.mxu0 0.0
    %1995 = vmatpush2.msra.mxu0 0.0
    %1996 = vmatprep.subr.mxu0 0.0
    %1997 = vmatpush2.msra.mxu0 0.0
    %1998 = vmatprep.subr.mxu0 0.0
    %1999 = vmatpush2.msra.mxu0 0.0
    %2000 = vmatprep.subr.mxu0 0.0
    %2001 = vmatpush2.msra.mxu0 0.0
    %2002 = vmatprep.subr.mxu0 0.0
    %2003 = vmatpush2.msra.mxu0 0.0
    %2004 = vmatprep.subr.mxu0 0.0
    %2005 = vmatpush2.msra.mxu0 0.0
    %2006 = vmatprep.subr.mxu0 0.0
    %2007 = vmatpush2.msra.mxu0 0.0
    %2008 = vmatprep.subr.mxu0 0.0
    %2009 = vmatpush2.msra.mxu0 0.0
    %2010 = vmatprep.subr.mxu0 0.0
    %2011 = vmatpush2.msra.mxu0 0.0
    %2012 = vmatprep.mubr.f32.mxu0 0.0
    %2013 = vmatmul.mubr.f32.gmra.mxu0 %v1943
    %v2014 = vpop.f32.mrf.mxu0
    %v2015 = vadd.f32 0.0, %v2014
    %v2016 = vpop.f32.mrf.mxu0
    %2017 = vmatprep.mubr.f32.mxu0 0.0
    %2018 = vmatmul.mubr.f32.gmra.mxu0 %v1946
    %v2019 = vpop.f32.mrf.mxu0
    %v2020 = vadd.f32 0.0, %v2019
    %v2021 = vpop.f32.mrf.mxu0
    %2022 = vdwg.mxu0
    %v2023 = vlaneseq
    %v2024 = vshrl.u32 %v2023, 7
    %v2025 = vsub.s32 0, %v2024
    %v2026 = vrot.slane %v1502, %v2025
    %v2027 = vadd.f32 %v2026, %v2015
    %v2028 = vadd.f32 %v2026, %v2020
    %v2029 = vld [vmem:[#allocation2 + $0x228] sm:$0xff]
    %v2030 = vld [vmem:[#allocation2 + $0x230] sm:$0xff]
    %v2031 = vld [vmem:[#allocation2 + $0x238] sm:$0xff]
    %v2032 = vld [vmem:[#allocation2 + $0x240] sm:$0xff]
    %2033 = vmatprep.subr.mxu0 0.0
    %2034 = vmatpush1.msra.mxu0 0.0
    %2035 = vmatprep.subr.mxu0 0.0
    %2036 = vmatpush1.msra.mxu0 0.0
    %2037 = vmatprep.subr.mxu0 0.0
    %2038 = vmatpush1.msra.mxu0 0.0
    %2039 = vmatprep.subr.mxu0 0.0
    %2040 = vmatpush1.msra.mxu0 0.0
    %2041 = vmatprep.subr.mxu0 0.0
    %2042 = vmatpush1.msra.mxu0 0.0
    %2043 = vmatprep.subr.mxu0 0.0
    %2044 = vmatpush1.msra.mxu0 0.0
    %2045 = vmatprep.subr.mxu0 0.0
    %2046 = vmatpush1.msra.mxu0 0.0
    %2047 = vmatprep.subr.mxu0 0.0
    %2048 = vmatpush1.msra.mxu0 0.0
    %2049 = vmatprep.subr.mxu0 0.0
    %2050 = vmatpush1.msra.mxu0 0.0
    %2051 = vmatprep.subr.mxu0 0.0
    %2052 = vmatpush1.msra.mxu0 0.0
    %2053 = vmatprep.subr.mxu0 0.0
    %2054 = vmatpush1.msra.mxu0 0.0
    %2055 = vmatprep.subr.mxu0 0.0
    %2056 = vmatpush1.msra.mxu0 0.0
    %2057 = vmatprep.subr.mxu0 0.0
    %2058 = vmatpush1.msra.mxu0 %v2032
    %2059 = vmatprep.subr.mxu0 0.0
    %2060 = vmatpush1.msra.mxu0 %v2031
    %2061 = vmatprep.subr.mxu0 0.0
    %2062 = vmatpush1.msra.mxu0 %v2030
    %2063 = vmatprep.subr.mxu0 0.0
    %2064 = vmatpush1.msra.mxu0 %v2029
    %2065 = vmatprep.subr.mxu0 0.0
    %2066 = vmatpush2.msra.mxu0 0.0
    %2067 = vmatprep.subr.mxu0 0.0
    %2068 = vmatpush2.msra.mxu0 0.0
    %2069 = vmatprep.subr.mxu0 0.0
    %2070 = vmatpush2.msra.mxu0 0.0
    %2071 = vmatprep.subr.mxu0 0.0
    %2072 = vmatpush2.msra.mxu0 0.0
    %2073 = vmatprep.subr.mxu0 0.0
    %2074 = vmatpush2.msra.mxu0 0.0
    %2075 = vmatprep.subr.mxu0 0.0
    %2076 = vmatpush2.msra.mxu0 0.0
    %2077 = vmatprep.subr.mxu0 0.0
    %2078 = vmatpush2.msra.mxu0 0.0
    %2079 = vmatprep.subr.mxu0 0.0
    %2080 = vmatpush2.msra.mxu0 0.0
    %2081 = vmatprep.subr.mxu0 0.0
    %2082 = vmatpush2.msra.mxu0 0.0
    %2083 = vmatprep.subr.mxu0 0.0
    %2084 = vmatpush2.msra.mxu0 0.0
    %2085 = vmatprep.subr.mxu0 0.0
    %2086 = vmatpush2.msra.mxu0 0.0
    %2087 = vmatprep.subr.mxu0 0.0
    %2088 = vmatpush2.msra.mxu0 0.0
    %2089 = vmatprep.subr.mxu0 0.0
    %2090 = vmatpush2.msra.mxu0 0.0
    %2091 = vmatprep.subr.mxu0 0.0
    %2092 = vmatpush2.msra.mxu0 0.0
    %2093 = vmatprep.subr.mxu0 0.0
    %2094 = vmatpush2.msra.mxu0 0.0
    %2095 = vmatprep.subr.mxu0 0.0
    %2096 = vmatpush2.msra.mxu0 0.0
    %2097 = vmatprep.mubr.f32.mxu0 0.0
    %2098 = vmatmul.mubr.f32.gmra.mxu0 %v1508
    %v2099 = vpop.f32.mrf.mxu0
    %v2100 = vadd.f32 0.0, %v2099
    %v2101 = vpop.f32.mrf.mxu0
    %2102 = vmatprep.mubr.f32.mxu0 0.0
    %2103 = vmatmul.mubr.f32.gmra.mxu0 %v1511
    %v2104 = vpop.f32.mrf.mxu0
    %v2105 = vadd.f32 0.0, %v2104
    %v2106 = vpop.f32.mrf.mxu0
    %2107 = vdwg.mxu0
    %v2108 = vld [vmem:[#allocation2 + $0x248] sm:$0xff]
    %v2109 = vld [vmem:[#allocation2 + $0x250] sm:$0xff]
    %v2110 = vld [vmem:[#allocation2 + $0x258] sm:$0xff]
    %v2111 = vld [vmem:[#allocation2 + $0x260] sm:$0xff]
    %2112 = vmatprep.subr.mxu0 0.0
    %2113 = vmatpush1.msra.mxu0 0.0
    %2114 = vmatprep.subr.mxu0 0.0
    %2115 = vmatpush1.msra.mxu0 0.0
    %2116 = vmatprep.subr.mxu0 0.0
    %2117 = vmatpush1.msra.mxu0 0.0
    %2118 = vmatprep.subr.mxu0 0.0
    %2119 = vmatpush1.msra.mxu0 0.0
    %2120 = vmatprep.subr.mxu0 0.0
    %2121 = vmatpush1.msra.mxu0 0.0
    %2122 = vmatprep.subr.mxu0 0.0
    %2123 = vmatpush1.msra.mxu0 0.0
    %2124 = vmatprep.subr.mxu0 0.0
    %2125 = vmatpush1.msra.mxu0 0.0
    %2126 = vmatprep.subr.mxu0 0.0
    %2127 = vmatpush1.msra.mxu0 0.0
    %2128 = vmatprep.subr.mxu0 0.0
    %2129 = vmatpush1.msra.mxu0 0.0
    %2130 = vmatprep.subr.mxu0 0.0
    %2131 = vmatpush1.msra.mxu0 0.0
    %2132 = vmatprep.subr.mxu0 0.0
    %2133 = vmatpush1.msra.mxu0 0.0
    %2134 = vmatprep.subr.mxu0 0.0
    %2135 = vmatpush1.msra.mxu0 0.0
    %2136 = vmatprep.subr.mxu0 0.0
    %2137 = vmatpush1.msra.mxu0 %v2111
    %2138 = vmatprep.subr.mxu0 0.0
    %2139 = vmatpush1.msra.mxu0 %v2110
    %2140 = vmatprep.subr.mxu0 0.0
    %2141 = vmatpush1.msra.mxu0 %v2109
    %2142 = vmatprep.subr.mxu0 0.0
    %2143 = vmatpush1.msra.mxu0 %v2108
    %2144 = vmatprep.subr.mxu0 0.0
    %2145 = vmatpush2.msra.mxu0 0.0
    %2146 = vmatprep.subr.mxu0 0.0
    %2147 = vmatpush2.msra.mxu0 0.0
    %2148 = vmatprep.subr.mxu0 0.0
    %2149 = vmatpush2.msra.mxu0 0.0
    %2150 = vmatprep.subr.mxu0 0.0
    %2151 = vmatpush2.msra.mxu0 0.0
    %2152 = vmatprep.subr.mxu0 0.0
    %2153 = vmatpush2.msra.mxu0 0.0
    %2154 = vmatprep.subr.mxu0 0.0
    %2155 = vmatpush2.msra.mxu0 0.0
    %2156 = vmatprep.subr.mxu0 0.0
    %2157 = vmatpush2.msra.mxu0 0.0
    %2158 = vmatprep.subr.mxu0 0.0
    %2159 = vmatpush2.msra.mxu0 0.0
    %2160 = vmatprep.subr.mxu0 0.0
    %2161 = vmatpush2.msra.mxu0 0.0
    %2162 = vmatprep.subr.mxu0 0.0
    %2163 = vmatpush2.msra.mxu0 0.0
    %2164 = vmatprep.subr.mxu0 0.0
    %2165 = vmatpush2.msra.mxu0 0.0
    %2166 = vmatprep.subr.mxu0 0.0
    %2167 = vmatpush2.msra.mxu0 0.0
    %2168 = vmatprep.subr.mxu0 0.0
    %2169 = vmatpush2.msra.mxu0 0.0
    %2170 = vmatprep.subr.mxu0 0.0
    %2171 = vmatpush2.msra.mxu0 0.0
    %2172 = vmatprep.subr.mxu0 0.0
    %2173 = vmatpush2.msra.mxu0 0.0
    %2174 = vmatprep.subr.mxu0 0.0
    %2175 = vmatpush2.msra.mxu0 0.0
    %2176 = vmatprep.mubr.f32.mxu0 0.0
    %2177 = vmatmul.mubr.f32.gmra.mxu0 %v1508
    %v2178 = vpop.f32.mrf.mxu0
    %v2179 = vadd.f32 0.0, %v2178
    %v2180 = vpop.f32.mrf.mxu0
    %2181 = vmatprep.mubr.f32.mxu0 0.0
    %2182 = vmatmul.mubr.f32.gmra.mxu0 %v1511
    %v2183 = vpop.f32.mrf.mxu0
    %v2184 = vadd.f32 0.0, %v2183
    %v2185 = vpop.f32.mrf.mxu0
    %2186 = vdwg.mxu0
    %v2187 = vld [vmem:[#allocation2 + $0x268] sm:$0xff]
    %v2188 = vld [vmem:[#allocation2 + $0x270] sm:$0xff]
    %v2189 = vld [vmem:[#allocation2 + $0x278] sm:$0xff]
    %v2190 = vld [vmem:[#allocation2 + $0x280] sm:$0xff]
    %2191 = vmatprep.subr.mxu0 0.0
    %2192 = vmatpush1.msra.mxu0 0.0
    %2193 = vmatprep.subr.mxu0 0.0
    %2194 = vmatpush1.msra.mxu0 0.0
    %2195 = vmatprep.subr.mxu0 0.0
    %2196 = vmatpush1.msra.mxu0 0.0
    %2197 = vmatprep.subr.mxu0 0.0
    %2198 = vmatpush1.msra.mxu0 0.0
    %2199 = vmatprep.subr.mxu0 0.0
    %2200 = vmatpush1.msra.mxu0 0.0
    %2201 = vmatprep.subr.mxu0 0.0
    %2202 = vmatpush1.msra.mxu0 0.0
    %2203 = vmatprep.subr.mxu0 0.0
    %2204 = vmatpush1.msra.mxu0 0.0
    %2205 = vmatprep.subr.mxu0 0.0
    %2206 = vmatpush1.msra.mxu0 0.0
    %2207 = vmatprep.subr.mxu0 0.0
    %2208 = vmatpush1.msra.mxu0 0.0
    %2209 = vmatprep.subr.mxu0 0.0
    %2210 = vmatpush1.msra.mxu0 0.0
    %2211 = vmatprep.subr.mxu0 0.0
    %2212 = vmatpush1.msra.mxu0 0.0
    %2213 = vmatprep.subr.mxu0 0.0
    %2214 = vmatpush1.msra.mxu0 0.0
    %2215 = vmatprep.subr.mxu0 0.0
    %2216 = vmatpush1.msra.mxu0 %v2190
    %2217 = vmatprep.subr.mxu0 0.0
    %2218 = vmatpush1.msra.mxu0 %v2189
    %2219 = vmatprep.subr.mxu0 0.0
    %2220 = vmatpush1.msra.mxu0 %v2188
    %2221 = vmatprep.subr.mxu0 0.0
    %2222 = vmatpush1.msra.mxu0 %v2187
    %2223 = vmatprep.subr.mxu0 0.0
    %2224 = vmatpush2.msra.mxu0 0.0
    %2225 = vmatprep.subr.mxu0 0.0
    %2226 = vmatpush2.msra.mxu0 0.0
    %2227 = vmatprep.subr.mxu0 0.0
    %2228 = vmatpush2.msra.mxu0 0.0
    %2229 = vmatprep.subr.mxu0 0.0
    %2230 = vmatpush2.msra.mxu0 0.0
    %2231 = vmatprep.subr.mxu0 0.0
    %2232 = vmatpush2.msra.mxu0 0.0
    %2233 = vmatprep.subr.mxu0 0.0
    %2234 = vmatpush2.msra.mxu0 0.0
    %2235 = vmatprep.subr.mxu0 0.0
    %2236 = vmatpush2.msra.mxu0 0.0
    %2237 = vmatprep.subr.mxu0 0.0
    %2238 = vmatpush2.msra.mxu0 0.0
    %2239 = vmatprep.subr.mxu0 0.0
    %2240 = vmatpush2.msra.mxu0 0.0
    %2241 = vmatprep.subr.mxu0 0.0
    %2242 = vmatpush2.msra.mxu0 0.0
    %2243 = vmatprep.subr.mxu0 0.0
    %2244 = vmatpush2.msra.mxu0 0.0
    %2245 = vmatprep.subr.mxu0 0.0
    %2246 = vmatpush2.msra.mxu0 0.0
    %2247 = vmatprep.subr.mxu0 0.0
    %2248 = vmatpush2.msra.mxu0 0.0
    %2249 = vmatprep.subr.mxu0 0.0
    %2250 = vmatpush2.msra.mxu0 0.0
    %2251 = vmatprep.subr.mxu0 0.0
    %2252 = vmatpush2.msra.mxu0 0.0
    %2253 = vmatprep.subr.mxu0 0.0
    %2254 = vmatpush2.msra.mxu0 0.0
    %2255 = vmatprep.mubr.f32.mxu0 0.0
    %2256 = vmatmul.mubr.f32.gmra.mxu0 %v1508
    %v2257 = vpop.f32.mrf.mxu0
    %v2258 = vadd.f32 0.0, %v2257
    %v2259 = vpop.f32.mrf.mxu0
    %2260 = vmatprep.mubr.f32.mxu0 0.0
    %2261 = vmatmul.mubr.f32.gmra.mxu0 %v1511
    %v2262 = vpop.f32.mrf.mxu0
    %v2263 = vadd.f32 0.0, %v2262
    %v2264 = vpop.f32.mrf.mxu0
    %2265 = vdwg.mxu0
    %v2267 = vsel %vm423, %v2100, 0
    %v2270 = vsel %vm423, %v2105, 0
    %v2273 = vsel %vm423, %v2179, 0
    %v2276 = vsel %vm423, %v2184, 0
    %2278 = vmatprep.subr.mxu0 0.0
    %2279 = vmatpush1.xpose.msra.mxu0 0.0
    %2280 = vmatprep.subr.mxu0 0.0
    %2281 = vmatpush1.xpose.msra.mxu0 0.0
    %2282 = vmatprep.subr.mxu0 0.0
    %2283 = vmatpush1.xpose.msra.mxu0 0.0
    %2284 = vmatprep.subr.mxu0 0.0
    %2285 = vmatpush1.xpose.msra.mxu0 0.0
    %2286 = vmatprep.subr.mxu0 0.0
    %2287 = vmatpush1.xpose.msra.mxu0 0.0
    %2288 = vmatprep.subr.mxu0 0.0
    %2289 = vmatpush1.xpose.msra.mxu0 0.0
    %2290 = vmatprep.subr.mxu0 0.0
    %2291 = vmatpush1.xpose.msra.mxu0 0.0
    %2292 = vmatprep.subr.mxu0 0.0
    %2293 = vmatpush1.xpose.msra.mxu0 0.0
    %2294 = vmatprep.subr.mxu0 0.0
    %2295 = vmatpush1.xpose.msra.mxu0 0.0
    %2296 = vmatprep.subr.mxu0 0.0
    %2297 = vmatpush1.xpose.msra.mxu0 0.0
    %2298 = vmatprep.subr.mxu0 0.0
    %2299 = vmatpush1.xpose.msra.mxu0 0.0
    %2300 = vmatprep.subr.mxu0 0.0
    %2301 = vmatpush1.xpose.msra.mxu0 0.0
    %2302 = vmatprep.subr.mxu0 0.0
    %2303 = vmatpush1.xpose.msra.mxu0 0.0
    %2304 = vmatprep.subr.mxu0 0.0
    %2305 = vmatpush1.xpose.msra.mxu0 0.0
    %2306 = vmatprep.subr.mxu0 0.0
    %2307 = vmatpush1.xpose.msra.mxu0 %v2276
    %2308 = vmatprep.subr.mxu0 0.0
    %2309 = vmatpush1.xpose.msra.mxu0 %v2273
    %2310 = vmatprep.subr.mxu0 0.0
    %2311 = vmatpush2.xpose.msra.mxu0 0.0
    %2312 = vmatprep.subr.mxu0 0.0
    %2313 = vmatpush2.xpose.msra.mxu0 0.0
    %2314 = vmatprep.subr.mxu0 0.0
    %2315 = vmatpush2.xpose.msra.mxu0 0.0
    %2316 = vmatprep.subr.mxu0 0.0
    %2317 = vmatpush2.xpose.msra.mxu0 0.0
    %2318 = vmatprep.subr.mxu0 0.0
    %2319 = vmatpush2.xpose.msra.mxu0 0.0
    %2320 = vmatprep.subr.mxu0 0.0
    %2321 = vmatpush2.xpose.msra.mxu0 0.0
    %2322 = vmatprep.subr.mxu0 0.0
    %2323 = vmatpush2.xpose.msra.mxu0 0.0
    %2324 = vmatprep.subr.mxu0 0.0
    %2325 = vmatpush2.xpose.msra.mxu0 0.0
    %2326 = vmatprep.subr.mxu0 0.0
    %2327 = vmatpush2.xpose.msra.mxu0 0.0
    %2328 = vmatprep.subr.mxu0 0.0
    %2329 = vmatpush2.xpose.msra.mxu0 0.0
    %2330 = vmatprep.subr.mxu0 0.0
    %2331 = vmatpush2.xpose.msra.mxu0 0.0
    %2332 = vmatprep.subr.mxu0 0.0
    %2333 = vmatpush2.xpose.msra.mxu0 0.0
    %2334 = vmatprep.subr.mxu0 0.0
    %2335 = vmatpush2.xpose.msra.mxu0 0.0
    %2336 = vmatprep.subr.mxu0 0.0
    %2337 = vmatpush2.xpose.msra.mxu0 0.0
    %2338 = vmatprep.subr.mxu0 0.0
    %2339 = vmatpush2.xpose.msra.mxu0 0.0
    %2340 = vmatprep.subr.mxu0 0.0
    %2341 = vmatpush2.xpose.msra.mxu0 0.0
    %2342 = vmatprep.mubr.f32.mxu0 0.0
    %2343 = vmatmul.mubr.f32.gmra.mxu0 %v2267
    %v2344 = vpop.f32.mrf.mxu0
    %v2345 = vadd.f32 0.0, %v2344
    %v2346 = vpop.f32.mrf.mxu0
    %2347 = vmatprep.mubr.f32.mxu0 0.0
    %2348 = vmatmul.mubr.f32.gmra.mxu0 %v2270
    %v2349 = vpop.f32.mrf.mxu0
    %v2350 = vadd.f32 0.0, %v2349
    %v2351 = vpop.f32.mrf.mxu0
    %2352 = vdwg.mxu0
    %v2353 = vmul.f32 %v2345, 0.25
    %v2354 = vmul.f32 %v2350, 0.25
    %v2355 = vadd.f32 %v2353, %v177
    %v2356 = vadd.f32 %v2354, %v178
    %v2357 = vsel %vm423, %v2355, -inf
    %2358 = vmax.xlane.f32.xlu0 %v2357
    %v2359 = vpop.xlane.xlu0 %2358
    %v2360 = vsel %vm423, %v2356, -inf
    %2361 = vmax.xlane.f32.xlu0 %v2360
    %v2362 = vpop.xlane.xlu0 %2361
    %v2363 = vsub.f32 %v2355, %v2359
    %v2364 = vsub.f32 %v2356, %v2362
    %v2365 = vmul.f32 %v2363, 1.442695
    %v2366 = vpow.pop %v2365
    %v2367 = vmul.f32 %v2364, 1.442695
    %v2368 = vpow.pop %v2367
    %v2369 = vsel %vm423, %v2366, 0.0
    %2370 = vadd.xlane.f32.xlu0 %v2369
    %v2371 = vpop.xlane.xlu0 %2370
    %v2372 = vsel %vm423, %v2368, 0.0
    %2373 = vadd.xlane.f32.xlu0 %v2372
    %v2374 = vpop.xlane.xlu0 %2373
    %v2375 = vrcp.pop %v2371
    %v2376 = vmul.f32 %v2366, %v2375
    %v2377 = vrcp.pop %v2374
    %v2378 = vmul.f32 %v2368, %v2377
    %v2380 = vsel %vm423, %v2376, 0
    %v2383 = vsel %vm423, %v2378, 0
    %2385 = vmatprep.subr.mxu0 0.0
    %2386 = vmatpush1.msra.mxu0 0.0
    %2387 = vmatprep.subr.mxu0 0.0
    %2388 = vmatpush1.msra.mxu0 0.0
    %2389 = vmatprep.subr.mxu0 0.0
    %2390 = vmatpush1.msra.mxu0 0.0
    %2391 = vmatprep.subr.mxu0 0.0
    %2392 = vmatpush1.msra.mxu0 0.0
    %2393 = vmatprep.subr.mxu0 0.0
    %2394 = vmatpush1.msra.mxu0 0.0
    %2395 = vmatprep.subr.mxu0 0.0
    %2396 = vmatpush1.msra.mxu0 0.0
    %2397 = vmatprep.subr.mxu0 0.0
    %2398 = vmatpush1.msra.mxu0 0.0
    %2399 = vmatprep.subr.mxu0 0.0
    %2400 = vmatpush1.msra.mxu0 0.0
    %2401 = vmatprep.subr.mxu0 0.0
    %2402 = vmatpush1.msra.mxu0 0.0
    %2403 = vmatprep.subr.mxu0 0.0
    %2404 = vmatpush1.msra.mxu0 0.0
    %2405 = vmatprep.subr.mxu0 0.0
    %2406 = vmatpush1.msra.mxu0 0.0
    %2407 = vmatprep.subr.mxu0 0.0
    %2408 = vmatpush1.msra.mxu0 0.0
    %2409 = vmatprep.subr.mxu0 0.0
    %2410 = vmatpush1.msra.mxu0 0.0
    %2411 = vmatprep.subr.mxu0 0.0
    %2412 = vmatpush1.msra.mxu0 0.0
    %2413 = vmatprep.subr.mxu0 0.0
    %2414 = vmatpush1.msra.mxu0 %v2263
    %2415 = vmatprep.subr.mxu0 0.0
    %2416 = vmatpush1.msra.mxu0 %v2258
    %2417 = vmatprep.subr.mxu0 0.0
    %2418 = vmatpush2.msra.mxu0 0.0
    %2419 = vmatprep.subr.mxu0 0.0
    %2420 = vmatpush2.msra.mxu0 0.0
    %2421 = vmatprep.subr.mxu0 0.0
    %2422 = vmatpush2.msra.mxu0 0.0
    %2423 = vmatprep.subr.mxu0 0.0
    %2424 = vmatpush2.msra.mxu0 0.0
    %2425 = vmatprep.subr.mxu0 0.0
    %2426 = vmatpush2.msra.mxu0 0.0
    %2427 = vmatprep.subr.mxu0 0.0
    %2428 = vmatpush2.msra.mxu0 0.0
    %2429 = vmatprep.subr.mxu0 0.0
    %2430 = vmatpush2.msra.mxu0 0.0
    %2431 = vmatprep.subr.mxu0 0.0
    %2432 = vmatpush2.msra.mxu0 0.0
    %2433 = vmatprep.subr.mxu0 0.0
    %2434 = vmatpush2.msra.mxu0 0.0
    %2435 = vmatprep.subr.mxu0 0.0
    %2436 = vmatpush2.msra.mxu0 0.0
    %2437 = vmatprep.subr.mxu0 0.0
    %2438 = vmatpush2.msra.mxu0 0.0
    %2439 = vmatprep.subr.mxu0 0.0
    %2440 = vmatpush2.msra.mxu0 0.0
    %2441 = vmatprep.subr.mxu0 0.0
    %2442 = vmatpush2.msra.mxu0 0.0
    %2443 = vmatprep.subr.mxu0 0.0
    %2444 = vmatpush2.msra.mxu0 0.0
    %2445 = vmatprep.subr.mxu0 0.0
    %2446 = vmatpush2.msra.mxu0 0.0
    %2447 = vmatprep.subr.mxu0 0.0
    %2448 = vmatpush2.msra.mxu0 0.0
    %2449 = vmatprep.mubr.f32.mxu0 0.0
    %2450 = vmatmul.mubr.f32.gmra.mxu0 %v2380
    %v2451 = vpop.f32.mrf.mxu0
    %v2452 = vadd.f32 0.0, %v2451
    %v2453 = vpop.f32.mrf.mxu0
    %2454 = vmatprep.mubr.f32.mxu0 0.0
    %2455 = vmatmul.mubr.f32.gmra.mxu0 %v2383
    %v2456 = vpop.f32.mrf.mxu0
    %v2457 = vadd.f32 0.0, %v2456
    %v2458 = vpop.f32.mrf.mxu0
    %2459 = vdwg.mxu0
    %v2460 = vld [vmem:[#allocation2 + $0x288] sm:$0xff]
    %v2461 = vld [vmem:[#allocation2 + $0x290] sm:$0xff]
    %v2463 = vsel %vm423, %v2452, 0
    %v2466 = vsel %vm423, %v2457, 0
    %2468 = vmatprep.subr.mxu0 0.0
    %2469 = vmatpush1.msra.mxu0 0.0
    %2470 = vmatprep.subr.mxu0 0.0
    %2471 = vmatpush1.msra.mxu0 0.0
    %2472 = vmatprep.subr.mxu0 0.0
    %2473 = vmatpush1.msra.mxu0 0.0
    %2474 = vmatprep.subr.mxu0 0.0
    %2475 = vmatpush1.msra.mxu0 0.0
    %2476 = vmatprep.subr.mxu0 0.0
    %2477 = vmatpush1.msra.mxu0 0.0
    %2478 = vmatprep.subr.mxu0 0.0
    %2479 = vmatpush1.msra.mxu0 0.0
    %2480 = vmatprep.subr.mxu0 0.0
    %2481 = vmatpush1.msra.mxu0 0.0
    %2482 = vmatprep.subr.mxu0 0.0
    %2483 = vmatpush1.msra.mxu0 0.0
    %2484 = vmatprep.subr.mxu0 0.0
    %2485 = vmatpush1.msra.mxu0 0.0
    %2486 = vmatprep.subr.mxu0 0.0
    %2487 = vmatpush1.msra.mxu0 0.0
    %2488 = vmatprep.subr.mxu0 0.0
    %2489 = vmatpush1.msra.mxu0 0.0
    %2490 = vmatprep.subr.mxu0 0.0
    %2491 = vmatpush1.msra.mxu0 0.0
    %2492 = vmatprep.subr.mxu0 0.0
    %2493 = vmatpush1.msra.mxu0 0.0
    %2494 = vmatprep.subr.mxu0 0.0
    %2495 = vmatpush1.msra.mxu0 0.0
    %2496 = vmatprep.subr.mxu0 0.0
    %2497 = vmatpush1.msra.mxu0 %v2461
    %2498 = vmatprep.subr.mxu0 0.0
    %2499 = vmatpush1.msra.mxu0 %v2460
    %2500 = vmatprep.subr.mxu0 0.0
    %2501 = vmatpush2.msra.mxu0 0.0
    %2502 = vmatprep.subr.mxu0 0.0
    %2503 = vmatpush2.msra.mxu0 0.0
    %2504 = vmatprep.subr.mxu0 0.0
    %2505 = vmatpush2.msra.mxu0 0.0
    %2506 = vmatprep.subr.mxu0 0.0
    %2507 = vmatpush2.msra.mxu0 0.0
    %2508 = vmatprep.subr.mxu0 0.0
    %2509 = vmatpush2.msra.mxu0 0.0
    %2510 = vmatprep.subr.mxu0 0.0
    %2511 = vmatpush2.msra.mxu0 0.0
    %2512 = vmatprep.subr.mxu0 0.0
    %2513 = vmatpush2.msra.mxu0 0.0
    %2514 = vmatprep.subr.mxu0 0.0
    %2515 = vmatpush2.msra.mxu0 0.0
    %2516 = vmatprep.subr.mxu0 0.0
    %2517 = vmatpush2.msra.mxu0 0.0
    %2518 = vmatprep.subr.mxu0 0.0
    %2519 = vmatpush2.msra.mxu0 0.0
    %2520 = vmatprep.subr.mxu0 0.0
    %2521 = vmatpush2.msra.mxu0 0.0
    %2522 = vmatprep.subr.mxu0 0.0
    %2523 = vmatpush2.msra.mxu0 0.0
    %2524 = vmatprep.subr.mxu0 0.0
    %2525 = vmatpush2.msra.mxu0 0.0
    %2526 = vmatprep.subr.mxu0 0.0
    %2527 = vmatpush2.msra.mxu0 0.0
    %2528 = vmatprep.subr.mxu0 0.0
    %2529 = vmatpush2.msra.mxu0 0.0
    %2530 = vmatprep.subr.mxu0 0.0
    %2531 = vmatpush2.msra.mxu0 0.0
    %2532 = vmatprep.mubr.f32.mxu0 0.0
    %2533 = vmatmul.mubr.f32.gmra.mxu0 %v2463
    %v2534 = vpop.f32.mrf.mxu0
    %v2535 = vadd.f32 0.0, %v2534
    %v2536 = vpop.f32.mrf.mxu0
    %2537 = vmatprep.mubr.f32.mxu0 0.0
    %2538 = vmatmul.mubr.f32.gmra.mxu0 %v2466
    %v2539 = vpop.f32.mrf.mxu0
    %v2540 = vadd.f32 0.0, %v2539
    %v2541 = vpop.f32.mrf.mxu0
    %2542 = vdwg.mxu0
    %v2543 = vadd.f32 %v2027, %v2535
    %v2544 = vadd.f32 %v2028, %v2540
    %v2545 = vadd.f32 %v1500, %v2543
    %v2546 = vadd.f32 %v1501, %v2544
    %v2547 = vld [vmem:[#allocation2 + $0x2a0] sm:$0x1]
    %v2548 = vld [vmem:[#allocation2 + $0x2a8] sm:$0x1]
    %v2549 = vsel %vm137, %v2545, 0.0
    %2550 = vadd.xlane.f32.xlu0 %v2549
    %v2551 = vpop.xlane.xlu0 %2550
    %v2552 = vsel %vm137, %v2546, 0.0
    %2553 = vadd.xlane.f32.xlu0 %v2552
    %v2554 = vpop.xlane.xlu0 %2553
    %v2555 = vmul.f32 %v2551, %v144
    %v2556 = vmul.f32 %v2554, %v144
    %v2557 = vsub.f32 %v2545, %v2555
    %v2558 = vsub.f32 %v2546, %v2556
    %v2559 = vmul.f32 %v2557, %v2557
    %v2560 = vmul.f32 %v2558, %v2558
    %v2561 = vsel %vm137, %v2559, 0.0
    %2562 = vadd.xlane.f32.xlu0 %v2561
    %v2563 = vpop.xlane.xlu0 %2562
    %v2564 = vsel %vm137, %v2560, 0.0
    %2565 = vadd.xlane.f32.xlu0 %v2564
    %v2566 = vpop.xlane.xlu0 %2565
    %v2567 = vmul.f32 %v2563, %v144
    %v2568 = vmul.f32 %v2566, %v144
    %v2569 = vadd.f32 %v2567, 1e-05
    %v2570 = vadd.f32 %v2568, 1e-05
    %v2571 = vrsqrt.pop %v2569
    %v2572 = vrsqrt.pop %v2570
    %v2573 = vmul.f32 %v2557, %v2571
    %v2574 = vmul.f32 %v2558, %v2572
    %v2575 = vlaneseq
    %v2576 = vshrl.u32 %v2575, 7
    %v2577 = vsub.s32 0, %v2576
    %v2578 = vrot.slane %v2547, %v2577
    %v2579 = vmul.f32 %v2573, %v2578
    %v2580 = vmul.f32 %v2574, %v2578
    %v2581 = vlaneseq
    %v2582 = vshrl.u32 %v2581, 7
    %v2583 = vsub.s32 0, %v2582
    %v2584 = vrot.slane %v2548, %v2583
    %v2585 = vadd.f32 %v2579, %v2584
    %v2586 = vadd.f32 %v2580, %v2584
    %v2587 = vld [vmem:[#allocation2 + $0x2b0] sm:$0xff]
    %v2588 = vld [vmem:[#allocation2 + $0x2b8] sm:$0xff]
    %v2589 = vld [vmem:[#allocation2 + $0x2c0] sm:$0xff]
    %v2590 = vld [vmem:[#allocation2 + $0x2c8] sm:$0xff]
    %v2591 = vld [vmem:[#allocation2 + $0x2d0] sm:$0x1]
    %v2592 = vlaneseq
    %v2593 = vshrl.u32 %v2592, 7
    %v2594 = vsub.s32 0, %v2593
    %v2595 = vrot.slane %v2591, %v2594
    %v2597 = vsel %vm137, %v2585, 0
    %v2600 = vsel %vm137, %v2586, 0
    %2602 = vmatprep.subr.mxu0 0.0
    %2603 = vmatpush1.msra.mxu0 0.0
    %2604 = vmatprep.subr.mxu0 0.0
    %2605 = vmatpush1.msra.mxu0 0.0
    %2606 = vmatprep.subr.mxu0 0.0
    %2607 = vmatpush1.msra.mxu0 0.0
    %2608 = vmatprep.subr.mxu0 0.0
    %2609 = vmatpush1.msra.mxu0 0.0
    %2610 = vmatprep.subr.mxu0 0.0
    %2611 = vmatpush1.msra.mxu0 0.0
    %2612 = vmatprep.subr.mxu0 0.0
    %2613 = vmatpush1.msra.mxu0 0.0
    %2614 = vmatprep.subr.mxu0 0.0
    %2615 = vmatpush1.msra.mxu0 0.0
    %2616 = vmatprep.subr.mxu0 0.0
    %2617 = vmatpush1.msra.mxu0 0.0
    %2618 = vmatprep.subr.mxu0 0.0
    %2619 = vmatpush1.msra.mxu0 0.0
    %2620 = vmatprep.subr.mxu0 0.0
    %2621 = vmatpush1.msra.mxu0 0.0
    %2622 = vmatprep.subr.mxu0 0.0
    %2623 = vmatpush1.msra.mxu0 0.0
    %2624 = vmatprep.subr.mxu0 0.0
    %2625 = vmatpush1.msra.mxu0 0.0
    %2626 = vmatprep.subr.mxu0 0.0
    %2627 = vmatpush1.msra.mxu0 %v2590
    %2628 = vmatprep.subr.mxu0 0.0
    %2629 = vmatpush1.msra.mxu0 %v2589
    %2630 = vmatprep.subr.mxu0 0.0
    %2631 = vmatpush1.msra.mxu0 %v2588
    %2632 = vmatprep.subr.mxu0 0.0
    %2633 = vmatpush1.msra.mxu0 %v2587
    %2634 = vmatprep.subr.mxu0 0.0
    %2635 = vmatpush2.msra.mxu0 0.0
    %2636 = vmatprep.subr.mxu0 0.0
    %2637 = vmatpush2.msra.mxu0 0.0
    %2638 = vmatprep.subr.mxu0 0.0
    %2639 = vmatpush2.msra.mxu0 0.0
    %2640 = vmatprep.subr.mxu0 0.0
    %2641 = vmatpush2.msra.mxu0 0.0
    %2642 = vmatprep.subr.mxu0 0.0
    %2643 = vmatpush2.msra.mxu0 0.0
    %2644 = vmatprep.subr.mxu0 0.0
    %2645 = vmatpush2.msra.mxu0 0.0
    %2646 = vmatprep.subr.mxu0 0.0
    %2647 = vmatpush2.msra.mxu0 0.0
    %2648 = vmatprep.subr.mxu0 0.0
    %2649 = vmatpush2.msra.mxu0 0.0
    %2650 = vmatprep.subr.mxu0 0.0
    %2651 = vmatpush2.msra.mxu0 0.0
    %2652 = vmatprep.subr.mxu0 0.0
    %2653 = vmatpush2.msra.mxu0 0.0
    %2654 = vmatprep.subr.mxu0 0.0
    %2655 = vmatpush2.msra.mxu0 0.0
    %2656 = vmatprep.subr.mxu0 0.0
    %2657 = vmatpush2.msra.mxu0 0.0
    %2658 = vmatprep.subr.mxu0 0.0
    %2659 = vmatpush2.msra.mxu0 0.0
    %2660 = vmatprep.subr.mxu0 0.0
    %2661 = vmatpush2.msra.mxu0 0.0
    %2662 = vmatprep.subr.mxu0 0.0
    %2663 = vmatpush2.msra.mxu0 0.0
    %2664 = vmatprep.subr.mxu0 0.0
    %2665 = vmatpush2.msra.mxu0 0.0
    %2666 = vmatprep.mubr.f32.mxu0 0.0
    %2667 = vmatmul.mubr.f32.gmra.mxu0 %v2597
    %v2668 = vpop.f32.mrf.mxu0
    %v2669 = vadd.f32 %v2595, %v2668
    %v2670 = vpop.f32.mrf.mxu0
    %2671 = vmatprep.mubr.f32.mxu0 0.0
    %2672 = vmatmul.mubr.f32.gmra.mxu0 %v2600
    %v2673 = vpop.f32.mrf.mxu0
    %v2674 = vadd.f32 %v2595, %v2673
    %v2675 = vpop.f32.mrf.mxu0
    %2676 = vdwg.mxu0
    %v2677 = vmul.f32 %v2669, 0.5
    %v2678 = vmul.f32 %v2674, 0.5
    %v2679 = vmul.f32 %v2669, 0.70710677
    %v2680 = vmul.f32 %v2674, 0.70710677
    %v2681 = verf.f32.pop %v2679
    %v2682 = verf.f32.pop %v2680
    %v2683 = vadd.f32 %v2681, 1.0
    %v2684 = vadd.f32 %v2682, 1.0
    %v2685 = vmul.f32 %v2677, %v2683
    %v2686 = vmul.f32 %v2678, %v2684
    %v2687 = vld [vmem:[#allocation2 + $0x2d8] sm:$0xff]
    %v2688 = vld [vmem:[#allocation2 + $0x2e0] sm:$0xff]
    %v2689 = vld [vmem:[#allocation2 + $0x2e8] sm:$0xff]
    %v2690 = vld [vmem:[#allocation2 + $0x2f0] sm:$0xff]
    %v2691 = vld [vmem:[#allocation2 + $0x2f8] sm:$0xff]
    %v2692 = vld [vmem:[#allocation2 + $0x300] sm:$0xff]
    %v2693 = vld [vmem:[#allocation2 + $0x308] sm:$0xff]
    %v2694 = vld [vmem:[#allocation2 + $0x310] sm:$0xff]
    %v2695 = vld [vmem:[#allocation2 + $0x318] sm:$0x1]
    %v2696 = vlaneseq
    %v2697 = vshrl.u32 %v2696, 7
    %v2698 = vsub.s32 0, %v2697
    %v2699 = vrot.slane %v2695, %v2698
    %v2701 = vsel %vm1378, %v2685, 0
    %v2704 = vsel %vm1378, %v2686, 0
    %2706 = vmatprep.subr.mxu0 0.0
    %2707 = vmatpush1.msra.mxu0 0.0
    %2708 = vmatprep.subr.mxu0 0.0
    %2709 = vmatpush1.msra.mxu0 0.0
    %2710 = vmatprep.subr.mxu0 0.0
    %2711 = vmatpush1.msra.mxu0 0.0
    %2712 = vmatprep.subr.mxu0 0.0
    %2713 = vmatpush1.msra.mxu0 0.0
    %2714 = vmatprep.subr.mxu0 0.0
    %2715 = vmatpush1.msra.mxu0 0.0
    %2716 = vmatprep.subr.mxu0 0.0
    %2717 = vmatpush1.msra.mxu0 0.0
    %2718 = vmatprep.subr.mxu0 0.0
    %2719 = vmatpush1.msra.mxu0 0.0
    %2720 = vmatprep.subr.mxu0 0.0
    %2721 = vmatpush1.msra.mxu0 0.0
    %2722 = vmatprep.subr.mxu0 0.0
    %2723 = vmatpush1.msra.mxu0 %v2694
    %2724 = vmatprep.subr.mxu0 0.0
    %2725 = vmatpush1.msra.mxu0 %v2693
    %2726 = vmatprep.subr.mxu0 0.0
    %2727 = vmatpush1.msra.mxu0 %v2692
    %2728 = vmatprep.subr.mxu0 0.0
    %2729 = vmatpush1.msra.mxu0 %v2691
    %2730 = vmatprep.subr.mxu0 0.0
    %2731 = vmatpush1.msra.mxu0 %v2690
    %2732 = vmatprep.subr.mxu0 0.0
    %2733 = vmatpush1.msra.mxu0 %v2689
    %2734 = vmatprep.subr.mxu0 0.0
    %2735 = vmatpush1.msra.mxu0 %v2688
    %2736 = vmatprep.subr.mxu0 0.0
    %2737 = vmatpush1.msra.mxu0 %v2687
    %2738 = vmatprep.subr.mxu0 0.0
    %2739 = vmatpush2.msra.mxu0 0.0
    %2740 = vmatprep.subr.mxu0 0.0
    %2741 = vmatpush2.msra.mxu0 0.0
    %2742 = vmatprep.subr.mxu0 0.0
    %2743 = vmatpush2.msra.mxu0 0.0
    %2744 = vmatprep.subr.mxu0 0.0
    %2745 = vmatpush2.msra.mxu0 0.0
    %2746 = vmatprep.subr.mxu0 0.0
    %2747 = vmatpush2.msra.mxu0 0.0
    %2748 = vmatprep.subr.mxu0 0.0
    %2749 = vmatpush2.msra.mxu0 0.0
    %2750 = vmatprep.subr.mxu0 0.0
    %2751 = vmatpush2.msra.mxu0 0.0
    %2752 = vmatprep.subr.mxu0 0.0
    %2753 = vmatpush2.msra.mxu0 0.0
    %2754 = vmatprep.subr.mxu0 0.0
    %2755 = vmatpush2.msra.mxu0 0.0
    %2756 = vmatprep.subr.mxu0 0.0
    %2757 = vmatpush2.msra.mxu0 0.0
    %2758 = vmatprep.subr.mxu0 0.0
    %2759 = vmatpush2.msra.mxu0 0.0
    %2760 = vmatprep.subr.mxu0 0.0
    %2761 = vmatpush2.msra.mxu0 0.0
    %2762 = vmatprep.subr.mxu0 0.0
    %2763 = vmatpush2.msra.mxu0 0.0
    %2764 = vmatprep.subr.mxu0 0.0
    %2765 = vmatpush2.msra.mxu0 0.0
    %2766 = vmatprep.subr.mxu0 0.0
    %2767 = vmatpush2.msra.mxu0 0.0
    %2768 = vmatprep.subr.mxu0 0.0
    %2769 = vmatpush2.msra.mxu0 0.0
    %2770 = vmatprep.mubr.f32.mxu0 0.0
    %2771 = vmatmul.mubr.f32.gmra.mxu0 %v2701
    %v2772 = vpop.f32.mrf.mxu0
    %v2773 = vadd.f32 %v2699, %v2772
    %v2774 = vpop.f32.mrf.mxu0
    %2775 = vmatprep.mubr.f32.mxu0 0.0
    %2776 = vmatmul.mubr.f32.gmra.mxu0 %v2704
    %v2777 = vpop.f32.mrf.mxu0
    %v2778 = vadd.f32 %v2699, %v2777
    %v2779 = vpop.f32.mrf.mxu0
    %2780 = vdwg.mxu0
    %v2781 = vadd.f32 %v2585, %v2773
    %v2782 = vadd.f32 %v2586, %v2778
    %v2783 = vld [vmem:[#allocation2 + $0x320] sm:$0x1]
    %v2784 = vld [vmem:[#allocation2 + $0x328] sm:$0x1]
    %v2785 = vsel %vm137, %v2781, 0.0
    %2786 = vadd.xlane.f32.xlu0 %v2785
    %v2787 = vpop.xlane.xlu0 %2786
    %v2788 = vsel %vm137, %v2782, 0.0
    %2789 = vadd.xlane.f32.xlu0 %v2788
    %v2790 = vpop.xlane.xlu0 %2789
    %v2791 = vmul.f32 %v2787, %v144
    %v2792 = vmul.f32 %v2790, %v144
    %v2793 = vsub.f32 %v2781, %v2791
    %v2794 = vsub.f32 %v2782, %v2792
    %v2795 = vmul.f32 %v2793, %v2793
    %v2796 = vmul.f32 %v2794, %v2794
    %v2797 = vsel %vm137, %v2795, 0.0
    %2798 = vadd.xlane.f32.xlu0 %v2797
    %v2799 = vpop.xlane.xlu0 %2798
    %v2800 = vsel %vm137, %v2796, 0.0
    %2801 = vadd.xlane.f32.xlu0 %v2800
    %v2802 = vpop.xlane.xlu0 %2801
    %v2803 = vmul.f32 %v2799, %v144
    %v2804 = vmul.f32 %v2802, %v144
    %v2805 = vadd.f32 %v2803, 1e-05
    %v2806 = vadd.f32 %v2804, 1e-05
    %v2807 = vrsqrt.pop %v2805
    %v2808 = vrsqrt.pop %v2806
    %v2809 = vmul.f32 %v2793, %v2807
    %v2810 = vmul.f32 %v2794, %v2808
    %v2811 = vlaneseq
    %v2812 = vshrl.u32 %v2811, 7
    %v2813 = vsub.s32 0, %v2812
    %v2814 = vrot.slane %v2783, %v2813
    %v2815 = vmul.f32 %v2809, %v2814
    %v2816 = vmul.f32 %v2810, %v2814
    %v2817 = vlaneseq
    %v2818 = vshrl.u32 %v2817, 7
    %v2819 = vsub.s32 0, %v2818
    %v2820 = vrot.slane %v2784, %v2819
    %v2821 = vadd.f32 %v2815, %v2820
    %v2822 = vadd.f32 %v2816, %v2820
    %v2823 = vld [vmem:[#allocation2 + $0x330] sm:$0xff]
    %v2824 = vld [vmem:[#allocation2 + $0x338] sm:$0xff]
    %v2825 = vld [vmem:[#allocation2 + $0x340] sm:$0xff]
    %v2826 = vld [vmem:[#allocation2 + $0x348] sm:$0xff]
    %v2828 = vsel %vm137, %v2821, 0
    %v2831 = vsel %vm137, %v2822, 0
    %2833 = vmatprep.subr.mxu0 0.0
    %2834 = vmatpush1.msra.mxu0 0.0
    %2835 = vmatprep.subr.mxu0 0.0
    %2836 = vmatpush1.msra.mxu0 0.0
    %2837 = vmatprep.subr.mxu0 0.0
    %2838 = vmatpush1.msra.mxu0 0.0
    %2839 = vmatprep.subr.mxu0 0.0
    %2840 = vmatpush1.msra.mxu0 0.0
    %2841 = vmatprep.subr.mxu0 0.0
    %2842 = vmatpush1.msra.mxu0 0.0
    %2843 = vmatprep.subr.mxu0 0.0
    %2844 = vmatpush1.msra.mxu0 0.0
    %2845 = vmatprep.subr.mxu0 0.0
    %2846 = vmatpush1.msra.mxu0 0.0
    %2847 = vmatprep.subr.mxu0 0.0
    %2848 = vmatpush1.msra.mxu0 0.0
    %2849 = vmatprep.subr.mxu0 0.0
    %2850 = vmatpush1.msra.mxu0 0.0
    %2851 = vmatprep.subr.mxu0 0.0
    %2852 = vmatpush1.msra.mxu0 0.0
    %2853 = vmatprep.subr.mxu0 0.0
    %2854 = vmatpush1.msra.mxu0 0.0
    %2855 = vmatprep.subr.mxu0 0.0
    %2856 = vmatpush1.msra.mxu0 0.0
    %2857 = vmatprep.subr.mxu0 0.0
    %2858 = vmatpush1.msra.mxu0 %v2826
    %2859 = vmatprep.subr.mxu0 0.0
    %2860 = vmatpush1.msra.mxu0 %v2825
    %2861 = vmatprep.subr.mxu0 0.0
    %2862 = vmatpush1.msra.mxu0 %v2824
    %2863 = vmatprep.subr.mxu0 0.0
    %2864 = vmatpush1.msra.mxu0 %v2823
    %2865 = vmatprep.subr.mxu0 0.0
    %2866 = vmatpush2.msra.mxu0 0.0
    %2867 = vmatprep.subr.mxu0 0.0
    %2868 = vmatpush2.msra.mxu0 0.0
    %2869 = vmatprep.subr.mxu0 0.0
    %2870 = vmatpush2.msra.mxu0 0.0
    %2871 = vmatprep.subr.mxu0 0.0
    %2872 = vmatpush2.msra.mxu0 0.0
    %2873 = vmatprep.subr.mxu0 0.0
    %2874 = vmatpush2.msra.mxu0 0.0
    %2875 = vmatprep.subr.mxu0 0.0
    %2876 = vmatpush2.msra.mxu0 0.0
    %2877 = vmatprep.subr.mxu0 0.0
    %2878 = vmatpush2.msra.mxu0 0.0
    %2879 = vmatprep.subr.mxu0 0.0
    %2880 = vmatpush2.msra.mxu0 0.0
    %2881 = vmatprep.subr.mxu0 0.0
    %2882 = vmatpush2.msra.mxu0 0.0
    %2883 = vmatprep.subr.mxu0 0.0
    %2884 = vmatpush2.msra.mxu0 0.0
    %2885 = vmatprep.subr.mxu0 0.0
    %2886 = vmatpush2.msra.mxu0 0.0
    %2887 = vmatprep.subr.mxu0 0.0
    %2888 = vmatpush2.msra.mxu0 0.0
    %2889 = vmatprep.subr.mxu0 0.0
    %2890 = vmatpush2.msra.mxu0 0.0
    %2891 = vmatprep.subr.mxu0 0.0
    %2892 = vmatpush2.msra.mxu0 0.0
    %2893 = vmatprep.subr.mxu0 0.0
    %2894 = vmatpush2.msra.mxu0 0.0
    %2895 = vmatprep.subr.mxu0 0.0
    %2896 = vmatpush2.msra.mxu0 0.0
    %2897 = vmatprep.mubr.f32.mxu0 0.0
    %2898 = vmatmul.mubr.f32.gmra.mxu0 %v2828
    %v2899 = vpop.f32.mrf.mxu0
    %v2900 = vadd.f32 0.0, %v2899
    %v2901 = vpop.f32.mrf.mxu0
    %2902 = vmatprep.mubr.f32.mxu0 0.0
    %2903 = vmatmul.mubr.f32.gmra.mxu0 %v2831
    %v2904 = vpop.f32.mrf.mxu0
    %v2905 = vadd.f32 0.0, %v2904
    %v2906 = vpop.f32.mrf.mxu0
    %2907 = vdwg.mxu0
    %v2908 = vld [vmem:[#allocation2 + $0x350] sm:$0xff]
    %v2909 = vld [vmem:[#allocation2 + $0x358] sm:$0xff]
    %v2910 = vmul.f32 %v2900, %v2908
    %v2911 = vmul.f32 %v2905, %v2909
    %v2912 = vld [vmem:[#allocation2 + $0x360] sm:$0x3]
    %v2914 = vsel %vm423, %v2912, 0
    %2916 = vmatprep.subr.mxu0 0.0
    %2917 = vmatpush1.msra.mxu0 0.0
    %2918 = vmatprep.subr.mxu0 0.0
    %2919 = vmatpush1.msra.mxu0 0.0
    %2920 = vmatprep.subr.mxu0 0.0
    %2921 = vmatpush1.msra.mxu0 0.0
    %2922 = vmatprep.subr.mxu0 0.0
    %2923 = vmatpush1.msra.mxu0 0.0
    %2924 = vmatprep.subr.mxu0 0.0
    %2925 = vmatpush1.msra.mxu0 0.0
    %2926 = vmatprep.subr.mxu0 0.0
    %2927 = vmatpush1.msra.mxu0 0.0
    %2928 = vmatprep.subr.mxu0 0.0
    %2929 = vmatpush1.msra.mxu0 0.0
    %2930 = vmatprep.subr.mxu0 0.0
    %2931 = vmatpush1.msra.mxu0 0.0
    %2932 = vmatprep.subr.mxu0 0.0
    %2933 = vmatpush1.msra.mxu0 0.0
    %2934 = vmatprep.subr.mxu0 0.0
    %2935 = vmatpush1.msra.mxu0 0.0
    %2936 = vmatprep.subr.mxu0 0.0
    %2937 = vmatpush1.msra.mxu0 0.0
    %2938 = vmatprep.subr.mxu0 0.0
    %2939 = vmatpush1.msra.mxu0 0.0
    %2940 = vmatprep.subr.mxu0 0.0
    %2941 = vmatpush1.msra.mxu0 0.0
    %2942 = vmatprep.subr.mxu0 0.0
    %2943 = vmatpush1.msra.mxu0 0.0
    %2944 = vmatprep.subr.mxu0 0.0
    %2945 = vmatpush1.msra.mxu0 %v2911
    %2946 = vmatprep.subr.mxu0 0.0
    %2947 = vmatpush1.msra.mxu0 %v2910
    %2948 = vmatprep.subr.mxu0 0.0
    %2949 = vmatpush2.msra.mxu0 0.0
    %2950 = vmatprep.subr.mxu0 0.0
    %2951 = vmatpush2.msra.mxu0 0.0
    %2952 = vmatprep.subr.mxu0 0.0
    %2953 = vmatpush2.msra.mxu0 0.0
    %2954 = vmatprep.subr.mxu0 0.0
    %2955 = vmatpush2.msra.mxu0 0.0
    %2956 = vmatprep.subr.mxu0 0.0
    %2957 = vmatpush2.msra.mxu0 0.0
    %2958 = vmatprep.subr.mxu0 0.0
    %2959 = vmatpush2.msra.mxu0 0.0
    %2960 = vmatprep.subr.mxu0 0.0
    %2961 = vmatpush2.msra.mxu0 0.0
    %2962 = vmatprep.subr.mxu0 0.0
    %2963 = vmatpush2.msra.mxu0 0.0
    %2964 = vmatprep.subr.mxu0 0.0
    %2965 = vmatpush2.msra.mxu0 0.0
    %2966 = vmatprep.subr.mxu0 0.0
    %2967 = vmatpush2.msra.mxu0 0.0
    %2968 = vmatprep.subr.mxu0 0.0
    %2969 = vmatpush2.msra.mxu0 0.0
    %2970 = vmatprep.subr.mxu0 0.0
    %2971 = vmatpush2.msra.mxu0 0.0
    %2972 = vmatprep.subr.mxu0 0.0
    %2973 = vmatpush2.msra.mxu0 0.0
    %2974 = vmatprep.subr.mxu0 0.0
    %2975 = vmatpush2.msra.mxu0 0.0
    %2976 = vmatprep.subr.mxu0 0.0
    %2977 = vmatpush2.msra.mxu0 0.0
    %2978 = vmatprep.subr.mxu0 0.0
    %2979 = vmatpush2.msra.mxu0 0.0
    %2980 = vmatprep.mubr.f32.mxu0 0.0
    %2981 = vmatmul.mubr.f32.gmra.mxu0 %v2914
    %v2982 = vpop.f32.mrf.mxu0
    %v2983 = vadd.f32 0.0, %v2982
    %v2984 = vpop.f32.mrf.mxu0
    %2985 = vdwg.mxu0
    %v2986 = vld [vmem:[#allocation2 + $0x368] sm:$0xff]
    %v2987 = vld [vmem:[#allocation2 + $0x370] sm:$0xff]
    %v2988 = vld [vmem:[#allocation2 + $0x378] sm:$0xff]
    %v2989 = vld [vmem:[#allocation2 + $0x380] sm:$0xff]
    %v2990 = vld [vmem:[#allocation2 + $0x388] sm:$0xff]
    %v2991 = vld [vmem:[#allocation2 + $0x390] sm:$0xff]
    %v2992 = vld [vmem:[#allocation2 + $0x398] sm:$0xff]
    %v2993 = vld [vmem:[#allocation2 + $0x3a0] sm:$0xff]
    %v2994 = vld [vmem:[#allocation2 + $0x3a8] sm:$0xff]
    %v2995 = vld [vmem:[#allocation2 + $0x3b0] sm:$0xff]
    %v2996 = vld [vmem:[#allocation2 + $0x3b8] sm:$0xff]
    %v2997 = vld [vmem:[#allocation2 + $0x3c0] sm:$0xff]
    %v2998 = vld [vmem:[#allocation2 + $0x3c8] sm:$0xff]
    %v2999 = vld [vmem:[#allocation2 + $0x3d0] sm:$0xff]
    %v3000 = vld [vmem:[#allocation2 + $0x3d8] sm:$0xff]
    %v3001 = vld [vmem:[#allocation2 + $0x3e0] sm:$0xff]
    %v3002 = vld [vmem:[#allocation2 + $0x3e8] sm:$0x1]
    %v3003 = vlaneseq
    %v3004 = vshrl.u32 %v3003, 7
    %v3005 = vsub.s32 0, %v3004
    %v3006 = vrot.slane %v3002, %v3005
    %3007 = vmatprep.subr.mxu0 0.0
    %3008 = vmatpush1.msra.mxu0 %v3001
    %3009 = vmatprep.subr.mxu0 0.0
    %3010 = vmatpush1.msra.mxu0 %v3000
    %3011 = vmatprep.subr.mxu0 0.0
    %3012 = vmatpush1.msra.mxu0 %v2999
    %3013 = vmatprep.subr.mxu0 0.0
    %3014 = vmatpush1.msra.mxu0 %v2998
    %3015 = vmatprep.subr.mxu0 0.0
    %3016 = vmatpush1.msra.mxu0 %v2997
    %3017 = vmatprep.subr.mxu0 0.0
    %3018 = vmatpush1.msra.mxu0 %v2996
    %3019 = vmatprep.subr.mxu0 0.0
    %3020 = vmatpush1.msra.mxu0 %v2995
    %3021 = vmatprep.subr.mxu0 0.0
    %3022 = vmatpush1.msra.mxu0 %v2994
    %3023 = vmatprep.subr.mxu0 0.0
    %3024 = vmatpush1.msra.mxu0 %v2993
    %3025 = vmatprep.subr.mxu0 0.0
    %3026 = vmatpush1.msra.mxu0 %v2992
    %3027 = vmatprep.subr.mxu0 0.0
    %3028 = vmatpush1.msra.mxu0 %v2991
    %3029 = vmatprep.subr.mxu0 0.0
    %3030 = vmatpush1.msra.mxu0 %v2990
    %3031 = vmatprep.subr.mxu0 0.0
    %3032 = vmatpush1.msra.mxu0 %v2989
    %3033 = vmatprep.subr.mxu0 0.0
    %3034 = vmatpush1.msra.mxu0 %v2988
    %3035 = vmatprep.subr.mxu0 0.0
    %3036 = vmatpush1.msra.mxu0 %v2987
    %3037 = vmatprep.subr.mxu0 0.0
    %3038 = vmatpush1.msra.mxu0 %v2986
    %3039 = vmatprep.subr.mxu0 0.0
    %3040 = vmatpush2.msra.mxu0 0.0
    %3041 = vmatprep.subr.mxu0 0.0
    %3042 = vmatpush2.msra.mxu0 0.0
    %3043 = vmatprep.subr.mxu0 0.0
    %3044 = vmatpush2.msra.mxu0 0.0
    %3045 = vmatprep.subr.mxu0 0.0
    %3046 = vmatpush2.msra.mxu0 0.0
    %3047 = vmatprep.subr.mxu0 0.0
    %3048 = vmatpush2.msra.mxu0 0.0
    %3049 = vmatprep.subr.mxu0 0.0
    %3050 = vmatpush2.msra.mxu0 0.0
    %3051 = vmatprep.subr.mxu0 0.0
    %3052 = vmatpush2.msra.mxu0 0.0
    %3053 = vmatprep.subr.mxu0 0.0
    %3054 = vmatpush2.msra.mxu0 0.0
    %3055 = vmatprep.subr.mxu0 0.0
    %3056 = vmatpush2.msra.mxu0 0.0
    %3057 = vmatprep.subr.mxu0 0.0
    %3058 = vmatpush2.msra.mxu0 0.0
    %3059 = vmatprep.subr.mxu0 0.0
    %3060 = vmatpush2.msra.mxu0 0.0
    %3061 = vmatprep.subr.mxu0 0.0
    %3062 = vmatpush2.msra.mxu0 0.0
    %3063 = vmatprep.subr.mxu0 0.0
    %3064 = vmatpush2.msra.mxu0 0.0
    %3065 = vmatprep.subr.mxu0 0.0
    %3066 = vmatpush2.msra.mxu0 0.0
    %3067 = vmatprep.subr.mxu0 0.0
    %3068 = vmatpush2.msra.mxu0 0.0
    %3069 = vmatprep.subr.mxu0 0.0
    %3070 = vmatpush2.msra.mxu0 0.0
    %3071 = vmatprep.mubr.f32.mxu0 0.0
    %3072 = vmatmul.mubr.f32.gmra.mxu0 %v2983
    %v3073 = vpop.f32.mrf.mxu0
    %v3074 = vadd.f32 %v3006, %v3073
    %v3075 = vpop.f32.mrf.mxu0
    %3076 = vdwg.mxu0
    %v3077 = vmul.f32 %v3074, 0.5
    %v3078 = vmul.f32 %v3074, 0.70710677
    %v3079 = verf.f32.pop %v3078
    %v3080 = vadd.f32 %v3079, 1.0
    %v3081 = vmul.f32 %v3077, %v3080
    %v3082 = vld [vmem:[%s2] sm:$0x3]
    %v3083 = vld [vmem:[#allocation2 + $0x3f0] sm:$0xf]
    %v3084 = vld [vmem:[#allocation2 + $0x3f8] sm:$0x1]
    %v3085 = vlaneseq
    %v3086 = vshrl.u32 %v3085, 7
    %v3087 = vsub.s32 0, %v3086
    %v3088 = vrot.slane %v3084, %v3087
    %vm3089 = vcmask 31744
    %v3091 = vsel %vm3089, %v3082, 0
    %vm3093 = vcmask 1043456
    %v3095 = vsel %vm3093, %v3083, 0
    %3097 = vmatprep.subr.mxu0 0.0
    %3098 = vmatpush1.msra.mxu0 0.0
    %3099 = vmatprep.subr.mxu0 0.0
    %3100 = vmatpush1.msra.mxu0 0.0
    %3101 = vmatprep.subr.mxu0 0.0
    %3102 = vmatpush1.msra.mxu0 0.0
    %3103 = vmatprep.subr.mxu0 0.0
    %3104 = vmatpush1.msra.mxu0 0.0
    %3105 = vmatprep.subr.mxu0 0.0
    %3106 = vmatpush1.msra.mxu0 0.0
    %3107 = vmatprep.subr.mxu0 0.0
    %3108 = vmatpush1.msra.mxu0 0.0
    %3109 = vmatprep.subr.mxu0 0.0
    %3110 = vmatpush1.msra.mxu0 0.0
    %3111 = vmatprep.subr.mxu0 0.0
    %3112 = vmatpush1.msra.mxu0 0.0
    %3113 = vmatprep.subr.mxu0 0.0
    %3114 = vmatpush1.msra.mxu0 0.0
    %3115 = vmatprep.subr.mxu0 0.0
    %3116 = vmatpush1.msra.mxu0 0.0
    %3117 = vmatprep.subr.mxu0 0.0
    %3118 = vmatpush1.msra.mxu0 0.0
    %3119 = vmatprep.subr.mxu0 0.0
    %3120 = vmatpush1.msra.mxu0 0.0
    %3121 = vmatprep.subr.mxu0 0.0
    %3122 = vmatpush1.msra.mxu0 0.0
    %3123 = vmatprep.subr.mxu0 0.0
    %3124 = vmatpush1.msra.mxu0 0.0
    %3125 = vmatprep.subr.mxu0 0.0
    %3126 = vmatpush1.msra.mxu0 0.0
    %3127 = vmatprep.subr.mxu0 0.0
    %3128 = vmatpush1.msra.mxu0 %v3095
    %3129 = vmatprep.subr.mxu0 0.0
    %3130 = vmatpush2.msra.mxu0 0.0
    %3131 = vmatprep.subr.mxu0 0.0
    %3132 = vmatpush2.msra.mxu0 0.0
    %3133 = vmatprep.subr.mxu0 0.0
    %3134 = vmatpush2.msra.mxu0 0.0
    %3135 = vmatprep.subr.mxu0 0.0
    %3136 = vmatpush2.msra.mxu0 0.0
    %3137 = vmatprep.subr.mxu0 0.0
    %3138 = vmatpush2.msra.mxu0 0.0
    %3139 = vmatprep.subr.mxu0 0.0
    %3140 = vmatpush2.msra.mxu0 0.0
    %3141 = vmatprep.subr.mxu0 0.0
    %3142 = vmatpush2.msra.mxu0 0.0
    %3143 = vmatprep.subr.mxu0 0.0
    %3144 = vmatpush2.msra.mxu0 0.0
    %3145 = vmatprep.subr.mxu0 0.0
    %3146 = vmatpush2.msra.mxu0 0.0
    %3147 = vmatprep.subr.mxu0 0.0
    %3148 = vmatpush2.msra.mxu0 0.0
    %3149 = vmatprep.subr.mxu0 0.0
    %3150 = vmatpush2.msra.mxu0 0.0
    %3151 = vmatprep.subr.mxu0 0.0
    %3152 = vmatpush2.msra.mxu0 0.0
    %3153 = vmatprep.subr.mxu0 0.0
    %3154 = vmatpush2.msra.mxu0 0.0
    %3155 = vmatprep.subr.mxu0 0.0
    %3156 = vmatpush2.msra.mxu0 0.0
    %3157 = vmatprep.subr.mxu0 0.0
    %3158 = vmatpush2.msra.mxu0 0.0
    %3159 = vmatprep.subr.mxu0 0.0
    %3160 = vmatpush2.msra.mxu0 0.0
    %3161 = vmatprep.mubr.f32.mxu0 0.0
    %3162 = vmatmul.mubr.f32.gmra.mxu0 %v3091
    %v3163 = vpop.f32.mrf.mxu0
    %v3164 = vadd.f32 %v3088, %v3163
    %v3165 = vpop.f32.mrf.mxu0
    %3166 = vdwg.mxu0
    %v3167 = vmul.f32 %v3164, 0.5
    %v3168 = vmul.f32 %v3164, 0.70710677
    %v3169 = verf.f32.pop %v3168
    %v3170 = vadd.f32 %v3169, 1.0
    %v3171 = vmul.f32 %v3167, %v3170
    %v3172 = vld [vmem:[#allocation2 + $0x400] sm:$0xff]
    %v3173 = vld [vmem:[#allocation2 + $0x408] sm:$0xff]
    %v3174 = vld [vmem:[#allocation2 + $0x410] sm:$0xff]
    %v3175 = vld [vmem:[#allocation2 + $0x418] sm:$0xff]
    %v3176 = vld [vmem:[#allocation2 + $0x420] sm:$0xff]
    %v3177 = vld [vmem:[#allocation2 + $0x428] sm:$0xff]
    %v3179 = vsel %vm423, %v3081, 0
    %3181 = vmatprep.subr.mxu0 0.0
    %3182 = vmatpush1.msra.mxu0 0.0
    %3183 = vmatprep.subr.mxu0 0.0
    %3184 = vmatpush1.msra.mxu0 0.0
    %3185 = vmatprep.subr.mxu0 0.0
    %3186 = vmatpush1.msra.mxu0 0.0
    %3187 = vmatprep.subr.mxu0 0.0
    %3188 = vmatpush1.msra.mxu0 0.0
    %3189 = vmatprep.subr.mxu0 0.0
    %3190 = vmatpush1.msra.mxu0 0.0
    %3191 = vmatprep.subr.mxu0 0.0
    %3192 = vmatpush1.msra.mxu0 0.0
    %3193 = vmatprep.subr.mxu0 0.0
    %3194 = vmatpush1.msra.mxu0 0.0
    %3195 = vmatprep.subr.mxu0 0.0
    %3196 = vmatpush1.msra.mxu0 0.0
    %3197 = vmatprep.subr.mxu0 0.0
    %3198 = vmatpush1.msra.mxu0 0.0
    %3199 = vmatprep.subr.mxu0 0.0
    %3200 = vmatpush1.msra.mxu0 0.0
    %3201 = vmatprep.subr.mxu0 0.0
    %3202 = vmatpush1.msra.mxu0 0.0
    %3203 = vmatprep.subr.mxu0 0.0
    %3204 = vmatpush1.msra.mxu0 0.0
    %3205 = vmatprep.subr.mxu0 0.0
    %3206 = vmatpush1.msra.mxu0 0.0
    %3207 = vmatprep.subr.mxu0 0.0
    %3208 = vmatpush1.msra.mxu0 0.0
    %3209 = vmatprep.subr.mxu0 0.0
    %3210 = vmatpush1.msra.mxu0 %v3177
    %3211 = vmatprep.subr.mxu0 0.0
    %3212 = vmatpush1.msra.mxu0 %v3176
    %3213 = vmatprep.subr.mxu0 0.0
    %3214 = vmatpush2.msra.mxu0 0.0
    %3215 = vmatprep.subr.mxu0 0.0
    %3216 = vmatpush2.msra.mxu0 0.0
    %3217 = vmatprep.subr.mxu0 0.0
    %3218 = vmatpush2.msra.mxu0 0.0
    %3219 = vmatprep.subr.mxu0 0.0
    %3220 = vmatpush2.msra.mxu0 0.0
    %3221 = vmatprep.subr.mxu0 0.0
    %3222 = vmatpush2.msra.mxu0 0.0
    %3223 = vmatprep.subr.mxu0 0.0
    %3224 = vmatpush2.msra.mxu0 0.0
    %3225 = vmatprep.subr.mxu0 0.0
    %3226 = vmatpush2.msra.mxu0 0.0
    %3227 = vmatprep.subr.mxu0 0.0
    %3228 = vmatpush2.msra.mxu0 0.0
    %3229 = vmatprep.subr.mxu0 0.0
    %3230 = vmatpush2.msra.mxu0 0.0
    %3231 = vmatprep.subr.mxu0 0.0
    %3232 = vmatpush2.msra.mxu0 0.0
    %3233 = vmatprep.subr.mxu0 0.0
    %3234 = vmatpush2.msra.mxu0 0.0
    %3235 = vmatprep.subr.mxu0 0.0
    %3236 = vmatpush2.msra.mxu0 0.0
    %3237 = vmatprep.subr.mxu0 0.0
    %3238 = vmatpush2.msra.mxu0 0.0
    %3239 = vmatprep.subr.mxu0 0.0
    %3240 = vmatpush2.msra.mxu0 0.0
    %3241 = vmatprep.subr.mxu0 0.0
    %3242 = vmatpush2.msra.mxu0 0.0
    %3243 = vmatprep.subr.mxu0 0.0
    %3244 = vmatpush2.msra.mxu0 0.0
    %3245 = vmatprep.mubr.f32.mxu0 0.0
    %3246 = vmatmul.mubr.f32.gmra.mxu0 %v3179
    %v3247 = vpop.f32.mrf.mxu0
    %v3248 = vadd.f32 0.0, %v3247
    %v3249 = vpop.f32.mrf.mxu0
    %3250 = vdwg.mxu0
    %v3252 = vsel %vm137, %v3171, 0
    %3254 = vmatprep.subr.mxu0 0.0
    %3255 = vmatpush1.msra.mxu0 0.0
    %3256 = vmatprep.subr.mxu0 0.0
    %3257 = vmatpush1.msra.mxu0 0.0
    %3258 = vmatprep.subr.mxu0 0.0
    %3259 = vmatpush1.msra.mxu0 0.0
    %3260 = vmatprep.subr.mxu0 0.0
    %3261 = vmatpush1.msra.mxu0 0.0
    %3262 = vmatprep.subr.mxu0 0.0
    %3263 = vmatpush1.msra.mxu0 0.0
    %3264 = vmatprep.subr.mxu0 0.0
    %3265 = vmatpush1.msra.mxu0 0.0
    %3266 = vmatprep.subr.mxu0 0.0
    %3267 = vmatpush1.msra.mxu0 0.0
    %3268 = vmatprep.subr.mxu0 0.0
    %3269 = vmatpush1.msra.mxu0 0.0
    %3270 = vmatprep.subr.mxu0 0.0
    %3271 = vmatpush1.msra.mxu0 0.0
    %3272 = vmatprep.subr.mxu0 0.0
    %3273 = vmatpush1.msra.mxu0 0.0
    %3274 = vmatprep.subr.mxu0 0.0
    %3275 = vmatpush1.msra.mxu0 0.0
    %3276 = vmatprep.subr.mxu0 0.0
    %3277 = vmatpush1.msra.mxu0 0.0
    %3278 = vmatprep.subr.mxu0 0.0
    %3279 = vmatpush1.msra.mxu0 %v3175
    %3280 = vmatprep.subr.mxu0 0.0
    %3281 = vmatpush1.msra.mxu0 %v3174
    %3282 = vmatprep.subr.mxu0 0.0
    %3283 = vmatpush1.msra.mxu0 %v3173
    %3284 = vmatprep.subr.mxu0 0.0
    %3285 = vmatpush1.msra.mxu0 %v3172
    %3286 = vmatprep.subr.mxu0 0.0
    %3287 = vmatpush2.msra.mxu0 0.0
    %3288 = vmatprep.subr.mxu0 0.0
    %3289 = vmatpush2.msra.mxu0 0.0
    %3290 = vmatprep.subr.mxu0 0.0
    %3291 = vmatpush2.msra.mxu0 0.0
    %3292 = vmatprep.subr.mxu0 0.0
    %3293 = vmatpush2.msra.mxu0 0.0
    %3294 = vmatprep.subr.mxu0 0.0
    %3295 = vmatpush2.msra.mxu0 0.0
    %3296 = vmatprep.subr.mxu0 0.0
    %3297 = vmatpush2.msra.mxu0 0.0
    %3298 = vmatprep.subr.mxu0 0.0
    %3299 = vmatpush2.msra.mxu0 0.0
    %3300 = vmatprep.subr.mxu0 0.0
    %3301 = vmatpush2.msra.mxu0 0.0
    %3302 = vmatprep.subr.mxu0 0.0
    %3303 = vmatpush2.msra.mxu0 0.0
    %3304 = vmatprep.subr.mxu0 0.0
    %3305 = vmatpush2.msra.mxu0 0.0
    %3306 = vmatprep.subr.mxu0 0.0
    %3307 = vmatpush2.msra.mxu0 0.0
    %3308 = vmatprep.subr.mxu0 0.0
    %3309 = vmatpush2.msra.mxu0 0.0
    %3310 = vmatprep.subr.mxu0 0.0
    %3311 = vmatpush2.msra.mxu0 0.0
    %3312 = vmatprep.subr.mxu0 0.0
    %3313 = vmatpush2.msra.mxu0 0.0
    %3314 = vmatprep.subr.mxu0 0.0
    %3315 = vmatpush2.msra.mxu0 0.0
    %3316 = vmatprep.subr.mxu0 0.0
    %3317 = vmatpush2.msra.mxu0 0.0
    %3318 = vmatprep.mubr.f32.mxu0 0.0
    %3319 = vmatmul.mubr.f32.gmra.mxu0 %v3252
    %v3320 = vpop.f32.mrf.mxu0
    %v3321 = vadd.f32 %v3248, %v3320
    %v3322 = vpop.f32.mrf.mxu0
    %3323 = vdwg.mxu0
    %v3324 = vld [vmem:[#allocation2 + $0x430] sm:$0x1]
    %v3325 = vlaneseq
    %v3326 = vshrl.u32 %v3325, 7
    %v3327 = vsub.s32 0, %v3326
    %v3328 = vrot.slane %v3324, %v3327
    %v3329 = vadd.f32 %v3321, %v3328
    %v3330 = vmax.f32 %v3329, 0.0
    %v3331 = vld [vmem:[#allocation2 + $0x438] sm:$0xff]
    %v3332 = vld [vmem:[#allocation2 + $0x440] sm:$0xff]
    %v3333 = vld [vmem:[#allocation2 + $0x448] sm:$0xff]
    %v3334 = vld [vmem:[#allocation2 + $0x450] sm:$0xff]
    %v3335 = vld [vmem:[#allocation2 + $0x458] sm:$0x1]
    %v3336 = vlaneseq
    %v3337 = vshrl.u32 %v3336, 7
    %v3338 = vsub.s32 0, %v3337
    %v3339 = vrot.slane %v3335, %v3338
    %v3341 = vsel %vm137, %v3330, 0
    %3343 = vmatprep.subr.mxu0 0.0
    %3344 = vmatpush1.msra.mxu0 0.0
    %3345 = vmatprep.subr.mxu0 0.0
    %3346 = vmatpush1.msra.mxu0 0.0
    %3347 = vmatprep.subr.mxu0 0.0
    %3348 = vmatpush1.msra.mxu0 0.0
    %3349 = vmatprep.subr.mxu0 0.0
    %3350 = vmatpush1.msra.mxu0 0.0
    %3351 = vmatprep.subr.mxu0 0.0
    %3352 = vmatpush1.msra.mxu0 0.0
    %3353 = vmatprep.subr.mxu0 0.0
    %3354 = vmatpush1.msra.mxu0 0.0
    %3355 = vmatprep.subr.mxu0 0.0
    %3356 = vmatpush1.msra.mxu0 0.0
    %3357 = vmatprep.subr.mxu0 0.0
    %3358 = vmatpush1.msra.mxu0 0.0
    %3359 = vmatprep.subr.mxu0 0.0
    %3360 = vmatpush1.msra.mxu0 0.0
    %3361 = vmatprep.subr.mxu0 0.0
    %3362 = vmatpush1.msra.mxu0 0.0
    %3363 = vmatprep.subr.mxu0 0.0
    %3364 = vmatpush1.msra.mxu0 0.0
    %3365 = vmatprep.subr.mxu0 0.0
    %3366 = vmatpush1.msra.mxu0 0.0
    %3367 = vmatprep.subr.mxu0 0.0
    %3368 = vmatpush1.msra.mxu0 %v3334
    %3369 = vmatprep.subr.mxu0 0.0
    %3370 = vmatpush1.msra.mxu0 %v3333
    %3371 = vmatprep.subr.mxu0 0.0
    %3372 = vmatpush1.msra.mxu0 %v3332
    %3373 = vmatprep.subr.mxu0 0.0
    %3374 = vmatpush1.msra.mxu0 %v3331
    %3375 = vmatprep.subr.mxu0 0.0
    %3376 = vmatpush2.msra.mxu0 0.0
    %3377 = vmatprep.subr.mxu0 0.0
    %3378 = vmatpush2.msra.mxu0 0.0
    %3379 = vmatprep.subr.mxu0 0.0
    %3380 = vmatpush2.msra.mxu0 0.0
    %3381 = vmatprep.subr.mxu0 0.0
    %3382 = vmatpush2.msra.mxu0 0.0
    %3383 = vmatprep.subr.mxu0 0.0
    %3384 = vmatpush2.msra.mxu0 0.0
    %3385 = vmatprep.subr.mxu0 0.0
    %3386 = vmatpush2.msra.mxu0 0.0
    %3387 = vmatprep.subr.mxu0 0.0
    %3388 = vmatpush2.msra.mxu0 0.0
    %3389 = vmatprep.subr.mxu0 0.0
    %3390 = vmatpush2.msra.mxu0 0.0
    %3391 = vmatprep.subr.mxu0 0.0
    %3392 = vmatpush2.msra.mxu0 0.0
    %3393 = vmatprep.subr.mxu0 0.0
    %3394 = vmatpush2.msra.mxu0 0.0
    %3395 = vmatprep.subr.mxu0 0.0
    %3396 = vmatpush2.msra.mxu0 0.0
    %3397 = vmatprep.subr.mxu0 0.0
    %3398 = vmatpush2.msra.mxu0 0.0
    %3399 = vmatprep.subr.mxu0 0.0
    %3400 = vmatpush2.msra.mxu0 0.0
    %3401 = vmatprep.subr.mxu0 0.0
    %3402 = vmatpush2.msra.mxu0 0.0
    %3403 = vmatprep.subr.mxu0 0.0
    %3404 = vmatpush2.msra.mxu0 0.0
    %3405 = vmatprep.subr.mxu0 0.0
    %3406 = vmatpush2.msra.mxu0 0.0
    %3407 = vmatprep.mubr.f32.mxu0 0.0
    %3408 = vmatmul.mubr.f32.gmra.mxu0 %v3341
    %v3409 = vpop.f32.mrf.mxu0
    %v3410 = vadd.f32 %v3339, %v3409
    %v3411 = vpop.f32.mrf.mxu0
    %3412 = vdwg.mxu0
    %v3413 = vld [vmem:[#allocation2 + $0x460] sm:$0xff]
    %v3414 = vld [vmem:[#allocation2 + $0x468] sm:$0xff]
    %v3415 = vld [vmem:[#allocation2 + $0x470] sm:$0xff]
    %v3416 = vld [vmem:[#allocation2 + $0x478] sm:$0xff]
    %v3417 = vld [vmem:[#allocation2 + $0x480] sm:$0x1]
    %v3418 = vlaneseq
    %v3419 = vshrl.u32 %v3418, 7
    %v3420 = vsub.s32 0, %v3419
    %v3421 = vrot.slane %v3417, %v3420
    %3422 = vmatprep.subr.mxu0 0.0
    %3423 = vmatpush1.msra.mxu0 0.0
    %3424 = vmatprep.subr.mxu0 0.0
    %3425 = vmatpush1.msra.mxu0 0.0
    %3426 = vmatprep.subr.mxu0 0.0
    %3427 = vmatpush1.msra.mxu0 0.0
    %3428 = vmatprep.subr.mxu0 0.0
    %3429 = vmatpush1.msra.mxu0 0.0
    %3430 = vmatprep.subr.mxu0 0.0
    %3431 = vmatpush1.msra.mxu0 0.0
    %3432 = vmatprep.subr.mxu0 0.0
    %3433 = vmatpush1.msra.mxu0 0.0
    %3434 = vmatprep.subr.mxu0 0.0
    %3435 = vmatpush1.msra.mxu0 0.0
    %3436 = vmatprep.subr.mxu0 0.0
    %3437 = vmatpush1.msra.mxu0 0.0
    %3438 = vmatprep.subr.mxu0 0.0
    %3439 = vmatpush1.msra.mxu0 0.0
    %3440 = vmatprep.subr.mxu0 0.0
    %3441 = vmatpush1.msra.mxu0 0.0
    %3442 = vmatprep.subr.mxu0 0.0
    %3443 = vmatpush1.msra.mxu0 0.0
    %3444 = vmatprep.subr.mxu0 0.0
    %3445 = vmatpush1.msra.mxu0 0.0
    %3446 = vmatprep.subr.mxu0 0.0
    %3447 = vmatpush1.msra.mxu0 %v3416
    %3448 = vmatprep.subr.mxu0 0.0
    %3449 = vmatpush1.msra.mxu0 %v3415
    %3450 = vmatprep.subr.mxu0 0.0
    %3451 = vmatpush1.msra.mxu0 %v3414
    %3452 = vmatprep.subr.mxu0 0.0
    %3453 = vmatpush1.msra.mxu0 %v3413
    %3454 = vmatprep.subr.mxu0 0.0
    %3455 = vmatpush2.msra.mxu0 0.0
    %3456 = vmatprep.subr.mxu0 0.0
    %3457 = vmatpush2.msra.mxu0 0.0
    %3458 = vmatprep.subr.mxu0 0.0
    %3459 = vmatpush2.msra.mxu0 0.0
    %3460 = vmatprep.subr.mxu0 0.0
    %3461 = vmatpush2.msra.mxu0 0.0
    %3462 = vmatprep.subr.mxu0 0.0
    %3463 = vmatpush2.msra.mxu0 0.0
    %3464 = vmatprep.subr.mxu0 0.0
    %3465 = vmatpush2.msra.mxu0 0.0
    %3466 = vmatprep.subr.mxu0 0.0
    %3467 = vmatpush2.msra.mxu0 0.0
    %3468 = vmatprep.subr.mxu0 0.0
    %3469 = vmatpush2.msra.mxu0 0.0
    %3470 = vmatprep.subr.mxu0 0.0
    %3471 = vmatpush2.msra.mxu0 0.0
    %3472 = vmatprep.subr.mxu0 0.0
    %3473 = vmatpush2.msra.mxu0 0.0
    %3474 = vmatprep.subr.mxu0 0.0
    %3475 = vmatpush2.msra.mxu0 0.0
    %3476 = vmatprep.subr.mxu0 0.0
    %3477 = vmatpush2.msra.mxu0 0.0
    %3478 = vmatprep.subr.mxu0 0.0
    %3479 = vmatpush2.msra.mxu0 0.0
    %3480 = vmatprep.subr.mxu0 0.0
    %3481 = vmatpush2.msra.mxu0 0.0
    %3482 = vmatprep.subr.mxu0 0.0
    %3483 = vmatpush2.msra.mxu0 0.0
    %3484 = vmatprep.subr.mxu0 0.0
    %3485 = vmatpush2.msra.mxu0 0.0
    %3486 = vmatprep.mubr.f32.mxu0 0.0
    %3487 = vmatmul.mubr.f32.gmra.mxu0 %v3341
    %v3488 = vpop.f32.mrf.mxu0
    %v3489 = vadd.f32 %v3421, %v3488
    %v3490 = vpop.f32.mrf.mxu0
    %3491 = vdwg.mxu0
    %v3492 = vld [vmem:[%s3] sm:$0x3]
    %v3493 = vmul.f32 %v3489, 0.5
    %v3494 = vmul.f32 %v3493, 1.442695
    %v3495 = vpow.pop %v3494
    %v3496 = vmul.f32 %v3492, %v3495
    %v3497 = vadd.f32 %v3410, %v3496
    %v3498 = vld [vmem:[#allocation2 + $0x488] sm:$0xff]
    %v3499 = vld [vmem:[#allocation2 + $0x490] sm:$0xff]
    %v3500 = vld [vmem:[#allocation2 + $0x498] sm:$0xff]
    %3501 = vmatprep.subr.mxu0 0.0
    %3502 = vmatpush1.msra.mxu0 0.0
    %3503 = vmatprep.subr.mxu0 0.0
    %3504 = vmatpush1.msra.mxu0 0.0
    %3505 = vmatprep.subr.mxu0 0.0
    %3506 = vmatpush1.msra.mxu0 0.0
    %3507 = vmatprep.subr.mxu0 0.0
    %3508 = vmatpush1.msra.mxu0 0.0
    %3509 = vmatprep.subr.mxu0 0.0
    %3510 = vmatpush1.msra.mxu0 0.0
    %3511 = vmatprep.subr.mxu0 0.0
    %3512 = vmatpush1.msra.mxu0 0.0
    %3513 = vmatprep.subr.mxu0 0.0
    %3514 = vmatpush1.msra.mxu0 0.0
    %3515 = vmatprep.subr.mxu0 0.0
    %3516 = vmatpush1.msra.mxu0 0.0
    %3517 = vmatprep.subr.mxu0 0.0
    %3518 = vmatpush1.msra.mxu0 0.0
    %3519 = vmatprep.subr.mxu0 0.0
    %3520 = vmatpush1.msra.mxu0 0.0
    %3521 = vmatprep.subr.mxu0 0.0
    %3522 = vmatpush1.msra.mxu0 0.0
    %3523 = vmatprep.subr.mxu0 0.0
    %3524 = vmatpush1.msra.mxu0 0.0
    %3525 = vmatprep.subr.mxu0 0.0
    %3526 = vmatpush1.msra.mxu0 0.0
    %3527 = vmatprep.subr.mxu0 0.0
    %3528 = vmatpush1.msra.mxu0 0.0
    %3529 = vmatprep.subr.mxu0 0.0
    %3530 = vmatpush1.msra.mxu0 %v3500
    %3531 = vmatprep.subr.mxu0 0.0
    %3532 = vmatpush1.msra.mxu0 %v3499
    %3533 = vmatprep.subr.mxu0 0.0
    %3534 = vmatpush2.msra.mxu0 0.0
    %3535 = vmatprep.subr.mxu0 0.0
    %3536 = vmatpush2.msra.mxu0 0.0
    %3537 = vmatprep.subr.mxu0 0.0
    %3538 = vmatpush2.msra.mxu0 0.0
    %3539 = vmatprep.subr.mxu0 0.0
    %3540 = vmatpush2.msra.mxu0 0.0
    %3541 = vmatprep.subr.mxu0 0.0
    %3542 = vmatpush2.msra.mxu0 0.0
    %3543 = vmatprep.subr.mxu0 0.0
    %3544 = vmatpush2.msra.mxu0 0.0
    %3545 = vmatprep.subr.mxu0 0.0
    %3546 = vmatpush2.msra.mxu0 0.0
    %3547 = vmatprep.subr.mxu0 0.0
    %3548 = vmatpush2.msra.mxu0 0.0
    %3549 = vmatprep.subr.mxu0 0.0
    %3550 = vmatpush2.msra.mxu0 0.0
    %3551 = vmatprep.subr.mxu0 0.0
    %3552 = vmatpush2.msra.mxu0 0.0
    %3553 = vmatprep.subr.mxu0 0.0
    %3554 = vmatpush2.msra.mxu0 0.0
    %3555 = vmatprep.subr.mxu0 0.0
    %3556 = vmatpush2.msra.mxu0 0.0
    %3557 = vmatprep.subr.mxu0 0.0
    %3558 = vmatpush2.msra.mxu0 0.0
    %3559 = vmatprep.subr.mxu0 0.0
    %3560 = vmatpush2.msra.mxu0 0.0
    %3561 = vmatprep.subr.mxu0 0.0
    %3562 = vmatpush2.msra.mxu0 0.0
    %3563 = vmatprep.subr.mxu0 0.0
    %3564 = vmatpush2.msra.mxu0 0.0
    %3565 = vmatprep.mubr.f32.mxu0 0.0
    %3566 = vmatmul.mubr.f32.gmra.mxu0 %v3179
    %v3567 = vpop.f32.mrf.mxu0
    %v3568 = vadd.f32 0.0, %v3567
    %v3569 = vpop.f32.mrf.mxu0
    %3570 = vdwg.mxu0
    %v3572 = vsel %vm39, %v3497, 0
    %3574 = vmatprep.subr.mxu0 0.0
    %3575 = vmatpush1.msra.mxu0 0.0
    %3576 = vmatprep.subr.mxu0 0.0
    %3577 = vmatpush1.msra.mxu0 0.0
    %3578 = vmatprep.subr.mxu0 0.0
    %3579 = vmatpush1.msra.mxu0 0.0
    %3580 = vmatprep.subr.mxu0 0.0
    %3581 = vmatpush1.msra.mxu0 0.0
    %3582 = vmatprep.subr.mxu0 0.0
    %3583 = vmatpush1.msra.mxu0 0.0
    %3584 = vmatprep.subr.mxu0 0.0
    %3585 = vmatpush1.msra.mxu0 0.0
    %3586 = vmatprep.subr.mxu0 0.0
    %3587 = vmatpush1.msra.mxu0 0.0
    %3588 = vmatprep.subr.mxu0 0.0
    %3589 = vmatpush1.msra.mxu0 0.0
    %3590 = vmatprep.subr.mxu0 0.0
    %3591 = vmatpush1.msra.mxu0 0.0
    %3592 = vmatprep.subr.mxu0 0.0
    %3593 = vmatpush1.msra.mxu0 0.0
    %3594 = vmatprep.subr.mxu0 0.0
    %3595 = vmatpush1.msra.mxu0 0.0
    %3596 = vmatprep.subr.mxu0 0.0
    %3597 = vmatpush1.msra.mxu0 0.0
    %3598 = vmatprep.subr.mxu0 0.0
    %3599 = vmatpush1.msra.mxu0 0.0
    %3600 = vmatprep.subr.mxu0 0.0
    %3601 = vmatpush1.msra.mxu0 0.0
    %3602 = vmatprep.subr.mxu0 0.0
    %3603 = vmatpush1.msra.mxu0 0.0
    %3604 = vmatprep.subr.mxu0 0.0
    %3605 = vmatpush1.msra.mxu0 %v3498
    %3606 = vmatprep.subr.mxu0 0.0
    %3607 = vmatpush2.msra.mxu0 0.0
    %3608 = vmatprep.subr.mxu0 0.0
    %3609 = vmatpush2.msra.mxu0 0.0
    %3610 = vmatprep.subr.mxu0 0.0
    %3611 = vmatpush2.msra.mxu0 0.0
    %3612 = vmatprep.subr.mxu0 0.0
    %3613 = vmatpush2.msra.mxu0 0.0
    %3614 = vmatprep.subr.mxu0 0.0
    %3615 = vmatpush2.msra.mxu0 0.0
    %3616 = vmatprep.subr.mxu0 0.0
    %3617 = vmatpush2.msra.mxu0 0.0
    %3618 = vmatprep.subr.mxu0 0.0
    %3619 = vmatpush2.msra.mxu0 0.0
    %3620 = vmatprep.subr.mxu0 0.0
    %3621 = vmatpush2.msra.mxu0 0.0
    %3622 = vmatprep.subr.mxu0 0.0
    %3623 = vmatpush2.msra.mxu0 0.0
    %3624 = vmatprep.subr.mxu0 0.0
    %3625 = vmatpush2.msra.mxu0 0.0
    %3626 = vmatprep.subr.mxu0 0.0
    %3627 = vmatpush2.msra.mxu0 0.0
    %3628 = vmatprep.subr.mxu0 0.0
    %3629 = vmatpush2.msra.mxu0 0.0
    %3630 = vmatprep.subr.mxu0 0.0
    %3631 = vmatpush2.msra.mxu0 0.0
    %3632 = vmatprep.subr.mxu0 0.0
    %3633 = vmatpush2.msra.mxu0 0.0
    %3634 = vmatprep.subr.mxu0 0.0
    %3635 = vmatpush2.msra.mxu0 0.0
    %3636 = vmatprep.subr.mxu0 0.0
    %3637 = vmatpush2.msra.mxu0 0.0
    %3638 = vmatprep.mubr.f32.mxu0 0.0
    %3639 = vmatmul.mubr.f32.gmra.mxu0 %v3572
    %v3640 = vpop.f32.mrf.mxu0
    %v3641 = vadd.f32 %v3568, %v3640
    %v3642 = vpop.f32.mrf.mxu0
    %3643 = vdwg.mxu0
    %v3644 = vld [vmem:[#allocation2 + $0x4a0] sm:$0x1]
    %v3645 = vlaneseq
    %v3646 = vshrl.u32 %v3645, 7
    %v3647 = vsub.s32 0, %v3646
    %v3648 = vrot.slane %v3644, %v3647
    %v3649 = vadd.f32 %v3641, %v3648
    %v3650 = vmax.f32 %v3649, 0.0
    %v3651 = vld [vmem:[#allocation2 + $0x4a8] sm:$0xff]
    %v3652 = vld [vmem:[#allocation2 + $0x4b0] sm:$0xff]
    %v3653 = vld [vmem:[#allocation2 + $0x4b8] sm:$0xff]
    %v3654 = vld [vmem:[#allocation2 + $0x4c0] sm:$0xff]
    %v3655 = vld [vmem:[#allocation2 + $0x4c8] sm:$0x1]
    %v3656 = vlaneseq
    %v3657 = vshrl.u32 %v3656, 7
    %v3658 = vsub.s32 0, %v3657
    %v3659 = vrot.slane %v3655, %v3658
    %v3661 = vsel %vm137, %v3650, 0
    %3663 = vmatprep.subr.mxu0 0.0
    %3664 = vmatpush1.msra.mxu0 0.0
    %3665 = vmatprep.subr.mxu0 0.0
    %3666 = vmatpush1.msra.mxu0 0.0
    %3667 = vmatprep.subr.mxu0 0.0
    %3668 = vmatpush1.msra.mxu0 0.0
    %3669 = vmatprep.subr.mxu0 0.0
    %3670 = vmatpush1.msra.mxu0 0.0
    %3671 = vmatprep.subr.mxu0 0.0
    %3672 = vmatpush1.msra.mxu0 0.0
    %3673 = vmatprep.subr.mxu0 0.0
    %3674 = vmatpush1.msra.mxu0 0.0
    %3675 = vmatprep.subr.mxu0 0.0
    %3676 = vmatpush1.msra.mxu0 0.0
    %3677 = vmatprep.subr.mxu0 0.0
    %3678 = vmatpush1.msra.mxu0 0.0
    %3679 = vmatprep.subr.mxu0 0.0
    %3680 = vmatpush1.msra.mxu0 0.0
    %3681 = vmatprep.subr.mxu0 0.0
    %3682 = vmatpush1.msra.mxu0 0.0
    %3683 = vmatprep.subr.mxu0 0.0
    %3684 = vmatpush1.msra.mxu0 0.0
    %3685 = vmatprep.subr.mxu0 0.0
    %3686 = vmatpush1.msra.mxu0 0.0
    %3687 = vmatprep.subr.mxu0 0.0
    %3688 = vmatpush1.msra.mxu0 %v3654
    %3689 = vmatprep.subr.mxu0 0.0
    %3690 = vmatpush1.msra.mxu0 %v3653
    %3691 = vmatprep.subr.mxu0 0.0
    %3692 = vmatpush1.msra.mxu0 %v3652
    %3693 = vmatprep.subr.mxu0 0.0
    %3694 = vmatpush1.msra.mxu0 %v3651
    %3695 = vmatprep.subr.mxu0 0.0
    %3696 = vmatpush2.msra.mxu0 0.0
    %3697 = vmatprep.subr.mxu0 0.0
    %3698 = vmatpush2.msra.mxu0 0.0
    %3699 = vmatprep.subr.mxu0 0.0
    %3700 = vmatpush2.msra.mxu0 0.0
    %3701 = vmatprep.subr.mxu0 0.0
    %3702 = vmatpush2.msra.mxu0 0.0
    %3703 = vmatprep.subr.mxu0 0.0
    %3704 = vmatpush2.msra.mxu0 0.0
    %3705 = vmatprep.subr.mxu0 0.0
    %3706 = vmatpush2.msra.mxu0 0.0
    %3707 = vmatprep.subr.mxu0 0.0
    %3708 = vmatpush2.msra.mxu0 0.0
    %3709 = vmatprep.subr.mxu0 0.0
    %3710 = vmatpush2.msra.mxu0 0.0
    %3711 = vmatprep.subr.mxu0 0.0
    %3712 = vmatpush2.msra.mxu0 0.0
    %3713 = vmatprep.subr.mxu0 0.0
    %3714 = vmatpush2.msra.mxu0 0.0
    %3715 = vmatprep.subr.mxu0 0.0
    %3716 = vmatpush2.msra.mxu0 0.0
    %3717 = vmatprep.subr.mxu0 0.0
    %3718 = vmatpush2.msra.mxu0 0.0
    %3719 = vmatprep.subr.mxu0 0.0
    %3720 = vmatpush2.msra.mxu0 0.0
    %3721 = vmatprep.subr.mxu0 0.0
    %3722 = vmatpush2.msra.mxu0 0.0
    %3723 = vmatprep.subr.mxu0 0.0
    %3724 = vmatpush2.msra.mxu0 0.0
    %3725 = vmatprep.subr.mxu0 0.0
    %3726 = vmatpush2.msra.mxu0 0.0
    %3727 = vmatprep.mubr.f32.mxu0 0.0
    %3728 = vmatmul.mubr.f32.gmra.mxu0 %v3661
    %v3729 = vpop.f32.mrf.mxu0
    %v3730 = vadd.f32 %v3659, %v3729
    %v3731 = vpop.f32.mrf.mxu0
    %3732 = vdwg.mxu0
    %v3733 = vtanh.pop %v3730
    %vm3734 = vcmask 25600
    %3735 = vst.msk [vmem:[%s4] sm:$0x3] %vm3734, %v3733
    %3737 = vrot.lane.b32.xlu0 %v3410, 4
    %v3738 = vpop.permute.xlu0 %3737
    %vm3740 = vcmask 91168
    %3741 = vst.msk [vmem:[%s4] sm:$0x3] %vm3740, %v3738
    %3743 = vrot.lane.b32.xlu0 %v3489, 12
    %v3744 = vpop.permute.xlu0 %3743
    %vm3746 = vcmask 156768
    %3747 = vst.msk [vmem:[%s4] sm:$0x3] %vm3746, %v3744
    %3748 = vrot.lane.b32.xlu0 %v3497, 20
    %v3749 = vpop.permute.xlu0 %3748
    %vm3751 = vcmask 222368
    %3752 = vst.msk [vmem:[%s4] sm:$0x3] %vm3751, %v3749
    // Predicated region
    $region22: #{forward.1} parent=1 // pred_check
      _
    $region23: #{forward.1} parent=1 // pred_check_branch
      %3754 = sbr.rel (0) target = $region25
    $region24: #{forward.1} parent=1 // pred_region
      _
    $region25: #{forward.1} parent=1 // pred_fallthru
      _
    // Predicated region
    $region26: #{forward.1} parent=1 // pred_check
      _
    $region27: #{forward.1} parent=1 // pred_check_branch
      %3756 = sbr.rel (0) target = $region29
    $region28: #{forward.1} parent=1 // pred_region
      _
    $region29: #{forward.1} parent=1 // pred_fallthru
      _
    %3757 = vsyncpa [#allocation3], 1

</llo_original>
